<compile_context>
chip_gen: v7x
topology: tpu7x:2x2x1
jax: 0.10.0
libtpu: 0.0.40
codegen_flags: <defaults>
</compile_context>

<pallas_src>
import math

import jax
import jax.numpy as jnp
from jax.experimental import pallas as pl
from jax.experimental.pallas import tpu as pltpu


EPS = 1e-5

# Natural sizes from the PyTorch module.
M_IN, J_IN, A_IN = 415 * 3, 108 * 3, 4519 * 3      # 1245, 324, 13557
M_OUT, J_OUT, A_OUT = 23, 4, 34
OUT_DIM = 14 + M_OUT + J_OUT + 20                  # 61


def _ceil_to(n, m):
    return ((n + m - 1) // m) * m


# Lane-aligned (multiple-of-128) sizes used inside the kernel.
M_IN_P = _ceil_to(M_IN, 128)                       # 1280
J_IN_P = _ceil_to(J_IN, 128)                       # 384
NK = 4                                             # wa1 K-chunks (grid length)
A_IN_P = _ceil_to(pl.cdiv(A_IN, NK), 128) * NK     # 13824 (NK lane-aligned chunks)
CHUNK_K = A_IN_P // NK                             # 3456
NVEC = 9                                           # rows in the packed vector slab


def _bn_train(h, gamma, beta):
    """Training-mode BatchNorm1d folded to scale/shift; two-pass variance."""
    mu = jnp.mean(h, axis=0, keepdims=True)
    d = h - mu
    var = jnp.mean(d * d, axis=0, keepdims=True)
    return d * (gamma * jax.lax.rsqrt(var + EPS)) + beta


def objmj_kernel(
    xm_ref, xj_ref, xa_ref,
    wm1_ref, wj1_ref, wa1_ref, wa3_ref, whead_ref, vec_ref,
    out_ref,
    acc_ref, mj_ref,
):
    f32, bf16 = jnp.float32, jnp.bfloat16
    h1p = wm1_ref.shape[1]          # padded dim_h1      (128)
    h2p = wa1_ref.shape[1]          # padded 2*dim_h1    (256)
    out_dim = out_ref.shape[1]      # 61
    k = pl.program_id(0)

    # Packed vector slab rows:
    #  0 gm1 | 1 bem1 | 2 gj1 | 3 bej1 | 4 ga1 | 5 bea1 | 6 ga3 | 7 bea3
    #  8 fused head bias (already in final concat order)

    # Step 0: zero the a-branch accumulator and run the (small) m/j branches
    # while the remaining wa1 chunks are still streaming in.
    @pl.when(k == 0)
    def _():
        acc_ref[...] = jnp.zeros_like(acc_ref)
        v = vec_ref[...]
        hm = jnp.dot(xm_ref[...].astype(bf16), wm1_ref[...],
                     preferred_element_type=f32)
        hm = jax.nn.sigmoid(_bn_train(hm, v[0:1, :h1p], v[1:2, :h1p]))
        mj_ref[:, :h1p] = hm
        hj = jnp.dot(xj_ref[...].astype(bf16), wj1_ref[...],
                     preferred_element_type=f32)
        hj = jax.nn.sigmoid(_bn_train(hj, v[2:3, :h1p], v[3:4, :h1p]))
        mj_ref[:, h1p:] = hj

    # Every step: accumulate one K-chunk of the big a-branch matmul.
    acc_ref[...] += jnp.dot(xa_ref[...].astype(bf16), wa1_ref[...],
                            preferred_element_type=f32)

    # Last step: a-branch epilogue + fused, column-permuted head -> final layout.
    @pl.when(k == pl.num_programs(0) - 1)
    def _():
        v = vec_ref[...]
        ha = jax.nn.sigmoid(_bn_train(acc_ref[...], v[4:5, :], v[5:6, :]))
        ha = jnp.dot(ha.astype(bf16), wa3_ref[...], preferred_element_type=f32)
        ha = jnp.maximum(_bn_train(ha, v[6:7, :h1p], v[7:8, :h1p]), 0.0)
        hidden = jnp.concatenate([ha, mj_ref[...]], axis=1).astype(bf16)
        out = jnp.dot(hidden, whead_ref[...], preferred_element_type=f32)
        out = jnp.maximum(out + v[8:9, :h1p], 0.0)
        out_ref[...] = out[:, :out_dim]


@jax.jit
def objmjmodel1_forward(m, j, a, kparams):
    """Mirrors ObjMJModel1.forward for x = (m, j, a), BatchNorm in training mode."""
    m2 = m.reshape(-1, M_IN).astype(jnp.float32)
    j2 = j.reshape(-1, J_IN).astype(jnp.float32)
    a2 = a.reshape(-1, A_IN).astype(jnp.float32)
    B = m2.shape[0]

    # Lane-align the feature axes (zero cols pair with zero-padded weight rows).
    m2 = jnp.pad(m2, ((0, 0), (0, M_IN_P - M_IN)))
    j2 = jnp.pad(j2, ((0, 0), (0, J_IN_P - J_IN)))
    a2 = jnp.pad(a2, ((0, 0), (0, A_IN_P - A_IN)))

    h1p = kparams["wm1"].shape[1]
    h2p = kparams["wa1"].shape[1]

    return pl.pallas_call(
        objmj_kernel,
        out_shape=jax.ShapeDtypeStruct((B, OUT_DIM), jnp.float32),
        grid=(NK,),
        in_specs=[
            pl.BlockSpec((B, M_IN_P), lambda k: (0, 0)),      # xm    (resident)
            pl.BlockSpec((B, J_IN_P), lambda k: (0, 0)),      # xj    (resident)
            pl.BlockSpec((B, CHUNK_K), lambda k: (0, k)),     # xa    (streamed)
            pl.BlockSpec((M_IN_P, h1p), lambda k: (0, 0)),    # wm1   (resident)
            pl.BlockSpec((J_IN_P, h1p), lambda k: (0, 0)),    # wj1   (resident)
            pl.BlockSpec((CHUNK_K, h2p), lambda k: (k, 0)),   # wa1   (streamed)
            pl.BlockSpec((h2p, h1p), lambda k: (0, 0)),       # wa3   (resident)
            pl.BlockSpec((3 * h1p, h1p), lambda k: (0, 0)),   # whead (resident)
            pl.BlockSpec((NVEC, h2p), lambda k: (0, 0)),      # vec   (resident)
        ],
        out_specs=pl.BlockSpec((B, OUT_DIM), lambda k: (0, 0)),
        scratch_shapes=[
            pltpu.VMEM((B, h2p), jnp.float32),        # a-branch K accumulator
            pltpu.VMEM((B, 2 * h1p), jnp.float32),    # m/j hidden activations
        ],
        compiler_params=pltpu.CompilerParams(
            dimension_semantics=("arbitrary",),
            vmem_limit_bytes=24 * 1024 * 1024,
        ),
    )(m2, j2, a2,
      kparams["wm1"], kparams["wj1"], kparams["wa1"], kparams["wa3"],
      kparams["whead"], kparams["vec"])


# ----------------------------------------------------------------------------
# Parameter construction / packing
# ----------------------------------------------------------------------------
def init_params(key, dim_h1=100):
    """Unpadded f32 params; nn.Linear-style U(-1/sqrt(fan_in), +) init.
    Weights stored pre-transposed as (in_features, out_features)."""
    def linear(k, fan_in, fan_out):
        kw, kb = jax.random.split(k)
        bound = 1.0 / math.sqrt(fan_in)
        w = jax.random.uniform(kw, (fan_in, fan_out), jnp.float32, -bound, bound)
        b = jax.random.uniform(kb, (fan_out,), jnp.float32, -bound, bound)
        return w, b

    ks = jax.random.split(key, 11)
    wm1, bm1 = linear(ks[0], M_IN, dim_h1)
    wm2, bm2 = linear(ks[1], dim_h1, M_OUT)
    wj1, bj1 = linear(ks[2], J_IN, dim_h1)
    wj2, bj2 = linear(ks[3], dim_h1, J_OUT)
    wa1, ba1 = linear(ks[4], A_IN, 2 * dim_h1)
    wa3, ba3 = linear(ks[5], 2 * dim_h1, dim_h1)
    wa2, ba2 = linear(ks[6], dim_h1, A_OUT)

    # PyTorch default BN init is gamma=1 / beta=0; use non-trivial values here
    # so the BN affine path is actually exercised by the self-test.
    def bn_init(k, n):
        kg, kb = jax.random.split(k)
        g = 1.0 + 0.2 * jax.random.uniform(kg, (n,), jnp.float32, -1.0, 1.0)
        b = 0.1 * jax.random.uniform(kb, (n,), jnp.float32, -1.0, 1.0)
        return g, b

    gm1, bem1 = bn_init(ks[7], dim_h1)
    gj1, bej1 = bn_init(ks[8], dim_h1)
    ga1, bea1 = bn_init(ks[9], 2 * dim_h1)
    ga3, bea3 = bn_init(ks[10], dim_h1)

    return {
        "wm1": wm1, "bm1": bm1, "gm1": gm1, "bem1": bem1,
        "wm2": wm2, "bm2": bm2,
        "wj1": wj1, "bj1": bj1, "gj1": gj1, "bej1": bej1,
        "wj2": wj2, "bj2": bj2,
        "wa1": wa1, "ba1": ba1, "ga1": ga1, "bea1": bea1,
        "wa3": wa3, "ba3": ba3, "ga3": ga3, "bea3": bea3,
        "wa2": wa2, "ba2": ba2,
    }


def pack_params(p):
    """Kernel-side params: bf16 weights zero-padded to lane-aligned shapes, a
    single column-permuted head weight that emits the final concat layout, and
    all BN gammas/betas + the fused head bias packed into one f32 (9, 2H_pad)
    slab.  Linear biases feeding a training-mode BN (bm1, bj1, ba1, ba3) are
    dropped — they are cancelled exactly by the BN mean subtraction."""
    dim_h1 = p["wm1"].shape[1]
    h1p = _ceil_to(dim_h1, 128)
    h2p = _ceil_to(2 * dim_h1, 128)

    def pad2(w, rows, cols):
        return jnp.pad(w, ((0, rows - w.shape[0]), (0, cols - w.shape[1])))

    def vrow(v):
        return jnp.pad(v, (0, h2p - v.shape[0]))[None, :]

    # Fused head: rows [0:h1p) <- a-hidden, [h1p:2h1p) <- m-hidden,
    # [2h1p:3h1p) <- j-hidden; columns already in the final concat order:
    #   out[:, 0:14]=a[:, :14], [14:37]=m, [37:41]=j, [41:61]=a[:, 14:34].
    whead = jnp.zeros((3 * h1p, h1p), jnp.float32)
    whead = whead.at[:dim_h1, 0:14].set(p["wa2"][:, :14])
    whead = whead.at[:dim_h1, 41:61].set(p["wa2"][:, 14:34])
    whead = whead.at[h1p:h1p + dim_h1, 14:37].set(p["wm2"])
    whead = whead.at[2 * h1p:2 * h1p + dim_h1, 37:41].set(p["wj2"])

    bhead = jnp.zeros((h1p,), jnp.float32)
    bhead = bhead.at[0:14].set(p["ba2"][:14])
    bhead = bhead.at[41:61].set(p["ba2"][14:34])
    bhead = bhead.at[14:37].set(p["bm2"])
    bhead = bhead.at[37:41].set(p["bj2"])

    vec = jnp.concatenate(
        [vrow(p["gm1"]), vrow(p["bem1"]),
         vrow(p["gj1"]), vrow(p["bej1"]),
         vrow(p["ga1"]), vrow(p["bea1"]),
         vrow(p["ga3"]), vrow(p["bea3"]),
         vrow(bhead)],
        axis=0,
    )

    bf = lambda w: w.astype(jnp.bfloat16)
    return {
        "wm1": bf(pad2(p["wm1"], M_IN_P, h1p)),
        "wj1": bf(pad2(p["wj1"], J_IN_P, h1p)),
        "wa1": bf(pad2(p["wa1"], A_IN_P, h2p)),
        "wa3": bf(pad2(p["wa3"], h2p, h1p)),
        "whead": bf(whead),
        "vec": vec,                      # f32: BN params + fused head bias
    }


# ----------------------------------------------------------------------------
# Pure-JAX reference (unpadded, all biases, training-mode BN).
# matmul_dtype=f32 gives the exact model; bf16 mirrors the kernel's MXU inputs.
# ----------------------------------------------------------------------------
def reference_forward(m, j, a, p, matmul_dtype=jnp.float32):
    def dot(x, w):
        return jnp.dot(x.astype(matmul_dtype), w.astype(matmul_dtype),
                       preferred_element_type=jnp.float32)

    def bn(h, g, b):
        mu = jnp.mean(h, axis=0, keepdims=True)
        d = h - mu
        var = jnp.mean(d * d, axis=0, keepdims=True)
        return d * jax.lax.rsqrt(var + EPS) * g + b

    m = m.reshape(-1, M_IN).astype(jnp.float32)
    j = j.reshape(-1, J_IN).astype(jnp.float32)
    a = a.reshape(-1, A_IN).astype(jnp.float32)

    hm = dot(m, p["wm1"]) + p["bm1"]
    hm = jax.nn.sigmoid(bn(hm, p["gm1"], p["bem1"]))
    hm = jnp.maximum(dot(hm, p["wm2"]) + p["bm2"], 0.0)

    hj = dot(j, p["wj1"]) + p["bj1"]
    hj = jax.nn.sigmoid(bn(hj, p["gj1"], p["bej1"]))
    hj = jnp.maximum(dot(hj, p["wj2"]) + p["bj2"], 0.0)

    ha = dot(a, p["wa1"]) + p["ba1"]
    ha = jax.nn.sigmoid(bn(ha, p["ga1"], p["bea1"]))
    ha = dot(ha, p["wa3"]) + p["ba3"]
    ha = jnp.maximum(bn(ha, p["ga3"], p["bea3"]), 0.0)
    ha = jnp.maximum(dot(ha, p["wa2"]) + p["ba2"], 0.0)

    return jnp.concatenate([ha[:, :14], hm, hj, ha[:, 14:34]], axis=1)


if __name__ == "__main__":
    dim_h1 = 100
    B = 8  # BatchNorm training mode needs B > 1; 8 = one sublane group.

    key = jax.random.PRNGKey(0)
    km, kj, ka, kp = jax.random.split(key, 4)
    # x[0], x[1], x[2] of the PyTorch forward.
    m = jax.random.normal(km, (B, M_IN), jnp.float32)
    j = jax.random.normal(kj, (B, J_IN), jnp.float32)
    a = jax.random.normal(ka, (B, A_IN), jnp.float32)

    params = init_params(kp, dim_h1)
    kparams = pack_params(params)

    out = objmjmodel1_forward(m, j, a, kparams)
    out = jax.block_until_ready(out)
    assert out.shape == (B, OUT_DIM), out.shape

    # Tight check vs a reference that mirrors the kernel's bf16 matmul inputs.
    ref_bf16 = reference_forward(m, j, a, params, matmul_dtype=jnp.bfloat16)
    err_b = float(jnp.max(jnp.abs(out - ref_bf16)))
    assert jnp.allclose(out, ref_bf16, atol=1e-2, rtol=1e-2), err_b

    # Loose sanity check vs the exact f32 model (bounds the bf16 quant error).
    ref_f32 = reference_forward(m, j, a, params, matmul_dtype=jnp.float32)
    err_f = float(jnp.max(jnp.abs(out - ref_f32)))
    assert err_f < 0.3, err_f

    print("KERNEL_OK")
</pallas_src>

<mosaic_0001>
module attributes {stable_mosaic.version = 11 : i64} {
  func.func @objmj_kernel(%arg0: i32, %arg1: memref<8x1280xf32, #tpu.memory_space<vmem>>, %arg2: memref<8x384xf32, #tpu.memory_space<vmem>>, %arg3: memref<8x3456xf32, #tpu.memory_space<vmem>>, %arg4: memref<1280x128xbf16, #tpu.memory_space<vmem>>, %arg5: memref<384x128xbf16, #tpu.memory_space<vmem>>, %arg6: memref<3456x256xbf16, #tpu.memory_space<vmem>>, %arg7: memref<256x128xbf16, #tpu.memory_space<vmem>>, %arg8: memref<384x128xbf16, #tpu.memory_space<vmem>>, %arg9: memref<9x256xf32, #tpu.memory_space<vmem>>, %arg10: memref<8x61xf32, #tpu.memory_space<vmem>>, %arg11: memref<8x256xf32, #tpu.memory_space<vmem>>, %arg12: memref<8x256xf32, #tpu.memory_space<vmem>>) attributes {dimension_semantics = [#tpu.dimension_semantics<arbitrary>], iteration_bounds = array<i64: 4>, scalar_prefetch = 0 : i64, scratch_operands = 2 : i64, tpu.core_type = #tpu.core_type<tc>, window_params = [{pipeline_mode = #tpu.pipeline_mode<synchronous>, transform_indices = @transform_0, window_bounds = array<i64: 8, 1280>}, {pipeline_mode = #tpu.pipeline_mode<synchronous>, transform_indices = @transform_1, window_bounds = array<i64: 8, 384>}, {transform_indices = @transform_2, window_bounds = array<i64: 8, 3456>}, {pipeline_mode = #tpu.pipeline_mode<synchronous>, transform_indices = @transform_3, window_bounds = array<i64: 1280, 128>}, {pipeline_mode = #tpu.pipeline_mode<synchronous>, transform_indices = @transform_4, window_bounds = array<i64: 384, 128>}, {transform_indices = @transform_5, window_bounds = array<i64: 3456, 256>}, {pipeline_mode = #tpu.pipeline_mode<synchronous>, transform_indices = @transform_6, window_bounds = array<i64: 256, 128>}, {pipeline_mode = #tpu.pipeline_mode<synchronous>, transform_indices = @transform_7, window_bounds = array<i64: 384, 128>}, {pipeline_mode = #tpu.pipeline_mode<synchronous>, transform_indices = @transform_8, window_bounds = array<i64: 9, 256>}, {pipeline_mode = #tpu.pipeline_mode<synchronous>, transform_indices = @transform_9, window_bounds = array<i64: 8, 61>}]} {
    %c0_i32 = arith.constant 0 : i32
    %0 = arith.cmpi eq, %arg0, %c0_i32 : i32
    %1 = arith.extui %0 : i1 to i32
    %c0_i32_0 = arith.constant 0 : i32
    %2 = arith.cmpi ne, %1, %c0_i32_0 : i32
    scf.if %2 {
      %cst_9 = arith.constant 0.000000e+00 : f32
      %13 = vector.broadcast %cst_9 : f32 to vector<8x256xf32>
      %c0_10 = arith.constant 0 : index
      %c0_11 = arith.constant 0 : index
      %14 = vector.load %arg11[%c0_10, %c0_11] : memref<8x256xf32, #tpu.memory_space<vmem>>, vector<8x256xf32>
      tpu.vector_store %arg11[%c0_10, %c0_11], %13 {strides = array<i32>} : memref<8x256xf32, #tpu.memory_space<vmem>>, vector<8x256xf32>,
      %c0_12 = arith.constant 0 : index
      %c0_13 = arith.constant 0 : index
      %15 = vector.load %arg9[%c0_12, %c0_13] : memref<9x256xf32, #tpu.memory_space<vmem>>, vector<9x256xf32>
      %c0_14 = arith.constant 0 : index
      %c0_15 = arith.constant 0 : index
      %16 = vector.load %arg1[%c0_14, %c0_15] : memref<8x1280xf32, #tpu.memory_space<vmem>>, vector<8x1280xf32>
      %17 = arith.truncf %16 : vector<8x1280xf32> to vector<8x1280xbf16>
      %c0_16 = arith.constant 0 : index
      %c0_17 = arith.constant 0 : index
      %18 = vector.load %arg4[%c0_16, %c0_17] : memref<1280x128xbf16, #tpu.memory_space<vmem>>, vector<1280x128xbf16>
      %cst_18 = arith.constant dense<0.000000e+00> : vector<8x128xf32>
      %19 = tpu.matmul %17, %18, %cst_18 {dimension_numbers = #tpu.dot_dimension_numbers<[1], [0], [0], [1], [0, 0, 1, 1], [], []>} : vector<8x1280xbf16>, vector<1280x128xbf16>, vector<8x128xf32> -> vector<8x128xf32>
      %20 = vector.extract_strided_slice %15 {offsets = [0, 0], sizes = [1, 128], strides = [1, 1]} : vector<9x256xf32> to vector<1x128xf32>
      %21 = vector.extract_strided_slice %15 {offsets = [1, 0], sizes = [1, 128], strides = [1, 1]} : vector<9x256xf32> to vector<1x128xf32>
      %cst_19 = arith.constant dense<0.000000e+00> : vector<128xf32>
      %22 = vector.multi_reduction <add>, %19, %cst_19 [0] : vector<8x128xf32> to vector<128xf32>
      %23 = vector.shape_cast %22 : vector<128xf32> to vector<1x128xf32>
      %cst_20 = arith.constant 8.000000e+00 : f32
      %24 = vector.broadcast %cst_20 : f32 to vector<1x128xf32>
      %25 = arith.divf %23, %24 : vector<1x128xf32>
      %26 = vector.broadcast %25 : vector<1x128xf32> to vector<8x128xf32>
      %27 = arith.subf %19, %26 : vector<8x128xf32>
      %28 = arith.mulf %27, %27 : vector<8x128xf32>
      %cst_21 = arith.constant dense<0.000000e+00> : vector<128xf32>
      %29 = vector.multi_reduction <add>, %28, %cst_21 [0] : vector<8x128xf32> to vector<128xf32>
      %30 = vector.shape_cast %29 : vector<128xf32> to vector<1x128xf32>
      %cst_22 = arith.constant 8.000000e+00 : f32
      %31 = vector.broadcast %cst_22 : f32 to vector<1x128xf32>
      %32 = arith.divf %30, %31 : vector<1x128xf32>
      %cst_23 = arith.constant 9.99999974E-6 : f32
      %33 = vector.broadcast %cst_23 : f32 to vector<1x128xf32>
      %34 = arith.addf %32, %33 : vector<1x128xf32>
      %35 = math.rsqrt %34 : vector<1x128xf32>
      %36 = arith.mulf %20, %35 : vector<1x128xf32>
      %37 = vector.broadcast %36 : vector<1x128xf32> to vector<8x128xf32>
      %38 = arith.mulf %27, %37 : vector<8x128xf32>
      %39 = vector.broadcast %21 : vector<1x128xf32> to vector<8x128xf32>
      %40 = arith.addf %38, %39 : vector<8x128xf32>
      %41 = arith.negf %40 : vector<8x128xf32>
      %42 = math.exp %41 : vector<8x128xf32>
      %cst_24 = arith.constant 1.000000e+00 : f32
      %43 = vector.broadcast %cst_24 : f32 to vector<8x128xf32>
      %44 = arith.addf %43, %42 : vector<8x128xf32>
      %45 = arith.divf %43, %44 : vector<8x128xf32>
      %c0_25 = arith.constant 0 : index
      %c0_26 = arith.constant 0 : index
      %46 = vector.load %arg12[%c0_25, %c0_26] : memref<8x256xf32, #tpu.memory_space<vmem>>, vector<8x128xf32>
      tpu.vector_store %arg12[%c0_25, %c0_26], %45 {strides = array<i32>} : memref<8x256xf32, #tpu.memory_space<vmem>>, vector<8x128xf32>,
      %c0_27 = arith.constant 0 : index
      %c0_28 = arith.constant 0 : index
      %47 = vector.load %arg2[%c0_27, %c0_28] : memref<8x384xf32, #tpu.memory_space<vmem>>, vector<8x384xf32>
      %48 = arith.truncf %47 : vector<8x384xf32> to vector<8x384xbf16>
      %c0_29 = arith.constant 0 : index
      %c0_30 = arith.constant 0 : index
      %49 = vector.load %arg5[%c0_29, %c0_30] : memref<384x128xbf16, #tpu.memory_space<vmem>>, vector<384x128xbf16>
      %cst_31 = arith.constant dense<0.000000e+00> : vector<8x128xf32>
      %50 = tpu.matmul %48, %49, %cst_31 {dimension_numbers = #tpu.dot_dimension_numbers<[1], [0], [0], [1], [0, 0, 1, 1], [], []>} : vector<8x384xbf16>, vector<384x128xbf16>, vector<8x128xf32> -> vector<8x128xf32>
      %51 = vector.extract_strided_slice %15 {offsets = [2, 0], sizes = [1, 128], strides = [1, 1]} : vector<9x256xf32> to vector<1x128xf32>
      %52 = vector.extract_strided_slice %15 {offsets = [3, 0], sizes = [1, 128], strides = [1, 1]} : vector<9x256xf32> to vector<1x128xf32>
      %cst_32 = arith.constant dense<0.000000e+00> : vector<128xf32>
      %53 = vector.multi_reduction <add>, %50, %cst_32 [0] : vector<8x128xf32> to vector<128xf32>
      %54 = vector.shape_cast %53 : vector<128xf32> to vector<1x128xf32>
      %cst_33 = arith.constant 8.000000e+00 : f32
      %55 = vector.broadcast %cst_33 : f32 to vector<1x128xf32>
      %56 = arith.divf %54, %55 : vector<1x128xf32>
      %57 = vector.broadcast %56 : vector<1x128xf32> to vector<8x128xf32>
      %58 = arith.subf %50, %57 : vector<8x128xf32>
      %59 = arith.mulf %58, %58 : vector<8x128xf32>
      %cst_34 = arith.constant dense<0.000000e+00> : vector<128xf32>
      %60 = vector.multi_reduction <add>, %59, %cst_34 [0] : vector<8x128xf32> to vector<128xf32>
      %61 = vector.shape_cast %60 : vector<128xf32> to vector<1x128xf32>
      %cst_35 = arith.constant 8.000000e+00 : f32
      %62 = vector.broadcast %cst_35 : f32 to vector<1x128xf32>
      %63 = arith.divf %61, %62 : vector<1x128xf32>
      %cst_36 = arith.constant 9.99999974E-6 : f32
      %64 = vector.broadcast %cst_36 : f32 to vector<1x128xf32>
      %65 = arith.addf %63, %64 : vector<1x128xf32>
      %66 = math.rsqrt %65 : vector<1x128xf32>
      %67 = arith.mulf %51, %66 : vector<1x128xf32>
      %68 = vector.broadcast %67 : vector<1x128xf32> to vector<8x128xf32>
      %69 = arith.mulf %58, %68 : vector<8x128xf32>
      %70 = vector.broadcast %52 : vector<1x128xf32> to vector<8x128xf32>
      %71 = arith.addf %69, %70 : vector<8x128xf32>
      %72 = arith.negf %71 : vector<8x128xf32>
      %73 = math.exp %72 : vector<8x128xf32>
      %cst_37 = arith.constant 1.000000e+00 : f32
      %74 = vector.broadcast %cst_37 : f32 to vector<8x128xf32>
      %75 = arith.addf %74, %73 : vector<8x128xf32>
      %76 = arith.divf %74, %75 : vector<8x128xf32>
      %c0_38 = arith.constant 0 : index
      %c128 = arith.constant 128 : index
      %77 = vector.load %arg12[%c0_38, %c128] : memref<8x256xf32, #tpu.memory_space<vmem>>, vector<8x128xf32>
      tpu.vector_store %arg12[%c0_38, %c128], %76 {strides = array<i32>} : memref<8x256xf32, #tpu.memory_space<vmem>>, vector<8x128xf32>,
    } else {
    }
    %c0 = arith.constant 0 : index
    %c0_1 = arith.constant 0 : index
    %3 = vector.load %arg11[%c0, %c0_1] : memref<8x256xf32, #tpu.memory_space<vmem>>, vector<8x256xf32>
    %c0_2 = arith.constant 0 : index
    %c0_3 = arith.constant 0 : index
    %4 = vector.load %arg3[%c0_2, %c0_3] : memref<8x3456xf32, #tpu.memory_space<vmem>>, vector<8x3456xf32>
    %5 = arith.truncf %4 : vector<8x3456xf32> to vector<8x3456xbf16>
    %c0_4 = arith.constant 0 : index
    %c0_5 = arith.constant 0 : index
    %6 = vector.load %arg6[%c0_4, %c0_5] : memref<3456x256xbf16, #tpu.memory_space<vmem>>, vector<3456x256xbf16>
    %cst = arith.constant dense<0.000000e+00> : vector<8x256xf32>
    %7 = tpu.matmul %5, %6, %cst {dimension_numbers = #tpu.dot_dimension_numbers<[1], [0], [0], [1], [0, 0, 1, 1], [], []>} : vector<8x3456xbf16>, vector<3456x256xbf16>, vector<8x256xf32> -> vector<8x256xf32>
    %8 = arith.addf %3, %7 : vector<8x256xf32>
    %c0_6 = arith.constant 0 : index
    %c0_7 = arith.constant 0 : index
    %9 = vector.load %arg11[%c0_6, %c0_7] : memref<8x256xf32, #tpu.memory_space<vmem>>, vector<8x256xf32>
    tpu.vector_store %arg11[%c0_6, %c0_7], %8 {strides = array<i32>} : memref<8x256xf32, #tpu.memory_space<vmem>>, vector<8x256xf32>,
    %c3_i32 = arith.constant 3 : i32
    %10 = arith.cmpi eq, %arg0, %c3_i32 : i32
    %11 = arith.extui %10 : i1 to i32
    %c0_i32_8 = arith.constant 0 : i32
    %12 = arith.cmpi ne, %11, %c0_i32_8 : i32
    scf.if %12 {
      %c0_9 = arith.constant 0 : index
      %c0_10 = arith.constant 0 : index
      %13 = vector.load %arg9[%c0_9, %c0_10] : memref<9x256xf32, #tpu.memory_space<vmem>>, vector<9x256xf32>
      %c0_11 = arith.constant 0 : index
      %c0_12 = arith.constant 0 : index
      %14 = vector.load %arg11[%c0_11, %c0_12] : memref<8x256xf32, #tpu.memory_space<vmem>>, vector<8x256xf32>
      %15 = vector.extract_strided_slice %13 {offsets = [4, 0], sizes = [1, 256], strides = [1, 1]} : vector<9x256xf32> to vector<1x256xf32>
      %16 = vector.extract_strided_slice %13 {offsets = [5, 0], sizes = [1, 256], strides = [1, 1]} : vector<9x256xf32> to vector<1x256xf32>
      %cst_13 = arith.constant dense<0.000000e+00> : vector<256xf32>
      %17 = vector.multi_reduction <add>, %14, %cst_13 [0] : vector<8x256xf32> to vector<256xf32>
      %18 = vector.shape_cast %17 : vector<256xf32> to vector<1x256xf32>
      %cst_14 = arith.constant 8.000000e+00 : f32
      %19 = vector.broadcast %cst_14 : f32 to vector<1x256xf32>
      %20 = arith.divf %18, %19 : vector<1x256xf32>
      %21 = vector.broadcast %20 : vector<1x256xf32> to vector<8x256xf32>
      %22 = arith.subf %14, %21 : vector<8x256xf32>
      %23 = arith.mulf %22, %22 : vector<8x256xf32>
      %cst_15 = arith.constant dense<0.000000e+00> : vector<256xf32>
      %24 = vector.multi_reduction <add>, %23, %cst_15 [0] : vector<8x256xf32> to vector<256xf32>
      %25 = vector.shape_cast %24 : vector<256xf32> to vector<1x256xf32>
      %cst_16 = arith.constant 8.000000e+00 : f32
      %26 = vector.broadcast %cst_16 : f32 to vector<1x256xf32>
      %27 = arith.divf %25, %26 : vector<1x256xf32>
      %cst_17 = arith.constant 9.99999974E-6 : f32
      %28 = vector.broadcast %cst_17 : f32 to vector<1x256xf32>
      %29 = arith.addf %27, %28 : vector<1x256xf32>
      %30 = math.rsqrt %29 : vector<1x256xf32>
      %31 = arith.mulf %15, %30 : vector<1x256xf32>
      %32 = vector.broadcast %31 : vector<1x256xf32> to vector<8x256xf32>
      %33 = arith.mulf %22, %32 : vector<8x256xf32>
      %34 = vector.broadcast %16 : vector<1x256xf32> to vector<8x256xf32>
      %35 = arith.addf %33, %34 : vector<8x256xf32>
      %36 = arith.negf %35 : vector<8x256xf32>
      %37 = math.exp %36 : vector<8x256xf32>
      %cst_18 = arith.constant 1.000000e+00 : f32
      %38 = vector.broadcast %cst_18 : f32 to vector<8x256xf32>
      %39 = arith.addf %38, %37 : vector<8x256xf32>
      %40 = arith.divf %38, %39 : vector<8x256xf32>
      %41 = arith.truncf %40 : vector<8x256xf32> to vector<8x256xbf16>
      %c0_19 = arith.constant 0 : index
      %c0_20 = arith.constant 0 : index
      %42 = vector.load %arg7[%c0_19, %c0_20] : memref<256x128xbf16, #tpu.memory_space<vmem>>, vector<256x128xbf16>
      %cst_21 = arith.constant dense<0.000000e+00> : vector<8x128xf32>
      %43 = tpu.matmul %41, %42, %cst_21 {dimension_numbers = #tpu.dot_dimension_numbers<[1], [0], [0], [1], [0, 0, 1, 1], [], []>} : vector<8x256xbf16>, vector<256x128xbf16>, vector<8x128xf32> -> vector<8x128xf32>
      %44 = vector.extract_strided_slice %13 {offsets = [6, 0], sizes = [1, 128], strides = [1, 1]} : vector<9x256xf32> to vector<1x128xf32>
      %45 = vector.extract_strided_slice %13 {offsets = [7, 0], sizes = [1, 128], strides = [1, 1]} : vector<9x256xf32> to vector<1x128xf32>
      %cst_22 = arith.constant dense<0.000000e+00> : vector<128xf32>
      %46 = vector.multi_reduction <add>, %43, %cst_22 [0] : vector<8x128xf32> to vector<128xf32>
      %47 = vector.shape_cast %46 : vector<128xf32> to vector<1x128xf32>
      %cst_23 = arith.constant 8.000000e+00 : f32
      %48 = vector.broadcast %cst_23 : f32 to vector<1x128xf32>
      %49 = arith.divf %47, %48 : vector<1x128xf32>
      %50 = vector.broadcast %49 : vector<1x128xf32> to vector<8x128xf32>
      %51 = arith.subf %43, %50 : vector<8x128xf32>
      %52 = arith.mulf %51, %51 : vector<8x128xf32>
      %cst_24 = arith.constant dense<0.000000e+00> : vector<128xf32>
      %53 = vector.multi_reduction <add>, %52, %cst_24 [0] : vector<8x128xf32> to vector<128xf32>
      %54 = vector.shape_cast %53 : vector<128xf32> to vector<1x128xf32>
      %cst_25 = arith.constant 8.000000e+00 : f32
      %55 = vector.broadcast %cst_25 : f32 to vector<1x128xf32>
      %56 = arith.divf %54, %55 : vector<1x128xf32>
      %cst_26 = arith.constant 9.99999974E-6 : f32
      %57 = vector.broadcast %cst_26 : f32 to vector<1x128xf32>
      %58 = arith.addf %56, %57 : vector<1x128xf32>
      %59 = math.rsqrt %58 : vector<1x128xf32>
      %60 = arith.mulf %44, %59 : vector<1x128xf32>
      %61 = vector.broadcast %60 : vector<1x128xf32> to vector<8x128xf32>
      %62 = arith.mulf %51, %61 : vector<8x128xf32>
      %63 = vector.broadcast %45 : vector<1x128xf32> to vector<8x128xf32>
      %64 = arith.addf %62, %63 : vector<8x128xf32>
      %cst_27 = arith.constant 0.000000e+00 : f32
      %65 = vector.broadcast %cst_27 : f32 to vector<8x128xf32>
      %66 = arith.maximumf %64, %65 : vector<8x128xf32>
      %c0_28 = arith.constant 0 : index
      %c0_29 = arith.constant 0 : index
      %67 = vector.load %arg12[%c0_28, %c0_29] : memref<8x256xf32, #tpu.memory_space<vmem>>, vector<8x256xf32>
      %68 = tpu.concatenate %66, %67 in 1 : vector<8x128xf32>, vector<8x256xf32> -> vector<8x384xf32>
      %69 = arith.truncf %68 : vector<8x384xf32> to vector<8x384xbf16>
      %c0_30 = arith.constant 0 : index
      %c0_31 = arith.constant 0 : index
      %70 = vector.load %arg8[%c0_30, %c0_31] : memref<384x128xbf16, #tpu.memory_space<vmem>>, vector<384x128xbf16>
      %cst_32 = arith.constant dense<0.000000e+00> : vector<8x128xf32>
      %71 = tpu.matmul %69, %70, %cst_32 {dimension_numbers = #tpu.dot_dimension_numbers<[1], [0], [0], [1], [0, 0, 1, 1], [], []>} : vector<8x384xbf16>, vector<384x128xbf16>, vector<8x128xf32> -> vector<8x128xf32>
      %72 = vector.extract_strided_slice %13 {offsets = [8, 0], sizes = [1, 128], strides = [1, 1]} : vector<9x256xf32> to vector<1x128xf32>
      %73 = vector.broadcast %72 : vector<1x128xf32> to vector<8x128xf32>
      %74 = arith.addf %71, %73 : vector<8x128xf32>
      %cst_33 = arith.constant 0.000000e+00 : f32
      %75 = vector.broadcast %cst_33 : f32 to vector<8x128xf32>
      %76 = arith.maximumf %74, %75 : vector<8x128xf32>
      %77 = vector.extract_strided_slice %76 {offsets = [0, 0], sizes = [8, 61], strides = [1, 1]} : vector<8x128xf32> to vector<8x61xf32>
      %c0_34 = arith.constant 0 : index
      %c0_35 = arith.constant 0 : index
      %78 = vector.load %arg10[%c0_34, %c0_35] : memref<8x61xf32, #tpu.memory_space<vmem>>, vector<8x61xf32>
      tpu.vector_store %arg10[%c0_34, %c0_35], %77 {strides = array<i32>} : memref<8x61xf32, #tpu.memory_space<vmem>>, vector<8x61xf32>,
    } else {
    }
    return
  }
  func.func @transform_0(%arg0: i32) -> (i32, i32) {
    %c0_i32 = arith.constant 0 : i32
    %c0_i32_0 = arith.constant 0 : i32
    %c0_i32_1 = arith.constant 0 : i32
    return %c0_i32, %c0_i32_0 : i32, i32
  }
  func.func @transform_1(%arg0: i32) -> (i32, i32) {
    %c0_i32 = arith.constant 0 : i32
    %c0_i32_0 = arith.constant 0 : i32
    %c0_i32_1 = arith.constant 0 : i32
    return %c0_i32, %c0_i32_0 : i32, i32
  }
  func.func @transform_2(%arg0: i32) -> (i32, i32) {
    %c0_i32 = arith.constant 0 : i32
    %c0_i32_0 = arith.constant 0 : i32
    return %c0_i32, %arg0 : i32, i32
  }
  func.func @transform_3(%arg0: i32) -> (i32, i32) {
    %c0_i32 = arith.constant 0 : i32
    %c0_i32_0 = arith.constant 0 : i32
    %c0_i32_1 = arith.constant 0 : i32
    return %c0_i32, %c0_i32_0 : i32, i32
  }
  func.func @transform_4(%arg0: i32) -> (i32, i32) {
    %c0_i32 = arith.constant 0 : i32
    %c0_i32_0 = arith.constant 0 : i32
    %c0_i32_1 = arith.constant 0 : i32
    return %c0_i32, %c0_i32_0 : i32, i32
  }
  func.func @transform_5(%arg0: i32) -> (i32, i32) {
    %c0_i32 = arith.constant 0 : i32
    %c0_i32_0 = arith.constant 0 : i32
    return %arg0, %c0_i32 : i32, i32
  }
  func.func @transform_6(%arg0: i32) -> (i32, i32) {
    %c0_i32 = arith.constant 0 : i32
    %c0_i32_0 = arith.constant 0 : i32
    %c0_i32_1 = arith.constant 0 : i32
    return %c0_i32, %c0_i32_0 : i32, i32
  }
  func.func @transform_7(%arg0: i32) -> (i32, i32) {
    %c0_i32 = arith.constant 0 : i32
    %c0_i32_0 = arith.constant 0 : i32
    %c0_i32_1 = arith.constant 0 : i32
    return %c0_i32, %c0_i32_0 : i32, i32
  }
  func.func @transform_8(%arg0: i32) -> (i32, i32) {
    %c0_i32 = arith.constant 0 : i32
    %c0_i32_0 = arith.constant 0 : i32
    %c0_i32_1 = arith.constant 0 : i32
    return %c0_i32, %c0_i32_0 : i32, i32
  }
  func.func @transform_9(%arg0: i32) -> (i32, i32) {
    %c0_i32 = arith.constant 0 : i32
    %c0_i32_0 = arith.constant 0 : i32
    %c0_i32_1 = arith.constant 0 : i32
    return %c0_i32, %c0_i32_0 : i32, i32
  }
}

</mosaic_0001>

<llo_original>
// kernel: objmjmodel1_forward.1
$region0: #{objmjmodel1_forward.1}
  #allocation0 [shape = 'u32[]', space=smem, size = 0x4, offset = 0x4, fixed_abs, tag = 'smem constant byte address 0x4 - core index']
  #allocation1 [shape = 'u32[144,128]{1,0:T(1,128)}', space=vmem, size = 0x12000, scoped, tag = 'internal scratch']
  #allocation2 [shape = 'f32[8,256]{1,0:T(8,128)}', space=vmem, size = 0x2000, scoped, tag = 'scratch operand']
  #allocation3 [shape = 'f32[8,256]{1,0:T(8,128)}', space=vmem, size = 0x2000, scoped, tag = 'scratch operand']
  %s0 = inlined_call_operand.vmem [shape: f32[8,1280], index: 0, kind: input, shape index: {}]
  %s1 = inlined_call_operand.vmem [shape: f32[8,384], index: 1, kind: input, shape index: {}]
  %s2 = inlined_call_operand.vmem [shape: f32[8,13824], index: 2, kind: input, shape index: {}]
  %s3 = inlined_call_operand.hbm [shape: bf16[1280,128], index: 3, kind: input, shape index: {}]
  %s4 = inlined_call_operand.hbm [shape: bf16[384,128], index: 4, kind: input, shape index: {}]
  %s5 = inlined_call_operand.hbm [shape: bf16[13824,256], index: 5, kind: input, shape index: {}]
  %s6 = inlined_call_operand.hbm [shape: bf16[256,128], index: 6, kind: input, shape index: {}]
  %s7 = inlined_call_operand.hbm [shape: bf16[384,128], index: 7, kind: input, shape index: {}]
  %s8 = inlined_call_operand.hbm [shape: f32[9,256], index: 8, kind: input, shape index: {}]
  %s9 = inlined_call_operand.hbm [shape: f32[8,61], index: 9, kind: output, shape index: {}]
  %s10 = sld [smem:[#allocation0]]
  $region101: #{objmjmodel1_forward.1} parent=0
    _
  %s12 = ssub.s32 1, %s10
  %s13 = scalar_select 0, %s12, %s10
  $region1: #{objmjmodel1_forward.1} parent=0
    #allocation4 [shape = 'u8[327680]{0}', space=vmem, size = 0x50000, scoped, tag = 'input window, operand 3, single buffered']
    #allocation5 [shape = 's32[2]{0}', space=sflag, size = 0x8, scoped, tag = 'scoped memory for objmjmodel1_forward.1']
    #allocation6 [shape = 's32[2]{0}', space=sflag, size = 0x8, scoped, tag = 'scoped memory for objmjmodel1_forward.1']
    #allocation7 [shape = 'u8[98304]{0}', space=vmem, size = 0x18000, scoped, tag = 'input window, operand 4, single buffered']
    #allocation8 [shape = 's32[1]{0}', space=sflag, size = 0x4, scoped, tag = 'scoped memory for objmjmodel1_forward.1']
    #allocation9 [shape = 'u8[3538944]{0}', space=vmem, size = 0x360000, scoped, tag = 'input window, operand 5']
    #allocation10 [shape = 'u8[65536]{0}', space=vmem, size = 0x10000, scoped, tag = 'input window, operand 6, single buffered']
    #allocation11 [shape = 'u8[98304]{0}', space=vmem, size = 0x18000, scoped, tag = 'input window, operand 7, single buffered']
    #allocation12 [shape = 's32[1]{0}', space=sflag, size = 0x4, scoped, tag = 'scoped memory for objmjmodel1_forward.1']
    #allocation13 [shape = 'u8[16384]{0}', space=vmem, size = 0x4000, scoped, tag = 'input window, operand 8, single buffered']
    #allocation14 [shape = 'u8[4096]{0}', space=vmem, size = 0x1000, scoped, tag = 'output window, operand 0, single buffered']
    %14 = vsyncpa [#allocation5], 0
    %15 = vsyncpa [#allocation8], 0
    %16 = vsyncpa [#allocation12], 0
    %17 = vsyncpa [#allocation6], 0
    loop: start=0, step=1, limit=6
    $region2: #{objmjmodel1_forward.1} parent=1 // loop_pre_header
      _
    $region3: #{objmjmodel1_forward.1} parent=1 // loop_header
      %s19 = sphi 0, %s23
      %p20 = scmp.ge.s32.totalorder %s19, 6
      %s27 = sphi 0, %s27
      %s29 = sphi 0, %s27
      %s30 = sphi 0, %s29
      %s44 = sphi 0, %s30
      %s48 = sphi 0, %s48
      %s50 = sphi 0, %s48
      %s51 = sphi 0, %s50
      %s65 = sphi 0, %s51
      %s71 = sphi 0, %s73
      %s74 = sphi 0, %s71
      %s75 = sphi 0, %s74
      %s91 = sphi 0, %s75
      %s95 = sphi 0, %s95
      %s97 = sphi 0, %s95
      %s98 = sphi 0, %s97
      %s112 = sphi 0, %s98
      %s116 = sphi 0, %s116
      %s118 = sphi 0, %s116
      %s119 = sphi 0, %s118
      %s133 = sphi 0, %s119
      %s139 = sphi 0, %s141
      %s142 = sphi 0, %s139
      %s143 = sphi 0, %s142
      %s159 = sphi 0, %s143
      %s163 = sphi 0, %s163
      %s165 = sphi 0, %s163
      %s166 = sphi 0, %s165
      %s180 = sphi 0, %s166
      %s184 = sphi 0, %s184
      %s186 = sphi 0, %s184
      %s187 = sphi 0, %s186
      %s201 = sphi 0, %s187
      %s205 = sphi 0, %s205
      %s207 = sphi 0, %s205
      %s208 = sphi 0, %s207
      %s222 = sphi 0, %s208
      %s226 = sphi 0, %s226
      %s228 = sphi 0, %s226
      %s229 = sphi 0, %s228
      %s243 = sphi 0, %s229
    $region4: #{objmjmodel1_forward.1} parent=1 // loop_header_branch
      %22 = sbr.rel (%p20) target = $region8
    $region5: #{objmjmodel1_forward.1} parent=1 // loop_body
      %s24 = ssub.s32 %s19, 1
      %s25 = ssub.s32 %s19, 2
      %s26 = sadd.s32 %s19, 1
      %s28 = sadd.s32 %s27, 1
      %p31 = scmp.eq.s32.totalorder %s19, 3
      %p32 = scmp.ne.s32.totalorder %s27, %s29
      %p33 = scmp.eq.s32.totalorder %s19, 0
      %p34 = por %p32, %p33
      %p35 = scmp.ne.s32.totalorder %s27, %s29
      %p36 = scmp.eq.s32.totalorder %s24, 3
      %p37 = por %p35, %p36
      %p38 = scmp.ne.s32.totalorder %s29, %s30
      %p39 = scmp.eq.s32.totalorder %s24, 0
      %p40 = por %p38, %p39
      %p41 = scmp.ne.s32.totalorder %s29, %s30
      %p42 = scmp.eq.s32.totalorder %s25, 3
      %p43 = por %p41, %p42
      %p45 = scmp.ne.s32.totalorder %s30, %s44
      %p46 = scmp.eq.s32.totalorder %s25, 0
      %p47 = por %p45, %p46
      %s49 = sadd.s32 %s48, 1
      %p52 = scmp.eq.s32.totalorder %s19, 3
      %p53 = scmp.ne.s32.totalorder %s48, %s50
      %p54 = scmp.eq.s32.totalorder %s19, 0
      %p55 = por %p53, %p54
      %p56 = scmp.ne.s32.totalorder %s48, %s50
      %p57 = scmp.eq.s32.totalorder %s24, 3
      %p58 = por %p56, %p57
      %p59 = scmp.ne.s32.totalorder %s50, %s51
      %p60 = scmp.eq.s32.totalorder %s24, 0
      %p61 = por %p59, %p60
      %p62 = scmp.ne.s32.totalorder %s50, %s51
      %p63 = scmp.eq.s32.totalorder %s25, 3
      %p64 = por %p62, %p63
      %p66 = scmp.ne.s32.totalorder %s51, %s65
      %p67 = scmp.eq.s32.totalorder %s25, 0
      %p68 = por %p66, %p67
      %s69 = ssub.s32 %s19, %s26
      %p70 = scmp.eq.s32.totalorder %s69, 0
      %s72 = sadd.s32 %s71, 1
      %s73 = scalar_select %p70, %s71, %s72
      %p76 = pneg %p70
      %p77 = scmp.eq.s32.totalorder %s19, 3
      %p78 = por %p76, %p77
      %p79 = scmp.ne.s32.totalorder %s71, %s74
      %p80 = scmp.eq.s32.totalorder %s19, 0
      %p81 = por %p79, %p80
      %p82 = scmp.ne.s32.totalorder %s71, %s74
      %p83 = scmp.eq.s32.totalorder %s24, 3
      %p84 = por %p82, %p83
      %p85 = scmp.ne.s32.totalorder %s74, %s75
      %p86 = scmp.eq.s32.totalorder %s24, 0
      %p87 = por %p85, %p86
      %p88 = scmp.ne.s32.totalorder %s74, %s75
      %p89 = scmp.eq.s32.totalorder %s25, 3
      %p90 = por %p88, %p89
      %p92 = scmp.ne.s32.totalorder %s75, %s91
      %p93 = scmp.eq.s32.totalorder %s25, 0
      %p94 = por %p92, %p93
      %s96 = sadd.s32 %s95, 1
      %p99 = scmp.eq.s32.totalorder %s19, 3
      %p100 = scmp.ne.s32.totalorder %s95, %s97
      %p101 = scmp.eq.s32.totalorder %s19, 0
      %p102 = por %p100, %p101
      %p103 = scmp.ne.s32.totalorder %s95, %s97
      %p104 = scmp.eq.s32.totalorder %s24, 3
      %p105 = por %p103, %p104
      %p106 = scmp.ne.s32.totalorder %s97, %s98
      %p107 = scmp.eq.s32.totalorder %s24, 0
      %p108 = por %p106, %p107
      %p109 = scmp.ne.s32.totalorder %s97, %s98
      %p110 = scmp.eq.s32.totalorder %s25, 3
      %p111 = por %p109, %p110
      %p113 = scmp.ne.s32.totalorder %s98, %s112
      %p114 = scmp.eq.s32.totalorder %s25, 0
      %p115 = por %p113, %p114
      %s117 = sadd.s32 %s116, 1
      %p120 = scmp.eq.s32.totalorder %s19, 3
      %p121 = scmp.ne.s32.totalorder %s116, %s118
      %p122 = scmp.eq.s32.totalorder %s19, 0
      %p123 = por %p121, %p122
      %p124 = scmp.ne.s32.totalorder %s116, %s118
      %p125 = scmp.eq.s32.totalorder %s24, 3
      %p126 = por %p124, %p125
      %p127 = scmp.ne.s32.totalorder %s118, %s119
      %p128 = scmp.eq.s32.totalorder %s24, 0
      %p129 = por %p127, %p128
      %p130 = scmp.ne.s32.totalorder %s118, %s119
      %p131 = scmp.eq.s32.totalorder %s25, 3
      %p132 = por %p130, %p131
      %p134 = scmp.ne.s32.totalorder %s119, %s133
      %p135 = scmp.eq.s32.totalorder %s25, 0
      %p136 = por %p134, %p135
      %s137 = ssub.s32 %s19, %s26
      %p138 = scmp.eq.s32.totalorder %s137, 0
      %s140 = sadd.s32 %s139, 1
      %s141 = scalar_select %p138, %s139, %s140
      %p144 = pneg %p138
      %p145 = scmp.eq.s32.totalorder %s19, 3
      %p146 = por %p144, %p145
      %p147 = scmp.ne.s32.totalorder %s139, %s142
      %p148 = scmp.eq.s32.totalorder %s19, 0
      %p149 = por %p147, %p148
      %p150 = scmp.ne.s32.totalorder %s139, %s142
      %p151 = scmp.eq.s32.totalorder %s24, 3
      %p152 = por %p150, %p151
      %p153 = scmp.ne.s32.totalorder %s142, %s143
      %p154 = scmp.eq.s32.totalorder %s24, 0
      %p155 = por %p153, %p154
      %p156 = scmp.ne.s32.totalorder %s142, %s143
      %p157 = scmp.eq.s32.totalorder %s25, 3
      %p158 = por %p156, %p157
      %p160 = scmp.ne.s32.totalorder %s143, %s159
      %p161 = scmp.eq.s32.totalorder %s25, 0
      %p162 = por %p160, %p161
      %s164 = sadd.s32 %s163, 1
      %p167 = scmp.eq.s32.totalorder %s19, 3
      %p168 = scmp.ne.s32.totalorder %s163, %s165
      %p169 = scmp.eq.s32.totalorder %s19, 0
      %p170 = por %p168, %p169
      %p171 = scmp.ne.s32.totalorder %s163, %s165
      %p172 = scmp.eq.s32.totalorder %s24, 3
      %p173 = por %p171, %p172
      %p174 = scmp.ne.s32.totalorder %s165, %s166
      %p175 = scmp.eq.s32.totalorder %s24, 0
      %p176 = por %p174, %p175
      %p177 = scmp.ne.s32.totalorder %s165, %s166
      %p178 = scmp.eq.s32.totalorder %s25, 3
      %p179 = por %p177, %p178
      %p181 = scmp.ne.s32.totalorder %s166, %s180
      %p182 = scmp.eq.s32.totalorder %s25, 0
      %p183 = por %p181, %p182
      %s185 = sadd.s32 %s184, 1
      %p188 = scmp.eq.s32.totalorder %s19, 3
      %p189 = scmp.ne.s32.totalorder %s184, %s186
      %p190 = scmp.eq.s32.totalorder %s19, 0
      %p191 = por %p189, %p190
      %p192 = scmp.ne.s32.totalorder %s184, %s186
      %p193 = scmp.eq.s32.totalorder %s24, 3
      %p194 = por %p192, %p193
      %p195 = scmp.ne.s32.totalorder %s186, %s187
      %p196 = scmp.eq.s32.totalorder %s24, 0
      %p197 = por %p195, %p196
      %p198 = scmp.ne.s32.totalorder %s186, %s187
      %p199 = scmp.eq.s32.totalorder %s25, 3
      %p200 = por %p198, %p199
      %p202 = scmp.ne.s32.totalorder %s187, %s201
      %p203 = scmp.eq.s32.totalorder %s25, 0
      %p204 = por %p202, %p203
      %s206 = sadd.s32 %s205, 1
      %p209 = scmp.eq.s32.totalorder %s19, 3
      %p210 = scmp.ne.s32.totalorder %s205, %s207
      %p211 = scmp.eq.s32.totalorder %s19, 0
      %p212 = por %p210, %p211
      %p213 = scmp.ne.s32.totalorder %s205, %s207
      %p214 = scmp.eq.s32.totalorder %s24, 3
      %p215 = por %p213, %p214
      %p216 = scmp.ne.s32.totalorder %s207, %s208
      %p217 = scmp.eq.s32.totalorder %s24, 0
      %p218 = por %p216, %p217
      %p219 = scmp.ne.s32.totalorder %s207, %s208
      %p220 = scmp.eq.s32.totalorder %s25, 3
      %p221 = por %p219, %p220
      %p223 = scmp.ne.s32.totalorder %s208, %s222
      %p224 = scmp.eq.s32.totalorder %s25, 0
      %p225 = por %p223, %p224
      %s227 = sadd.s32 %s226, 1
      %p230 = scmp.eq.s32.totalorder %s19, 3
      %p231 = scmp.ne.s32.totalorder %s226, %s228
      %p232 = scmp.eq.s32.totalorder %s19, 0
      %p233 = por %p231, %p232
      %p234 = scmp.ne.s32.totalorder %s226, %s228
      %p235 = scmp.eq.s32.totalorder %s24, 3
      %p236 = por %p234, %p235
      %p237 = scmp.ne.s32.totalorder %s228, %s229
      %p238 = scmp.eq.s32.totalorder %s24, 0
      %p239 = por %p237, %p238
      %p240 = scmp.ne.s32.totalorder %s228, %s229
      %p241 = scmp.eq.s32.totalorder %s25, 3
      %p242 = por %p240, %p241
      %p244 = scmp.ne.s32.totalorder %s229, %s243
      %p245 = scmp.eq.s32.totalorder %s25, 0
      %p246 = por %p244, %p245
      %p247 = scmp.le.s32.totalorder 1, %s19
      %p248 = scmp.lt.s32.totalorder %s19, 5
      %p249 = pnand %p247, %p248
      %p250 = pneg %p249
      // Predicated region
      $region9: #{objmjmodel1_forward.1} parent=5 // pred_check
        _
      $region10: #{objmjmodel1_forward.1} parent=5 // pred_check_branch
        %252 = sbr.rel (%p249) target = $region12
      $region11: #{objmjmodel1_forward.1} parent=5 // pred_region
        %s253 = ssub.s32 %s19, 1
        // Predicated region
        $region13: #{objmjmodel1_forward.1} parent=11 // pred_check
          %p254 = pneg %p40
        $region14: #{objmjmodel1_forward.1} parent=11 // pred_check_branch
          %256 = sbr.rel (%p254) target = $region16
        $region15: #{objmjmodel1_forward.1} parent=11 // pred_region
          _
        $region16: #{objmjmodel1_forward.1} parent=11 // pred_fallthru
          _
        // Predicated region
        $region17: #{objmjmodel1_forward.1} parent=11 // pred_check
          %p257 = pneg %p61
        $region18: #{objmjmodel1_forward.1} parent=11 // pred_check_branch
          %259 = sbr.rel (%p257) target = $region20
        $region19: #{objmjmodel1_forward.1} parent=11 // pred_region
          _
        $region20: #{objmjmodel1_forward.1} parent=11 // pred_fallthru
          _
        // Predicated region
        $region21: #{objmjmodel1_forward.1} parent=11 // pred_check
          %p260 = pneg %p108
        $region22: #{objmjmodel1_forward.1} parent=11 // pred_check_branch
          %262 = sbr.rel (%p260) target = $region24
        $region23: #{objmjmodel1_forward.1} parent=11 // pred_region
          %s264 = ssub.s32 10240, 10240
          %265 = vsyncadd [#allocation5], %s264
          %s266 = sshll.u32 [#allocation4], 4
          %s267 = int_to_ptr.vmem [resolvable:$true] %s266
          %272 = dma.hbm_to_vmem [thread:$0]  %s3, 10240, %s267, [#allocation5], 64, 64, 4
        $region24: #{objmjmodel1_forward.1} parent=11 // pred_fallthru
          _
        // Predicated region
        $region25: #{objmjmodel1_forward.1} parent=11 // pred_check
          %p273 = pneg %p129
        $region26: #{objmjmodel1_forward.1} parent=11 // pred_check_branch
          %275 = sbr.rel (%p273) target = $region28
        $region27: #{objmjmodel1_forward.1} parent=11 // pred_region
          %s277 = ssub.s32 3072, 3072
          %278 = vsyncadd [#allocation8], %s277
          %s279 = sshll.u32 [#allocation7], 4
          %s280 = int_to_ptr.vmem [resolvable:$true] %s279
          %285 = dma.hbm_to_vmem [thread:$0]  %s4, 3072, %s280, [#allocation8], 64, 64, 4
        $region28: #{objmjmodel1_forward.1} parent=11 // pred_fallthru
          _
        // Predicated region
        $region29: #{objmjmodel1_forward.1} parent=11 // pred_check
          %p286 = pneg %p176
        $region30: #{objmjmodel1_forward.1} parent=11 // pred_check_branch
          %288 = sbr.rel (%p286) target = $region32
        $region31: #{objmjmodel1_forward.1} parent=11 // pred_region
          %s290 = ssub.s32 2048, 2048
          %291 = vsyncadd [#allocation8], %s290
          %s292 = sshll.u32 [#allocation10], 4
          %s293 = int_to_ptr.vmem [resolvable:$true] %s292
          %298 = dma.hbm_to_vmem [thread:$0]  %s6, 2048, %s293, [#allocation8], 64, 64, 4
        $region32: #{objmjmodel1_forward.1} parent=11 // pred_fallthru
          _
        // Predicated region
        $region33: #{objmjmodel1_forward.1} parent=11 // pred_check
          %p299 = pneg %p197
        $region34: #{objmjmodel1_forward.1} parent=11 // pred_check_branch
          %301 = sbr.rel (%p299) target = $region36
        $region35: #{objmjmodel1_forward.1} parent=11 // pred_region
          %s303 = ssub.s32 3072, 3072
          %304 = vsyncadd [#allocation12], %s303
          %s305 = sshll.u32 [#allocation11], 4
          %s306 = int_to_ptr.vmem [resolvable:$true] %s305
          %311 = dma.hbm_to_vmem [thread:$0]  %s7, 3072, %s306, [#allocation12], 64, 64, 4
        $region36: #{objmjmodel1_forward.1} parent=11 // pred_fallthru
          _
        // Predicated region
        $region37: #{objmjmodel1_forward.1} parent=11 // pred_check
          %p312 = pneg %p218
        $region38: #{objmjmodel1_forward.1} parent=11 // pred_check_branch
          %314 = sbr.rel (%p312) target = $region40
        $region39: #{objmjmodel1_forward.1} parent=11 // pred_region
          %s316 = ssub.s32 512, 512
          %317 = vsyncadd [#allocation12], %s316
          %s318 = sshll.u32 [#allocation13], 4
          %s319 = int_to_ptr.vmem [resolvable:$true] %s318
          %324 = dma.hbm_to_vmem [thread:$0]  %s8, 512, %s319, [#allocation12], 256, 256, 16
        $region40: #{objmjmodel1_forward.1} parent=11 // pred_fallthru
          _
      $region12: #{objmjmodel1_forward.1} parent=5 // pred_fallthru
        _
      %p325 = scmp.lt.s32.totalorder %s19, 4
      // Predicated region
      $region41: #{objmjmodel1_forward.1} parent=5 // pred_check
        %p326 = pneg %p325
      $region42: #{objmjmodel1_forward.1} parent=5 // pred_check_branch
        %328 = sbr.rel (%p326) target = $region44
      $region43: #{objmjmodel1_forward.1} parent=5 // pred_region
        // Predicated region
        $region45: #{objmjmodel1_forward.1} parent=43 // pred_check
          %p329 = pneg %p81
        $region46: #{objmjmodel1_forward.1} parent=43 // pred_check_branch
          %331 = sbr.rel (%p329) target = $region48
        $region47: #{objmjmodel1_forward.1} parent=43 // pred_region
          %s332 = smul.u32 27, %s19
          %p333 = scmp.lt.s32.totalorder %s332, 107
          %s334 = scalar_select %p333, %s332, 107
          %s335 = smul.addr %s334, 8
          %s336 = scalar_lea.vmem %s2, %s335
          %s337 = smul.u32 27, %s19
        $region48: #{objmjmodel1_forward.1} parent=43 // pred_fallthru
          _
        // Predicated region
        $region49: #{objmjmodel1_forward.1} parent=43 // pred_check
          %p338 = pneg %p149
        $region50: #{objmjmodel1_forward.1} parent=43 // pred_check_branch
          %340 = sbr.rel (%p338) target = $region52
        $region51: #{objmjmodel1_forward.1} parent=43 // pred_region
          %s341 = sand.u32 %s19, 1
          %s342 = scalar_lea.sflag [#allocation5], %s341
          %s343 = sand.u32 %s139, 1
          %s344 = smul.addr %s343, 3456
          %s345 = scalar_lea.vmem [#allocation9], %s344
          %s346 = smul.u32 432, %s19
          %s348 = ssub.s32 55296, 55296
          %349 = vsyncadd %s342, %s348
          %s350 = smul.addr %s346, 2
          %s351 = smul.addr %s350, 64
          %s352 = scalar_lea.hbm %s5, %s351
          %s353 = sshll.u32 %s345, 4
          %s354 = int_to_ptr.vmem [resolvable:$true] %s353
          %359 = dma.hbm_to_vmem [thread:$0]  %s352, 55296, %s354, %s342, 128, 128, 8
        $region52: #{objmjmodel1_forward.1} parent=43 // pred_fallthru
          _
      $region44: #{objmjmodel1_forward.1} parent=5 // pred_fallthru
        _
      %p360 = scmp.le.s32.totalorder 1, %s19
      %p361 = scmp.lt.s32.totalorder %s19, 5
      %p362 = pnand %p360, %p361
      %p363 = pneg %p362
      // Predicated region
      $region53: #{objmjmodel1_forward.1} parent=5 // pred_check
        _
      $region54: #{objmjmodel1_forward.1} parent=5 // pred_check_branch
        %365 = sbr.rel (%p362) target = $region56
      $region55: #{objmjmodel1_forward.1} parent=5 // pred_region
        %s366 = ssub.s32 %s19, 1
        // Predicated region
        $region57: #{objmjmodel1_forward.1} parent=55 // pred_check
          %p367 = pneg %p108
        $region58: #{objmjmodel1_forward.1} parent=55 // pred_check_branch
          %369 = sbr.rel (%p367) target = $region60
        $region59: #{objmjmodel1_forward.1} parent=55 // pred_region
          %370 = dma.done [#allocation5], 10240
        $region60: #{objmjmodel1_forward.1} parent=55 // pred_fallthru
          _
        // Predicated region
        $region61: #{objmjmodel1_forward.1} parent=55 // pred_check
          %p371 = pneg %p129
        $region62: #{objmjmodel1_forward.1} parent=55 // pred_check_branch
          %373 = sbr.rel (%p371) target = $region64
        $region63: #{objmjmodel1_forward.1} parent=55 // pred_region
          %374 = dma.done [#allocation8], 3072
        $region64: #{objmjmodel1_forward.1} parent=55 // pred_fallthru
          _
        %s375 = sand.u32 %s24, 1
        %s376 = scalar_lea.sflag [#allocation5], %s375
        %s377 = sand.u32 %s142, 1
        %s378 = smul.addr %s377, 3456
        %s379 = scalar_lea.vmem [#allocation9], %s378
        // Predicated region
        $region65: #{objmjmodel1_forward.1} parent=55 // pred_check
          %p380 = pneg %p155
        $region66: #{objmjmodel1_forward.1} parent=55 // pred_check_branch
          %382 = sbr.rel (%p380) target = $region68
        $region67: #{objmjmodel1_forward.1} parent=55 // pred_region
          %383 = dma.done %s376, 55296
        $region68: #{objmjmodel1_forward.1} parent=55 // pred_fallthru
          _
        // Predicated region
        $region69: #{objmjmodel1_forward.1} parent=55 // pred_check
          %p384 = pneg %p176
        $region70: #{objmjmodel1_forward.1} parent=55 // pred_check_branch
          %386 = sbr.rel (%p384) target = $region72
        $region71: #{objmjmodel1_forward.1} parent=55 // pred_region
          %387 = dma.done [#allocation8], 2048
        $region72: #{objmjmodel1_forward.1} parent=55 // pred_fallthru
          _
        // Predicated region
        $region73: #{objmjmodel1_forward.1} parent=55 // pred_check
          %p388 = pneg %p197
        $region74: #{objmjmodel1_forward.1} parent=55 // pred_check_branch
          %390 = sbr.rel (%p388) target = $region76
        $region75: #{objmjmodel1_forward.1} parent=55 // pred_region
          %391 = dma.done [#allocation12], 3072
        $region76: #{objmjmodel1_forward.1} parent=55 // pred_fallthru
          _
        // Predicated region
        $region77: #{objmjmodel1_forward.1} parent=55 // pred_check
          %p392 = pneg %p218
        $region78: #{objmjmodel1_forward.1} parent=55 // pred_check_branch
          %394 = sbr.rel (%p392) target = $region80
        $region79: #{objmjmodel1_forward.1} parent=55 // pred_region
          %395 = dma.done [#allocation12], 512
        $region80: #{objmjmodel1_forward.1} parent=55 // pred_fallthru
          _
        %p396 = pneg %p40
        %p397 = pneg %p37
        %p398 = pneg %p61
        %p399 = pneg %p58
        %s400 = smul.u32 27, %s24
        %p401 = scmp.lt.s32.totalorder %s400, 107
        %s402 = scalar_select %p401, %s400, 107
        %s403 = smul.addr %s402, 8
        %s404 = scalar_lea.vmem %s2, %s403
        %p405 = pneg %p87
        %p406 = pneg %p84
        %p407 = pneg %p108
        %p408 = pneg %p105
        %p409 = pneg %p129
        %p410 = pneg %p126
        %s411 = sand.u32 %s24, 1
        %s412 = scalar_lea.sflag [#allocation5], %s411
        %s413 = sand.u32 %s142, 1
        %s414 = smul.addr %s413, 3456
        %s415 = scalar_lea.vmem [#allocation9], %s414
        %p416 = pneg %p155
        %p417 = pneg %p152
        %p418 = pneg %p176
        %p419 = pneg %p173
        %p420 = pneg %p197
        %p421 = pneg %p194
        %p422 = pneg %p218
        %p423 = pneg %p215
        %p424 = pneg %p239
        %p425 = pneg %p236
        %s426 = smul.u32 27, %s24
        %p427 = scmp.lt.s32.totalorder %s426, 107
        %s428 = scalar_select %p427, %s426, 107
        %s429 = smul.addr %s428, 8
        %s430 = scalar_lea.vmem %s2, %s429
        %s431 = smul.u32 27, %s24
        %s432 = smul.u32 432, %s24
        %p434 = scmp.eq.s32.totalorder %s24, 0
        // Predicated region
        $region81: #{objmjmodel1_forward.1} parent=55 // pred_check
          %p435 = pneg %p434
        $region82: #{objmjmodel1_forward.1} parent=55 // pred_check_branch
          %437 = sbr.rel (%p435) target = $region84
        $region83: #{objmjmodel1_forward.1} parent=55 // pred_region
          %438 = vst [vmem:[#allocation2] sm:$0xff] 0.0
          %439 = vst [vmem:[#allocation2 + $0x8] sm:$0xff] 0.0
          %v440 = vld [vmem:[#allocation13] sm:$0xff]
          %v441 = vld [vmem:[%s0] sm:$0xff]
          %v442 = vld [vmem:[%s0 + $0x8] sm:$0xff]
          %v443 = vld [vmem:[%s0 + $0x10] sm:$0xff]
          %v444 = vld [vmem:[%s0 + $0x18] sm:$0xff]
          %v445 = vld [vmem:[%s0 + $0x20] sm:$0xff]
          %v446 = vld [vmem:[%s0 + $0x28] sm:$0xff]
          %v447 = vld [vmem:[%s0 + $0x30] sm:$0xff]
          %v448 = vld [vmem:[%s0 + $0x38] sm:$0xff]
          %v449 = vld [vmem:[%s0 + $0x40] sm:$0xff]
          %v450 = vld [vmem:[%s0 + $0x48] sm:$0xff]
          %v451 = vpack.c.bf16 %v441, %v441
          %v452 = vpack.c.bf16 %v442, %v442
          %v453 = vpack.c.bf16 %v443, %v443
          %v454 = vpack.c.bf16 %v444, %v444
          %v455 = vpack.c.bf16 %v445, %v445
          %v456 = vpack.c.bf16 %v446, %v446
          %v457 = vpack.c.bf16 %v447, %v447
          %v458 = vpack.c.bf16 %v448, %v448
          %v459 = vpack.c.bf16 %v449, %v449
          %v460 = vpack.c.bf16 %v450, %v450
          %v461 = vld [vmem:[#allocation4] sm:$0xf]
          %v462 = vld [vmem:[#allocation4 + $0x4] sm:$0xf]
          %v463 = vld [vmem:[#allocation4 + $0x8] sm:$0xf]
          %v464 = vld [vmem:[#allocation4 + $0xc] sm:$0xf]
          %v465 = vld [vmem:[#allocation4 + $0x10] sm:$0xf]
          %v466 = vld [vmem:[#allocation4 + $0x14] sm:$0xf]
          %v467 = vld [vmem:[#allocation4 + $0x18] sm:$0xf]
          %v468 = vld [vmem:[#allocation4 + $0x1c] sm:$0xf]
          %v469 = vld [vmem:[#allocation4 + $0x20] sm:$0xf]
          %v470 = vld [vmem:[#allocation4 + $0x24] sm:$0xf]
          %v471 = vld [vmem:[#allocation4 + $0x28] sm:$0xf]
          %v472 = vld [vmem:[#allocation4 + $0x2c] sm:$0xf]
          %v473 = vld [vmem:[#allocation4 + $0x30] sm:$0xf]
          %v474 = vld [vmem:[#allocation4 + $0x34] sm:$0xf]
          %v475 = vld [vmem:[#allocation4 + $0x38] sm:$0xf]
          %v476 = vld [vmem:[#allocation4 + $0x3c] sm:$0xf]
          %v477 = vld [vmem:[#allocation4 + $0x40] sm:$0xf]
          %v478 = vld [vmem:[#allocation4 + $0x44] sm:$0xf]
          %v479 = vld [vmem:[#allocation4 + $0x48] sm:$0xf]
          %v480 = vld [vmem:[#allocation4 + $0x4c] sm:$0xf]
          %v481 = vld [vmem:[#allocation4 + $0x50] sm:$0xf]
          %v482 = vld [vmem:[#allocation4 + $0x54] sm:$0xf]
          %v483 = vld [vmem:[#allocation4 + $0x58] sm:$0xf]
          %v484 = vld [vmem:[#allocation4 + $0x5c] sm:$0xf]
          %v485 = vld [vmem:[#allocation4 + $0x60] sm:$0xf]
          %v486 = vld [vmem:[#allocation4 + $0x64] sm:$0xf]
          %v487 = vld [vmem:[#allocation4 + $0x68] sm:$0xf]
          %v488 = vld [vmem:[#allocation4 + $0x6c] sm:$0xf]
          %v489 = vld [vmem:[#allocation4 + $0x70] sm:$0xf]
          %v490 = vld [vmem:[#allocation4 + $0x74] sm:$0xf]
          %v491 = vld [vmem:[#allocation4 + $0x78] sm:$0xf]
          %v492 = vld [vmem:[#allocation4 + $0x7c] sm:$0xf]
          %v493 = vld [vmem:[#allocation4 + $0x80] sm:$0xf]
          %v494 = vld [vmem:[#allocation4 + $0x84] sm:$0xf]
          %v495 = vld [vmem:[#allocation4 + $0x88] sm:$0xf]
          %v496 = vld [vmem:[#allocation4 + $0x8c] sm:$0xf]
          %v497 = vld [vmem:[#allocation4 + $0x90] sm:$0xf]
          %v498 = vld [vmem:[#allocation4 + $0x94] sm:$0xf]
          %v499 = vld [vmem:[#allocation4 + $0x98] sm:$0xf]
          %v500 = vld [vmem:[#allocation4 + $0x9c] sm:$0xf]
          %v501 = vld [vmem:[#allocation4 + $0xa0] sm:$0xf]
          %v502 = vld [vmem:[#allocation4 + $0xa4] sm:$0xf]
          %v503 = vld [vmem:[#allocation4 + $0xa8] sm:$0xf]
          %v504 = vld [vmem:[#allocation4 + $0xac] sm:$0xf]
          %v505 = vld [vmem:[#allocation4 + $0xb0] sm:$0xf]
          %v506 = vld [vmem:[#allocation4 + $0xb4] sm:$0xf]
          %v507 = vld [vmem:[#allocation4 + $0xb8] sm:$0xf]
          %v508 = vld [vmem:[#allocation4 + $0xbc] sm:$0xf]
          %v509 = vld [vmem:[#allocation4 + $0xc0] sm:$0xf]
          %v510 = vld [vmem:[#allocation4 + $0xc4] sm:$0xf]
          %v511 = vld [vmem:[#allocation4 + $0xc8] sm:$0xf]
          %v512 = vld [vmem:[#allocation4 + $0xcc] sm:$0xf]
          %v513 = vld [vmem:[#allocation4 + $0xd0] sm:$0xf]
          %v514 = vld [vmem:[#allocation4 + $0xd4] sm:$0xf]
          %v515 = vld [vmem:[#allocation4 + $0xd8] sm:$0xf]
          %v516 = vld [vmem:[#allocation4 + $0xdc] sm:$0xf]
          %v517 = vld [vmem:[#allocation4 + $0xe0] sm:$0xf]
          %v518 = vld [vmem:[#allocation4 + $0xe4] sm:$0xf]
          %v519 = vld [vmem:[#allocation4 + $0xe8] sm:$0xf]
          %v520 = vld [vmem:[#allocation4 + $0xec] sm:$0xf]
          %v521 = vld [vmem:[#allocation4 + $0xf0] sm:$0xf]
          %v522 = vld [vmem:[#allocation4 + $0xf4] sm:$0xf]
          %v523 = vld [vmem:[#allocation4 + $0xf8] sm:$0xf]
          %v524 = vld [vmem:[#allocation4 + $0xfc] sm:$0xf]
          %v525 = vld [vmem:[#allocation4 + $0x100] sm:$0xf]
          %v526 = vld [vmem:[#allocation4 + $0x104] sm:$0xf]
          %v527 = vld [vmem:[#allocation4 + $0x108] sm:$0xf]
          %v528 = vld [vmem:[#allocation4 + $0x10c] sm:$0xf]
          %v529 = vld [vmem:[#allocation4 + $0x110] sm:$0xf]
          %v530 = vld [vmem:[#allocation4 + $0x114] sm:$0xf]
          %v531 = vld [vmem:[#allocation4 + $0x118] sm:$0xf]
          %v532 = vld [vmem:[#allocation4 + $0x11c] sm:$0xf]
          %v533 = vld [vmem:[#allocation4 + $0x120] sm:$0xf]
          %v534 = vld [vmem:[#allocation4 + $0x124] sm:$0xf]
          %v535 = vld [vmem:[#allocation4 + $0x128] sm:$0xf]
          %v536 = vld [vmem:[#allocation4 + $0x12c] sm:$0xf]
          %v537 = vld [vmem:[#allocation4 + $0x130] sm:$0xf]
          %v538 = vld [vmem:[#allocation4 + $0x134] sm:$0xf]
          %v539 = vld [vmem:[#allocation4 + $0x138] sm:$0xf]
          %v540 = vld [vmem:[#allocation4 + $0x13c] sm:$0xf]
          %v541 = vld [vmem:[#allocation4 + $0x140] sm:$0xf]
          %v542 = vld [vmem:[#allocation4 + $0x144] sm:$0xf]
          %v543 = vld [vmem:[#allocation4 + $0x148] sm:$0xf]
          %v544 = vld [vmem:[#allocation4 + $0x14c] sm:$0xf]
          %v545 = vld [vmem:[#allocation4 + $0x150] sm:$0xf]
          %v546 = vld [vmem:[#allocation4 + $0x154] sm:$0xf]
          %v547 = vld [vmem:[#allocation4 + $0x158] sm:$0xf]
          %v548 = vld [vmem:[#allocation4 + $0x15c] sm:$0xf]
          %v549 = vld [vmem:[#allocation4 + $0x160] sm:$0xf]
          %v550 = vld [vmem:[#allocation4 + $0x164] sm:$0xf]
          %v551 = vld [vmem:[#allocation4 + $0x168] sm:$0xf]
          %v552 = vld [vmem:[#allocation4 + $0x16c] sm:$0xf]
          %v553 = vld [vmem:[#allocation4 + $0x170] sm:$0xf]
          %v554 = vld [vmem:[#allocation4 + $0x174] sm:$0xf]
          %v555 = vld [vmem:[#allocation4 + $0x178] sm:$0xf]
          %v556 = vld [vmem:[#allocation4 + $0x17c] sm:$0xf]
          %v557 = vld [vmem:[#allocation4 + $0x180] sm:$0xf]
          %v558 = vld [vmem:[#allocation4 + $0x184] sm:$0xf]
          %v559 = vld [vmem:[#allocation4 + $0x188] sm:$0xf]
          %v560 = vld [vmem:[#allocation4 + $0x18c] sm:$0xf]
          %v561 = vld [vmem:[#allocation4 + $0x190] sm:$0xf]
          %v562 = vld [vmem:[#allocation4 + $0x194] sm:$0xf]
          %v563 = vld [vmem:[#allocation4 + $0x198] sm:$0xf]
          %v564 = vld [vmem:[#allocation4 + $0x19c] sm:$0xf]
          %v565 = vld [vmem:[#allocation4 + $0x1a0] sm:$0xf]
          %v566 = vld [vmem:[#allocation4 + $0x1a4] sm:$0xf]
          %v567 = vld [vmem:[#allocation4 + $0x1a8] sm:$0xf]
          %v568 = vld [vmem:[#allocation4 + $0x1ac] sm:$0xf]
          %v569 = vld [vmem:[#allocation4 + $0x1b0] sm:$0xf]
          %v570 = vld [vmem:[#allocation4 + $0x1b4] sm:$0xf]
          %v571 = vld [vmem:[#allocation4 + $0x1b8] sm:$0xf]
          %v572 = vld [vmem:[#allocation4 + $0x1bc] sm:$0xf]
          %v573 = vld [vmem:[#allocation4 + $0x1c0] sm:$0xf]
          %v574 = vld [vmem:[#allocation4 + $0x1c4] sm:$0xf]
          %v575 = vld [vmem:[#allocation4 + $0x1c8] sm:$0xf]
          %v576 = vld [vmem:[#allocation4 + $0x1cc] sm:$0xf]
          %v577 = vld [vmem:[#allocation4 + $0x1d0] sm:$0xf]
          %v578 = vld [vmem:[#allocation4 + $0x1d4] sm:$0xf]
          %v579 = vld [vmem:[#allocation4 + $0x1d8] sm:$0xf]
          %v580 = vld [vmem:[#allocation4 + $0x1dc] sm:$0xf]
          %v581 = vld [vmem:[#allocation4 + $0x1e0] sm:$0xf]
          %v582 = vld [vmem:[#allocation4 + $0x1e4] sm:$0xf]
          %v583 = vld [vmem:[#allocation4 + $0x1e8] sm:$0xf]
          %v584 = vld [vmem:[#allocation4 + $0x1ec] sm:$0xf]
          %v585 = vld [vmem:[#allocation4 + $0x1f0] sm:$0xf]
          %v586 = vld [vmem:[#allocation4 + $0x1f4] sm:$0xf]
          %v587 = vld [vmem:[#allocation4 + $0x1f8] sm:$0xf]
          %v588 = vld [vmem:[#allocation4 + $0x1fc] sm:$0xf]
          %v589 = vld [vmem:[#allocation4 + $0x200] sm:$0xf]
          %v590 = vld [vmem:[#allocation4 + $0x204] sm:$0xf]
          %v591 = vld [vmem:[#allocation4 + $0x208] sm:$0xf]
          %v592 = vld [vmem:[#allocation4 + $0x20c] sm:$0xf]
          %v593 = vld [vmem:[#allocation4 + $0x210] sm:$0xf]
          %v594 = vld [vmem:[#allocation4 + $0x214] sm:$0xf]
          %v595 = vld [vmem:[#allocation4 + $0x218] sm:$0xf]
          %v596 = vld [vmem:[#allocation4 + $0x21c] sm:$0xf]
          %v597 = vld [vmem:[#allocation4 + $0x220] sm:$0xf]
          %v598 = vld [vmem:[#allocation4 + $0x224] sm:$0xf]
          %v599 = vld [vmem:[#allocation4 + $0x228] sm:$0xf]
          %v600 = vld [vmem:[#allocation4 + $0x22c] sm:$0xf]
          %v601 = vld [vmem:[#allocation4 + $0x230] sm:$0xf]
          %v602 = vld [vmem:[#allocation4 + $0x234] sm:$0xf]
          %v603 = vld [vmem:[#allocation4 + $0x238] sm:$0xf]
          %v604 = vld [vmem:[#allocation4 + $0x23c] sm:$0xf]
          %v605 = vld [vmem:[#allocation4 + $0x240] sm:$0xf]
          %v606 = vld [vmem:[#allocation4 + $0x244] sm:$0xf]
          %v607 = vld [vmem:[#allocation4 + $0x248] sm:$0xf]
          %v608 = vld [vmem:[#allocation4 + $0x24c] sm:$0xf]
          %v609 = vld [vmem:[#allocation4 + $0x250] sm:$0xf]
          %v610 = vld [vmem:[#allocation4 + $0x254] sm:$0xf]
          %v611 = vld [vmem:[#allocation4 + $0x258] sm:$0xf]
          %v612 = vld [vmem:[#allocation4 + $0x25c] sm:$0xf]
          %v613 = vld [vmem:[#allocation4 + $0x260] sm:$0xf]
          %v614 = vld [vmem:[#allocation4 + $0x264] sm:$0xf]
          %v615 = vld [vmem:[#allocation4 + $0x268] sm:$0xf]
          %v616 = vld [vmem:[#allocation4 + $0x26c] sm:$0xf]
          %v617 = vld [vmem:[#allocation4 + $0x270] sm:$0xf]
          %v618 = vld [vmem:[#allocation4 + $0x274] sm:$0xf]
          %v619 = vld [vmem:[#allocation4 + $0x278] sm:$0xf]
          %v620 = vld [vmem:[#allocation4 + $0x27c] sm:$0xf]
          %v781 = vunpack.c.l.b16 %v461
          %v782 = vunpack.c.l.b16 %v462
          %v783 = vunpack.c.l.b16 %v463
          %v784 = vunpack.c.l.b16 %v464
          %v785 = vunpack.c.l.b16 %v465
          %v786 = vunpack.c.l.b16 %v466
          %v787 = vunpack.c.l.b16 %v467
          %v788 = vunpack.c.l.b16 %v468
          %v789 = vunpack.c.l.b16 %v469
          %v790 = vunpack.c.l.b16 %v470
          %v791 = vunpack.c.l.b16 %v471
          %v792 = vunpack.c.l.b16 %v472
          %v793 = vunpack.c.l.b16 %v473
          %v794 = vunpack.c.l.b16 %v474
          %v795 = vunpack.c.l.b16 %v475
          %v796 = vunpack.c.l.b16 %v476
          %v797 = vunpack.c.l.b16 %v477
          %v798 = vunpack.c.l.b16 %v478
          %v799 = vunpack.c.l.b16 %v479
          %v800 = vunpack.c.l.b16 %v480
          %v801 = vunpack.c.l.b16 %v481
          %v802 = vunpack.c.l.b16 %v482
          %v803 = vunpack.c.l.b16 %v483
          %v804 = vunpack.c.l.b16 %v484
          %v805 = vunpack.c.l.b16 %v485
          %v806 = vunpack.c.l.b16 %v486
          %v807 = vunpack.c.l.b16 %v487
          %v808 = vunpack.c.l.b16 %v488
          %v809 = vunpack.c.l.b16 %v489
          %v810 = vunpack.c.l.b16 %v490
          %v811 = vunpack.c.l.b16 %v491
          %v812 = vunpack.c.l.b16 %v492
          %v813 = vunpack.c.l.b16 %v493
          %v814 = vunpack.c.l.b16 %v494
          %v815 = vunpack.c.l.b16 %v495
          %v816 = vunpack.c.l.b16 %v496
          %v817 = vunpack.c.l.b16 %v497
          %v818 = vunpack.c.l.b16 %v498
          %v819 = vunpack.c.l.b16 %v499
          %v820 = vunpack.c.l.b16 %v500
          %v821 = vunpack.c.l.b16 %v501
          %v822 = vunpack.c.l.b16 %v502
          %v823 = vunpack.c.l.b16 %v503
          %v824 = vunpack.c.l.b16 %v504
          %v825 = vunpack.c.l.b16 %v505
          %v826 = vunpack.c.l.b16 %v506
          %v827 = vunpack.c.l.b16 %v507
          %v828 = vunpack.c.l.b16 %v508
          %v829 = vunpack.c.l.b16 %v509
          %v830 = vunpack.c.l.b16 %v510
          %v831 = vunpack.c.l.b16 %v511
          %v832 = vunpack.c.l.b16 %v512
          %v833 = vunpack.c.l.b16 %v513
          %v834 = vunpack.c.l.b16 %v514
          %v835 = vunpack.c.l.b16 %v515
          %v836 = vunpack.c.l.b16 %v516
          %v837 = vunpack.c.l.b16 %v517
          %v838 = vunpack.c.l.b16 %v518
          %v839 = vunpack.c.l.b16 %v519
          %v840 = vunpack.c.l.b16 %v520
          %v841 = vunpack.c.l.b16 %v521
          %v842 = vunpack.c.l.b16 %v522
          %v843 = vunpack.c.l.b16 %v523
          %v844 = vunpack.c.l.b16 %v524
          %v845 = vunpack.c.l.b16 %v525
          %v846 = vunpack.c.l.b16 %v526
          %v847 = vunpack.c.l.b16 %v527
          %v848 = vunpack.c.l.b16 %v528
          %v849 = vunpack.c.l.b16 %v529
          %v850 = vunpack.c.l.b16 %v530
          %v851 = vunpack.c.l.b16 %v531
          %v852 = vunpack.c.l.b16 %v532
          %v853 = vunpack.c.l.b16 %v533
          %v854 = vunpack.c.l.b16 %v534
          %v855 = vunpack.c.l.b16 %v535
          %v856 = vunpack.c.l.b16 %v536
          %v857 = vunpack.c.l.b16 %v537
          %v858 = vunpack.c.l.b16 %v538
          %v859 = vunpack.c.l.b16 %v539
          %v860 = vunpack.c.l.b16 %v540
          %v861 = vunpack.c.l.b16 %v541
          %v862 = vunpack.c.l.b16 %v542
          %v863 = vunpack.c.l.b16 %v543
          %v864 = vunpack.c.l.b16 %v544
          %v865 = vunpack.c.l.b16 %v545
          %v866 = vunpack.c.l.b16 %v546
          %v867 = vunpack.c.l.b16 %v547
          %v868 = vunpack.c.l.b16 %v548
          %v869 = vunpack.c.l.b16 %v549
          %v870 = vunpack.c.l.b16 %v550
          %v871 = vunpack.c.l.b16 %v551
          %v872 = vunpack.c.l.b16 %v552
          %v873 = vunpack.c.l.b16 %v553
          %v874 = vunpack.c.l.b16 %v554
          %v875 = vunpack.c.l.b16 %v555
          %v876 = vunpack.c.l.b16 %v556
          %v877 = vunpack.c.l.b16 %v557
          %v878 = vunpack.c.l.b16 %v558
          %v879 = vunpack.c.l.b16 %v559
          %v880 = vunpack.c.l.b16 %v560
          %v881 = vunpack.c.l.b16 %v561
          %v882 = vunpack.c.l.b16 %v562
          %v883 = vunpack.c.l.b16 %v563
          %v884 = vunpack.c.l.b16 %v564
          %v885 = vunpack.c.l.b16 %v565
          %v886 = vunpack.c.l.b16 %v566
          %v887 = vunpack.c.l.b16 %v567
          %v888 = vunpack.c.l.b16 %v568
          %v889 = vunpack.c.l.b16 %v569
          %v890 = vunpack.c.l.b16 %v570
          %v891 = vunpack.c.l.b16 %v571
          %v892 = vunpack.c.l.b16 %v572
          %v893 = vunpack.c.l.b16 %v573
          %v894 = vunpack.c.l.b16 %v574
          %v895 = vunpack.c.l.b16 %v575
          %v896 = vunpack.c.l.b16 %v576
          %v897 = vunpack.c.l.b16 %v577
          %v898 = vunpack.c.l.b16 %v578
          %v899 = vunpack.c.l.b16 %v579
          %v900 = vunpack.c.l.b16 %v580
          %v901 = vunpack.c.l.b16 %v581
          %v902 = vunpack.c.l.b16 %v582
          %v903 = vunpack.c.l.b16 %v583
          %v904 = vunpack.c.l.b16 %v584
          %v905 = vunpack.c.l.b16 %v585
          %v906 = vunpack.c.l.b16 %v586
          %v907 = vunpack.c.l.b16 %v587
          %v908 = vunpack.c.l.b16 %v588
          %v909 = vunpack.c.l.b16 %v589
          %v910 = vunpack.c.l.b16 %v590
          %v911 = vunpack.c.l.b16 %v591
          %v912 = vunpack.c.l.b16 %v592
          %v913 = vunpack.c.l.b16 %v593
          %v914 = vunpack.c.l.b16 %v594
          %v915 = vunpack.c.l.b16 %v595
          %v916 = vunpack.c.l.b16 %v596
          %v917 = vunpack.c.l.b16 %v597
          %v918 = vunpack.c.l.b16 %v598
          %v919 = vunpack.c.l.b16 %v599
          %v920 = vunpack.c.l.b16 %v600
          %v921 = vunpack.c.l.b16 %v601
          %v922 = vunpack.c.l.b16 %v602
          %v923 = vunpack.c.l.b16 %v603
          %v924 = vunpack.c.l.b16 %v604
          %v925 = vunpack.c.l.b16 %v605
          %v926 = vunpack.c.l.b16 %v606
          %v927 = vunpack.c.l.b16 %v607
          %v928 = vunpack.c.l.b16 %v608
          %v929 = vunpack.c.l.b16 %v609
          %v930 = vunpack.c.l.b16 %v610
          %v931 = vunpack.c.l.b16 %v611
          %v932 = vunpack.c.l.b16 %v612
          %v933 = vunpack.c.l.b16 %v613
          %v934 = vunpack.c.l.b16 %v614
          %v935 = vunpack.c.l.b16 %v615
          %v936 = vunpack.c.l.b16 %v616
          %v937 = vunpack.c.l.b16 %v617
          %v938 = vunpack.c.l.b16 %v618
          %v939 = vunpack.c.l.b16 %v619
          %v940 = vunpack.c.l.b16 %v620
          %v941 = vpack.c.b16 %v782, %v781
          %v942 = vpack.c.b16 %v784, %v783
          %v943 = vpack.c.b16 %v786, %v785
          %v944 = vpack.c.b16 %v788, %v787
          %v945 = vpack.c.b16 %v790, %v789
          %v946 = vpack.c.b16 %v792, %v791
          %v947 = vpack.c.b16 %v794, %v793
          %v948 = vpack.c.b16 %v796, %v795
          %v949 = vpack.c.b16 %v798, %v797
          %v950 = vpack.c.b16 %v800, %v799
          %v951 = vpack.c.b16 %v802, %v801
          %v952 = vpack.c.b16 %v804, %v803
          %v953 = vpack.c.b16 %v806, %v805
          %v954 = vpack.c.b16 %v808, %v807
          %v955 = vpack.c.b16 %v810, %v809
          %v956 = vpack.c.b16 %v812, %v811
          %v957 = vpack.c.b16 %v814, %v813
          %v958 = vpack.c.b16 %v816, %v815
          %v959 = vpack.c.b16 %v818, %v817
          %v960 = vpack.c.b16 %v820, %v819
          %v961 = vpack.c.b16 %v822, %v821
          %v962 = vpack.c.b16 %v824, %v823
          %v963 = vpack.c.b16 %v826, %v825
          %v964 = vpack.c.b16 %v828, %v827
          %v965 = vpack.c.b16 %v830, %v829
          %v966 = vpack.c.b16 %v832, %v831
          %v967 = vpack.c.b16 %v834, %v833
          %v968 = vpack.c.b16 %v836, %v835
          %v969 = vpack.c.b16 %v838, %v837
          %v970 = vpack.c.b16 %v840, %v839
          %v971 = vpack.c.b16 %v842, %v841
          %v972 = vpack.c.b16 %v844, %v843
          %v973 = vpack.c.b16 %v846, %v845
          %v974 = vpack.c.b16 %v848, %v847
          %v975 = vpack.c.b16 %v850, %v849
          %v976 = vpack.c.b16 %v852, %v851
          %v977 = vpack.c.b16 %v854, %v853
          %v978 = vpack.c.b16 %v856, %v855
          %v979 = vpack.c.b16 %v858, %v857
          %v980 = vpack.c.b16 %v860, %v859
          %v981 = vpack.c.b16 %v862, %v861
          %v982 = vpack.c.b16 %v864, %v863
          %v983 = vpack.c.b16 %v866, %v865
          %v984 = vpack.c.b16 %v868, %v867
          %v985 = vpack.c.b16 %v870, %v869
          %v986 = vpack.c.b16 %v872, %v871
          %v987 = vpack.c.b16 %v874, %v873
          %v988 = vpack.c.b16 %v876, %v875
          %v989 = vpack.c.b16 %v878, %v877
          %v990 = vpack.c.b16 %v880, %v879
          %v991 = vpack.c.b16 %v882, %v881
          %v992 = vpack.c.b16 %v884, %v883
          %v993 = vpack.c.b16 %v886, %v885
          %v994 = vpack.c.b16 %v888, %v887
          %v995 = vpack.c.b16 %v890, %v889
          %v996 = vpack.c.b16 %v892, %v891
          %v997 = vpack.c.b16 %v894, %v893
          %v998 = vpack.c.b16 %v896, %v895
          %v999 = vpack.c.b16 %v898, %v897
          %v1000 = vpack.c.b16 %v900, %v899
          %v1001 = vpack.c.b16 %v902, %v901
          %v1002 = vpack.c.b16 %v904, %v903
          %v1003 = vpack.c.b16 %v906, %v905
          %v1004 = vpack.c.b16 %v908, %v907
          %v1005 = vpack.c.b16 %v910, %v909
          %v1006 = vpack.c.b16 %v912, %v911
          %v1007 = vpack.c.b16 %v914, %v913
          %v1008 = vpack.c.b16 %v916, %v915
          %v1009 = vpack.c.b16 %v918, %v917
          %v1010 = vpack.c.b16 %v920, %v919
          %v1011 = vpack.c.b16 %v922, %v921
          %v1012 = vpack.c.b16 %v924, %v923
          %v1013 = vpack.c.b16 %v926, %v925
          %v1014 = vpack.c.b16 %v928, %v927
          %v1015 = vpack.c.b16 %v930, %v929
          %v1016 = vpack.c.b16 %v932, %v931
          %v1017 = vpack.c.b16 %v934, %v933
          %v1018 = vpack.c.b16 %v936, %v935
          %v1019 = vpack.c.b16 %v938, %v937
          %v1020 = vpack.c.b16 %v940, %v939
          %1101 = vmatprep.subr.bf16.mxu0 0
          %1102 = vmatpush1.bf16.msra.mxu0 %v941
          %1103 = vmatprep.subr.bf16.mxu0 0
          %1104 = vmatpush1.bf16.msra.mxu0 %v942
          %1105 = vmatprep.subr.bf16.mxu0 0
          %1106 = vmatpush1.bf16.msra.mxu0 %v943
          %1107 = vmatprep.subr.bf16.mxu0 0
          %1108 = vmatpush1.bf16.msra.mxu0 %v944
          %1109 = vmatprep.subr.bf16.mxu0 0
          %1110 = vmatpush1.bf16.msra.mxu0 %v945
          %1111 = vmatprep.subr.bf16.mxu0 0
          %1112 = vmatpush1.bf16.msra.mxu0 %v946
          %1113 = vmatprep.subr.bf16.mxu0 0
          %1114 = vmatpush1.bf16.msra.mxu0 %v947
          %1115 = vmatprep.subr.bf16.mxu0 0
          %1116 = vmatpush1.bf16.msra.mxu0 %v948
          %1117 = vmatprep.subr.bf16.mxu0 0
          %1118 = vmatpush1.bf16.msra.mxu0 %v949
          %1119 = vmatprep.subr.bf16.mxu0 0
          %1120 = vmatpush1.bf16.msra.mxu0 %v950
          %1121 = vmatprep.subr.bf16.mxu0 0
          %1122 = vmatpush1.bf16.msra.mxu0 %v951
          %1123 = vmatprep.subr.bf16.mxu0 0
          %1124 = vmatpush1.bf16.msra.mxu0 %v952
          %1125 = vmatprep.subr.bf16.mxu0 0
          %1126 = vmatpush1.bf16.msra.mxu0 %v953
          %1127 = vmatprep.subr.bf16.mxu0 0
          %1128 = vmatpush1.bf16.msra.mxu0 %v954
          %1129 = vmatprep.subr.bf16.mxu0 0
          %1130 = vmatpush1.bf16.msra.mxu0 %v955
          %1131 = vmatprep.subr.bf16.mxu0 0
          %1132 = vmatpush1.bf16.msra.mxu0 %v956
          %1133 = vmatprep.mubr.bf16.mxu0 %v452
          %1134 = vmatmul.mubr.bf16.gmra.mrb[0].mxu0 %v451
          %v1135 = vpop.f32.mrb[0].mxu0
          %v1136 = vadd.f32 0.0, %v1135
          %v1137 = vpop.f32.mrb[0].mxu0
          %v1138 = vpop.f32.mrb[0].mxu0
          %v1139 = vpop.f32.mrb[0].mxu0
          %1140 = vdwg.mxu0
          %1141 = vmatprep.subr.bf16.mxu0 0
          %1142 = vmatpush1.bf16.msra.mxu0 %v957
          %1143 = vmatprep.subr.bf16.mxu0 0
          %1144 = vmatpush1.bf16.msra.mxu0 %v958
          %1145 = vmatprep.subr.bf16.mxu0 0
          %1146 = vmatpush1.bf16.msra.mxu0 %v959
          %1147 = vmatprep.subr.bf16.mxu0 0
          %1148 = vmatpush1.bf16.msra.mxu0 %v960
          %1149 = vmatprep.subr.bf16.mxu0 0
          %1150 = vmatpush1.bf16.msra.mxu0 %v961
          %1151 = vmatprep.subr.bf16.mxu0 0
          %1152 = vmatpush1.bf16.msra.mxu0 %v962
          %1153 = vmatprep.subr.bf16.mxu0 0
          %1154 = vmatpush1.bf16.msra.mxu0 %v963
          %1155 = vmatprep.subr.bf16.mxu0 0
          %1156 = vmatpush1.bf16.msra.mxu0 %v964
          %1157 = vmatprep.subr.bf16.mxu0 0
          %1158 = vmatpush1.bf16.msra.mxu0 %v965
          %1159 = vmatprep.subr.bf16.mxu0 0
          %1160 = vmatpush1.bf16.msra.mxu0 %v966
          %1161 = vmatprep.subr.bf16.mxu0 0
          %1162 = vmatpush1.bf16.msra.mxu0 %v967
          %1163 = vmatprep.subr.bf16.mxu0 0
          %1164 = vmatpush1.bf16.msra.mxu0 %v968
          %1165 = vmatprep.subr.bf16.mxu0 0
          %1166 = vmatpush1.bf16.msra.mxu0 %v969
          %1167 = vmatprep.subr.bf16.mxu0 0
          %1168 = vmatpush1.bf16.msra.mxu0 %v970
          %1169 = vmatprep.subr.bf16.mxu0 0
          %1170 = vmatpush1.bf16.msra.mxu0 %v971
          %1171 = vmatprep.subr.bf16.mxu0 0
          %1172 = vmatpush1.bf16.msra.mxu0 %v972
          %1173 = vmatprep.mubr.bf16.mxu0 %v454
          %1174 = vmatmul.mubr.bf16.gmra.mrb[0].mxu0 %v453
          %v1175 = vpop.f32.mrb[0].mxu0
          %v1176 = vadd.f32 %v1136, %v1175
          %v1177 = vpop.f32.mrb[0].mxu0
          %v1178 = vpop.f32.mrb[0].mxu0
          %v1179 = vpop.f32.mrb[0].mxu0
          %1180 = vdwg.mxu0
          %1181 = vmatprep.subr.bf16.mxu0 0
          %1182 = vmatpush1.bf16.msra.mxu0 %v973
          %1183 = vmatprep.subr.bf16.mxu0 0
          %1184 = vmatpush1.bf16.msra.mxu0 %v974
          %1185 = vmatprep.subr.bf16.mxu0 0
          %1186 = vmatpush1.bf16.msra.mxu0 %v975
          %1187 = vmatprep.subr.bf16.mxu0 0
          %1188 = vmatpush1.bf16.msra.mxu0 %v976
          %1189 = vmatprep.subr.bf16.mxu0 0
          %1190 = vmatpush1.bf16.msra.mxu0 %v977
          %1191 = vmatprep.subr.bf16.mxu0 0
          %1192 = vmatpush1.bf16.msra.mxu0 %v978
          %1193 = vmatprep.subr.bf16.mxu0 0
          %1194 = vmatpush1.bf16.msra.mxu0 %v979
          %1195 = vmatprep.subr.bf16.mxu0 0
          %1196 = vmatpush1.bf16.msra.mxu0 %v980
          %1197 = vmatprep.subr.bf16.mxu0 0
          %1198 = vmatpush1.bf16.msra.mxu0 %v981
          %1199 = vmatprep.subr.bf16.mxu0 0
          %1200 = vmatpush1.bf16.msra.mxu0 %v982
          %1201 = vmatprep.subr.bf16.mxu0 0
          %1202 = vmatpush1.bf16.msra.mxu0 %v983
          %1203 = vmatprep.subr.bf16.mxu0 0
          %1204 = vmatpush1.bf16.msra.mxu0 %v984
          %1205 = vmatprep.subr.bf16.mxu0 0
          %1206 = vmatpush1.bf16.msra.mxu0 %v985
          %1207 = vmatprep.subr.bf16.mxu0 0
          %1208 = vmatpush1.bf16.msra.mxu0 %v986
          %1209 = vmatprep.subr.bf16.mxu0 0
          %1210 = vmatpush1.bf16.msra.mxu0 %v987
          %1211 = vmatprep.subr.bf16.mxu0 0
          %1212 = vmatpush1.bf16.msra.mxu0 %v988
          %1213 = vmatprep.mubr.bf16.mxu0 %v456
          %1214 = vmatmul.mubr.bf16.gmra.mrb[0].mxu0 %v455
          %v1215 = vpop.f32.mrb[0].mxu0
          %v1216 = vadd.f32 %v1176, %v1215
          %v1217 = vpop.f32.mrb[0].mxu0
          %v1218 = vpop.f32.mrb[0].mxu0
          %v1219 = vpop.f32.mrb[0].mxu0
          %1220 = vdwg.mxu0
          %1221 = vmatprep.subr.bf16.mxu0 0
          %1222 = vmatpush1.bf16.msra.mxu0 %v989
          %1223 = vmatprep.subr.bf16.mxu0 0
          %1224 = vmatpush1.bf16.msra.mxu0 %v990
          %1225 = vmatprep.subr.bf16.mxu0 0
          %1226 = vmatpush1.bf16.msra.mxu0 %v991
          %1227 = vmatprep.subr.bf16.mxu0 0
          %1228 = vmatpush1.bf16.msra.mxu0 %v992
          %1229 = vmatprep.subr.bf16.mxu0 0
          %1230 = vmatpush1.bf16.msra.mxu0 %v993
          %1231 = vmatprep.subr.bf16.mxu0 0
          %1232 = vmatpush1.bf16.msra.mxu0 %v994
          %1233 = vmatprep.subr.bf16.mxu0 0
          %1234 = vmatpush1.bf16.msra.mxu0 %v995
          %1235 = vmatprep.subr.bf16.mxu0 0
          %1236 = vmatpush1.bf16.msra.mxu0 %v996
          %1237 = vmatprep.subr.bf16.mxu0 0
          %1238 = vmatpush1.bf16.msra.mxu0 %v997
          %1239 = vmatprep.subr.bf16.mxu0 0
          %1240 = vmatpush1.bf16.msra.mxu0 %v998
          %1241 = vmatprep.subr.bf16.mxu0 0
          %1242 = vmatpush1.bf16.msra.mxu0 %v999
          %1243 = vmatprep.subr.bf16.mxu0 0
          %1244 = vmatpush1.bf16.msra.mxu0 %v1000
          %1245 = vmatprep.subr.bf16.mxu0 0
          %1246 = vmatpush1.bf16.msra.mxu0 %v1001
          %1247 = vmatprep.subr.bf16.mxu0 0
          %1248 = vmatpush1.bf16.msra.mxu0 %v1002
          %1249 = vmatprep.subr.bf16.mxu0 0
          %1250 = vmatpush1.bf16.msra.mxu0 %v1003
          %1251 = vmatprep.subr.bf16.mxu0 0
          %1252 = vmatpush1.bf16.msra.mxu0 %v1004
          %1253 = vmatprep.mubr.bf16.mxu0 %v458
          %1254 = vmatmul.mubr.bf16.gmra.mrb[0].mxu0 %v457
          %v1255 = vpop.f32.mrb[0].mxu0
          %v1256 = vadd.f32 %v1216, %v1255
          %v1257 = vpop.f32.mrb[0].mxu0
          %v1258 = vpop.f32.mrb[0].mxu0
          %v1259 = vpop.f32.mrb[0].mxu0
          %1260 = vdwg.mxu0
          %1261 = vmatprep.subr.bf16.mxu0 0
          %1262 = vmatpush1.bf16.msra.mxu0 %v1005
          %1263 = vmatprep.subr.bf16.mxu0 0
          %1264 = vmatpush1.bf16.msra.mxu0 %v1006
          %1265 = vmatprep.subr.bf16.mxu0 0
          %1266 = vmatpush1.bf16.msra.mxu0 %v1007
          %1267 = vmatprep.subr.bf16.mxu0 0
          %1268 = vmatpush1.bf16.msra.mxu0 %v1008
          %1269 = vmatprep.subr.bf16.mxu0 0
          %1270 = vmatpush1.bf16.msra.mxu0 %v1009
          %1271 = vmatprep.subr.bf16.mxu0 0
          %1272 = vmatpush1.bf16.msra.mxu0 %v1010
          %1273 = vmatprep.subr.bf16.mxu0 0
          %1274 = vmatpush1.bf16.msra.mxu0 %v1011
          %1275 = vmatprep.subr.bf16.mxu0 0
          %1276 = vmatpush1.bf16.msra.mxu0 %v1012
          %1277 = vmatprep.subr.bf16.mxu0 0
          %1278 = vmatpush1.bf16.msra.mxu0 %v1013
          %1279 = vmatprep.subr.bf16.mxu0 0
          %1280 = vmatpush1.bf16.msra.mxu0 %v1014
          %1281 = vmatprep.subr.bf16.mxu0 0
          %1282 = vmatpush1.bf16.msra.mxu0 %v1015
          %1283 = vmatprep.subr.bf16.mxu0 0
          %1284 = vmatpush1.bf16.msra.mxu0 %v1016
          %1285 = vmatprep.subr.bf16.mxu0 0
          %1286 = vmatpush1.bf16.msra.mxu0 %v1017
          %1287 = vmatprep.subr.bf16.mxu0 0
          %1288 = vmatpush1.bf16.msra.mxu0 %v1018
          %1289 = vmatprep.subr.bf16.mxu0 0
          %1290 = vmatpush1.bf16.msra.mxu0 %v1019
          %1291 = vmatprep.subr.bf16.mxu0 0
          %1292 = vmatpush1.bf16.msra.mxu0 %v1020
          %1293 = vmatprep.mubr.bf16.mxu0 %v460
          %1294 = vmatmul.mubr.bf16.gmra.mrb[0].mxu0 %v459
          %v1295 = vpop.f32.mrb[0].mxu0
          %v1296 = vadd.f32 %v1256, %v1295
          %v1297 = vpop.f32.mrb[0].mxu0
          %v1298 = vpop.f32.mrb[0].mxu0
          %v1299 = vpop.f32.mrb[0].mxu0
          %1300 = vdwg.mxu0
          %v1301 = vrot.slane %v1296, 4
          %v1302 = vadd.f32 %v1296, %v1301
          %v1303 = vrot.slane %v1302, 2
          %v1304 = vadd.f32 %v1302, %v1303
          %v1305 = vrot.slane %v1304, 1
          %v1306 = vadd.f32 %v1304, %v1305
          %v1307 = vrcp.pop 8.0
          %v1308 = vmul.f32 %v1306, %v1307
          %v1309 = vsub.f32 %v1296, %v1308
          %v1310 = vmul.f32 %v1309, %v1309
          %v1311 = vrot.slane %v1310, 4
          %v1312 = vadd.f32 %v1310, %v1311
          %v1313 = vrot.slane %v1312, 2
          %v1314 = vadd.f32 %v1312, %v1313
          %v1315 = vrot.slane %v1314, 1
          %v1316 = vadd.f32 %v1314, %v1315
          %v1317 = vmul.f32 %v1316, %v1307
          %v1318 = vadd.f32 %v1317, 1e-05
          %v1319 = vrsqrt.pop %v1318
          %v1320 = vmul.f32 %v440, %v1319
          %v1321 = vlaneseq
          %v1322 = vshrl.u32 %v1321, 7
          %v1323 = vsub.s32 0, %v1322
          %v1324 = vrot.slane %v1320, %v1323
          %v1325 = vmul.f32 %v1309, %v1324
          %v1326 = vlaneseq
          %v1327 = vshrl.u32 %v1326, 7
          %v1328 = vsub.s32 1, %v1327
          %v1329 = vrot.slane %v440, %v1328
          %v1330 = vadd.f32 %v1325, %v1329
          %v1331 = vxor.u32 %v1330, 2147483648
          %v1332 = vmul.f32 %v1331, 1.442695
          %v1333 = vpow.pop %v1332
          %v1334 = vadd.f32 %v1333, 1.0
          %v1335 = vrcp.pop %v1334
          %v1336 = vmul.f32 1.0, %v1335
          %1337 = vst [vmem:[#allocation3] sm:$0xff] %v1336
          %v1338 = vld [vmem:[%s1] sm:$0xff]
          %v1339 = vld [vmem:[%s1 + $0x8] sm:$0xff]
          %v1340 = vld [vmem:[%s1 + $0x10] sm:$0xff]
          %v1341 = vpack.c.bf16 %v1338, %v1338
          %v1342 = vpack.c.bf16 %v1339, %v1339
          %v1343 = vpack.c.bf16 %v1340, %v1340
          %v1344 = vld [vmem:[#allocation7] sm:$0xf]
          %v1345 = vld [vmem:[#allocation7 + $0x4] sm:$0xf]
          %v1346 = vld [vmem:[#allocation7 + $0x8] sm:$0xf]
          %v1347 = vld [vmem:[#allocation7 + $0xc] sm:$0xf]
          %v1348 = vld [vmem:[#allocation7 + $0x10] sm:$0xf]
          %v1349 = vld [vmem:[#allocation7 + $0x14] sm:$0xf]
          %v1350 = vld [vmem:[#allocation7 + $0x18] sm:$0xf]
          %v1351 = vld [vmem:[#allocation7 + $0x1c] sm:$0xf]
          %v1352 = vld [vmem:[#allocation7 + $0x20] sm:$0xf]
          %v1353 = vld [vmem:[#allocation7 + $0x24] sm:$0xf]
          %v1354 = vld [vmem:[#allocation7 + $0x28] sm:$0xf]
          %v1355 = vld [vmem:[#allocation7 + $0x2c] sm:$0xf]
          %v1356 = vld [vmem:[#allocation7 + $0x30] sm:$0xf]
          %v1357 = vld [vmem:[#allocation7 + $0x34] sm:$0xf]
          %v1358 = vld [vmem:[#allocation7 + $0x38] sm:$0xf]
          %v1359 = vld [vmem:[#allocation7 + $0x3c] sm:$0xf]
          %v1360 = vld [vmem:[#allocation7 + $0x40] sm:$0xf]
          %v1361 = vld [vmem:[#allocation7 + $0x44] sm:$0xf]
          %v1362 = vld [vmem:[#allocation7 + $0x48] sm:$0xf]
          %v1363 = vld [vmem:[#allocation7 + $0x4c] sm:$0xf]
          %v1364 = vld [vmem:[#allocation7 + $0x50] sm:$0xf]
          %v1365 = vld [vmem:[#allocation7 + $0x54] sm:$0xf]
          %v1366 = vld [vmem:[#allocation7 + $0x58] sm:$0xf]
          %v1367 = vld [vmem:[#allocation7 + $0x5c] sm:$0xf]
          %v1368 = vld [vmem:[#allocation7 + $0x60] sm:$0xf]
          %v1369 = vld [vmem:[#allocation7 + $0x64] sm:$0xf]
          %v1370 = vld [vmem:[#allocation7 + $0x68] sm:$0xf]
          %v1371 = vld [vmem:[#allocation7 + $0x6c] sm:$0xf]
          %v1372 = vld [vmem:[#allocation7 + $0x70] sm:$0xf]
          %v1373 = vld [vmem:[#allocation7 + $0x74] sm:$0xf]
          %v1374 = vld [vmem:[#allocation7 + $0x78] sm:$0xf]
          %v1375 = vld [vmem:[#allocation7 + $0x7c] sm:$0xf]
          %v1376 = vld [vmem:[#allocation7 + $0x80] sm:$0xf]
          %v1377 = vld [vmem:[#allocation7 + $0x84] sm:$0xf]
          %v1378 = vld [vmem:[#allocation7 + $0x88] sm:$0xf]
          %v1379 = vld [vmem:[#allocation7 + $0x8c] sm:$0xf]
          %v1380 = vld [vmem:[#allocation7 + $0x90] sm:$0xf]
          %v1381 = vld [vmem:[#allocation7 + $0x94] sm:$0xf]
          %v1382 = vld [vmem:[#allocation7 + $0x98] sm:$0xf]
          %v1383 = vld [vmem:[#allocation7 + $0x9c] sm:$0xf]
          %v1384 = vld [vmem:[#allocation7 + $0xa0] sm:$0xf]
          %v1385 = vld [vmem:[#allocation7 + $0xa4] sm:$0xf]
          %v1386 = vld [vmem:[#allocation7 + $0xa8] sm:$0xf]
          %v1387 = vld [vmem:[#allocation7 + $0xac] sm:$0xf]
          %v1388 = vld [vmem:[#allocation7 + $0xb0] sm:$0xf]
          %v1389 = vld [vmem:[#allocation7 + $0xb4] sm:$0xf]
          %v1390 = vld [vmem:[#allocation7 + $0xb8] sm:$0xf]
          %v1391 = vld [vmem:[#allocation7 + $0xbc] sm:$0xf]
          %v1440 = vunpack.c.l.b16 %v1344
          %v1441 = vunpack.c.l.b16 %v1345
          %v1442 = vunpack.c.l.b16 %v1346
          %v1443 = vunpack.c.l.b16 %v1347
          %v1444 = vunpack.c.l.b16 %v1348
          %v1445 = vunpack.c.l.b16 %v1349
          %v1446 = vunpack.c.l.b16 %v1350
          %v1447 = vunpack.c.l.b16 %v1351
          %v1448 = vunpack.c.l.b16 %v1352
          %v1449 = vunpack.c.l.b16 %v1353
          %v1450 = vunpack.c.l.b16 %v1354
          %v1451 = vunpack.c.l.b16 %v1355
          %v1452 = vunpack.c.l.b16 %v1356
          %v1453 = vunpack.c.l.b16 %v1357
          %v1454 = vunpack.c.l.b16 %v1358
          %v1455 = vunpack.c.l.b16 %v1359
          %v1456 = vunpack.c.l.b16 %v1360
          %v1457 = vunpack.c.l.b16 %v1361
          %v1458 = vunpack.c.l.b16 %v1362
          %v1459 = vunpack.c.l.b16 %v1363
          %v1460 = vunpack.c.l.b16 %v1364
          %v1461 = vunpack.c.l.b16 %v1365
          %v1462 = vunpack.c.l.b16 %v1366
          %v1463 = vunpack.c.l.b16 %v1367
          %v1464 = vunpack.c.l.b16 %v1368
          %v1465 = vunpack.c.l.b16 %v1369
          %v1466 = vunpack.c.l.b16 %v1370
          %v1467 = vunpack.c.l.b16 %v1371
          %v1468 = vunpack.c.l.b16 %v1372
          %v1469 = vunpack.c.l.b16 %v1373
          %v1470 = vunpack.c.l.b16 %v1374
          %v1471 = vunpack.c.l.b16 %v1375
          %v1472 = vunpack.c.l.b16 %v1376
          %v1473 = vunpack.c.l.b16 %v1377
          %v1474 = vunpack.c.l.b16 %v1378
          %v1475 = vunpack.c.l.b16 %v1379
          %v1476 = vunpack.c.l.b16 %v1380
          %v1477 = vunpack.c.l.b16 %v1381
          %v1478 = vunpack.c.l.b16 %v1382
          %v1479 = vunpack.c.l.b16 %v1383
          %v1480 = vunpack.c.l.b16 %v1384
          %v1481 = vunpack.c.l.b16 %v1385
          %v1482 = vunpack.c.l.b16 %v1386
          %v1483 = vunpack.c.l.b16 %v1387
          %v1484 = vunpack.c.l.b16 %v1388
          %v1485 = vunpack.c.l.b16 %v1389
          %v1486 = vunpack.c.l.b16 %v1390
          %v1487 = vunpack.c.l.b16 %v1391
          %v1488 = vpack.c.b16 %v1441, %v1440
          %v1489 = vpack.c.b16 %v1443, %v1442
          %v1490 = vpack.c.b16 %v1445, %v1444
          %v1491 = vpack.c.b16 %v1447, %v1446
          %v1492 = vpack.c.b16 %v1449, %v1448
          %v1493 = vpack.c.b16 %v1451, %v1450
          %v1494 = vpack.c.b16 %v1453, %v1452
          %v1495 = vpack.c.b16 %v1455, %v1454
          %v1496 = vpack.c.b16 %v1457, %v1456
          %v1497 = vpack.c.b16 %v1459, %v1458
          %v1498 = vpack.c.b16 %v1461, %v1460
          %v1499 = vpack.c.b16 %v1463, %v1462
          %v1500 = vpack.c.b16 %v1465, %v1464
          %v1501 = vpack.c.b16 %v1467, %v1466
          %v1502 = vpack.c.b16 %v1469, %v1468
          %v1503 = vpack.c.b16 %v1471, %v1470
          %v1504 = vpack.c.b16 %v1473, %v1472
          %v1505 = vpack.c.b16 %v1475, %v1474
          %v1506 = vpack.c.b16 %v1477, %v1476
          %v1507 = vpack.c.b16 %v1479, %v1478
          %v1508 = vpack.c.b16 %v1481, %v1480
          %v1509 = vpack.c.b16 %v1483, %v1482
          %v1510 = vpack.c.b16 %v1485, %v1484
          %v1511 = vpack.c.b16 %v1487, %v1486
          %1536 = vmatprep.subr.bf16.mxu0 0
          %1537 = vmatpush1.bf16.msra.mxu0 %v1488
          %1538 = vmatprep.subr.bf16.mxu0 0
          %1539 = vmatpush1.bf16.msra.mxu0 %v1489
          %1540 = vmatprep.subr.bf16.mxu0 0
          %1541 = vmatpush1.bf16.msra.mxu0 %v1490
          %1542 = vmatprep.subr.bf16.mxu0 0
          %1543 = vmatpush1.bf16.msra.mxu0 %v1491
          %1544 = vmatprep.subr.bf16.mxu0 0
          %1545 = vmatpush1.bf16.msra.mxu0 %v1492
          %1546 = vmatprep.subr.bf16.mxu0 0
          %1547 = vmatpush1.bf16.msra.mxu0 %v1493
          %1548 = vmatprep.subr.bf16.mxu0 0
          %1549 = vmatpush1.bf16.msra.mxu0 %v1494
          %1550 = vmatprep.subr.bf16.mxu0 0
          %1551 = vmatpush1.bf16.msra.mxu0 %v1495
          %1552 = vmatprep.subr.bf16.mxu0 0
          %1553 = vmatpush1.bf16.msra.mxu0 %v1496
          %1554 = vmatprep.subr.bf16.mxu0 0
          %1555 = vmatpush1.bf16.msra.mxu0 %v1497
          %1556 = vmatprep.subr.bf16.mxu0 0
          %1557 = vmatpush1.bf16.msra.mxu0 %v1498
          %1558 = vmatprep.subr.bf16.mxu0 0
          %1559 = vmatpush1.bf16.msra.mxu0 %v1499
          %1560 = vmatprep.subr.bf16.mxu0 0
          %1561 = vmatpush1.bf16.msra.mxu0 %v1500
          %1562 = vmatprep.subr.bf16.mxu0 0
          %1563 = vmatpush1.bf16.msra.mxu0 %v1501
          %1564 = vmatprep.subr.bf16.mxu0 0
          %1565 = vmatpush1.bf16.msra.mxu0 %v1502
          %1566 = vmatprep.subr.bf16.mxu0 0
          %1567 = vmatpush1.bf16.msra.mxu0 %v1503
          %1568 = vmatprep.mubr.bf16.mxu0 %v1342
          %1569 = vmatmul.mubr.bf16.gmra.mrb[0].mxu0 %v1341
          %v1570 = vpop.f32.mrb[0].mxu0
          %v1571 = vadd.f32 0.0, %v1570
          %v1572 = vpop.f32.mrb[0].mxu0
          %v1573 = vpop.f32.mrb[0].mxu0
          %v1574 = vpop.f32.mrb[0].mxu0
          %1575 = vdwg.mxu0
          %1576 = vmatprep.subr.bf16.mxu0 0
          %1577 = vmatpush1.bf16.msra.mxu0 %v1504
          %1578 = vmatprep.subr.bf16.mxu0 0
          %1579 = vmatpush1.bf16.msra.mxu0 %v1505
          %1580 = vmatprep.subr.bf16.mxu0 0
          %1581 = vmatpush1.bf16.msra.mxu0 %v1506
          %1582 = vmatprep.subr.bf16.mxu0 0
          %1583 = vmatpush1.bf16.msra.mxu0 %v1507
          %1584 = vmatprep.subr.bf16.mxu0 0
          %1585 = vmatpush1.bf16.msra.mxu0 %v1508
          %1586 = vmatprep.subr.bf16.mxu0 0
          %1587 = vmatpush1.bf16.msra.mxu0 %v1509
          %1588 = vmatprep.subr.bf16.mxu0 0
          %1589 = vmatpush1.bf16.msra.mxu0 %v1510
          %1590 = vmatprep.subr.bf16.mxu0 0
          %1591 = vmatpush1.bf16.msra.mxu0 %v1511
          %1592 = vmatprep.subr.bf16.mxu0 0
          %1593 = vmatpush1.bf16.msra.mxu0 0
          %1594 = vmatprep.subr.bf16.mxu0 0
          %1595 = vmatpush1.bf16.msra.mxu0 0
          %1596 = vmatprep.subr.bf16.mxu0 0
          %1597 = vmatpush1.bf16.msra.mxu0 0
          %1598 = vmatprep.subr.bf16.mxu0 0
          %1599 = vmatpush1.bf16.msra.mxu0 0
          %1600 = vmatprep.subr.bf16.mxu0 0
          %1601 = vmatpush1.bf16.msra.mxu0 0
          %1602 = vmatprep.subr.bf16.mxu0 0
          %1603 = vmatpush1.bf16.msra.mxu0 0
          %1604 = vmatprep.subr.bf16.mxu0 0
          %1605 = vmatpush1.bf16.msra.mxu0 0
          %1606 = vmatprep.subr.bf16.mxu0 0
          %1607 = vmatpush1.bf16.msra.mxu0 0
          %1608 = vmatprep.mubr.bf16.mxu0 0
          %1609 = vmatmul.mubr.bf16.gmra.mrb[0].mxu0 %v1343
          %v1610 = vpop.f32.mrb[0].mxu0
          %v1611 = vadd.f32 %v1571, %v1610
          %v1612 = vpop.f32.mrb[0].mxu0
          %v1613 = vpop.f32.mrb[0].mxu0
          %v1614 = vpop.f32.mrb[0].mxu0
          %1615 = vdwg.mxu0
          %v1616 = vrot.slane %v1611, 4
          %v1617 = vadd.f32 %v1611, %v1616
          %v1618 = vrot.slane %v1617, 2
          %v1619 = vadd.f32 %v1617, %v1618
          %v1620 = vrot.slane %v1619, 1
          %v1621 = vadd.f32 %v1619, %v1620
          %v1622 = vmul.f32 %v1621, %v1307
          %v1623 = vsub.f32 %v1611, %v1622
          %v1624 = vmul.f32 %v1623, %v1623
          %v1625 = vrot.slane %v1624, 4
          %v1626 = vadd.f32 %v1624, %v1625
          %v1627 = vrot.slane %v1626, 2
          %v1628 = vadd.f32 %v1626, %v1627
          %v1629 = vrot.slane %v1628, 1
          %v1630 = vadd.f32 %v1628, %v1629
          %v1631 = vmul.f32 %v1630, %v1307
          %v1632 = vadd.f32 %v1631, 1e-05
          %v1633 = vrsqrt.pop %v1632
          %v1634 = vmul.f32 %v440, %v1633
          %v1635 = vlaneseq
          %v1636 = vshrl.u32 %v1635, 7
          %v1637 = vsub.s32 2, %v1636
          %v1638 = vrot.slane %v1634, %v1637
          %v1639 = vmul.f32 %v1623, %v1638
          %v1640 = vlaneseq
          %v1641 = vshrl.u32 %v1640, 7
          %v1642 = vsub.s32 3, %v1641
          %v1643 = vrot.slane %v440, %v1642
          %v1644 = vadd.f32 %v1639, %v1643
          %v1645 = vxor.u32 %v1644, 2147483648
          %v1646 = vmul.f32 %v1645, 1.442695
          %v1647 = vpow.pop %v1646
          %v1648 = vadd.f32 %v1647, 1.0
          %v1649 = vrcp.pop %v1648
          %v1650 = vmul.f32 1.0, %v1649
          %1651 = vst [vmem:[#allocation3 + $0x8] sm:$0xff] %v1650
        $region84: #{objmjmodel1_forward.1} parent=55 // pred_fallthru
          _
        %v1652 = vld [vmem:[#allocation2] sm:$0xff]
        %v1653 = vld [vmem:[#allocation2 + $0x8] sm:$0xff]
        %v1654 = vld [vmem:[%s430] sm:$0xff]
        %v1655 = vld [vmem:[%s430 + $0x8] sm:$0xff]
        %v1656 = vld [vmem:[%s430 + $0x10] sm:$0xff]
        %v1657 = vld [vmem:[%s430 + $0x18] sm:$0xff]
        %v1658 = vld [vmem:[%s430 + $0x20] sm:$0xff]
        %v1659 = vld [vmem:[%s430 + $0x28] sm:$0xff]
        %v1660 = vld [vmem:[%s430 + $0x30] sm:$0xff]
        %v1661 = vld [vmem:[%s430 + $0x38] sm:$0xff]
        %v1662 = vld [vmem:[%s430 + $0x40] sm:$0xff]
        %v1663 = vld [vmem:[%s430 + $0x48] sm:$0xff]
        %v1664 = vld [vmem:[%s430 + $0x50] sm:$0xff]
        %v1665 = vld [vmem:[%s430 + $0x58] sm:$0xff]
        %v1666 = vld [vmem:[%s430 + $0x60] sm:$0xff]
        %v1667 = vld [vmem:[%s430 + $0x68] sm:$0xff]
        %v1668 = vld [vmem:[%s430 + $0x70] sm:$0xff]
        %v1669 = vld [vmem:[%s430 + $0x78] sm:$0xff]
        %v1670 = vld [vmem:[%s430 + $0x80] sm:$0xff]
        %v1671 = vld [vmem:[%s430 + $0x88] sm:$0xff]
        %v1672 = vld [vmem:[%s430 + $0x90] sm:$0xff]
        %v1673 = vld [vmem:[%s430 + $0x98] sm:$0xff]
        %v1674 = vld [vmem:[%s430 + $0xa0] sm:$0xff]
        %v1675 = vld [vmem:[%s430 + $0xa8] sm:$0xff]
        %v1676 = vld [vmem:[%s430 + $0xb0] sm:$0xff]
        %v1677 = vld [vmem:[%s430 + $0xb8] sm:$0xff]
        %v1678 = vld [vmem:[%s430 + $0xc0] sm:$0xff]
        %v1679 = vld [vmem:[%s430 + $0xc8] sm:$0xff]
        %v1680 = vld [vmem:[%s430 + $0xd0] sm:$0xff]
        %v1681 = vpack.c.bf16 %v1654, %v1654
        %v1682 = vpack.c.bf16 %v1655, %v1655
        %v1683 = vpack.c.bf16 %v1656, %v1656
        %v1684 = vpack.c.bf16 %v1657, %v1657
        %v1685 = vpack.c.bf16 %v1658, %v1658
        %v1686 = vpack.c.bf16 %v1659, %v1659
        %v1687 = vpack.c.bf16 %v1660, %v1660
        %v1688 = vpack.c.bf16 %v1661, %v1661
        %v1689 = vpack.c.bf16 %v1662, %v1662
        %v1690 = vpack.c.bf16 %v1663, %v1663
        %v1691 = vpack.c.bf16 %v1664, %v1664
        %v1692 = vpack.c.bf16 %v1665, %v1665
        %v1693 = vpack.c.bf16 %v1666, %v1666
        %v1694 = vpack.c.bf16 %v1667, %v1667
        %v1695 = vpack.c.bf16 %v1668, %v1668
        %v1696 = vpack.c.bf16 %v1669, %v1669
        %v1697 = vpack.c.bf16 %v1670, %v1670
        %v1698 = vpack.c.bf16 %v1671, %v1671
        %v1699 = vpack.c.bf16 %v1672, %v1672
        %v1700 = vpack.c.bf16 %v1673, %v1673
        %v1701 = vpack.c.bf16 %v1674, %v1674
        %v1702 = vpack.c.bf16 %v1675, %v1675
        %v1703 = vpack.c.bf16 %v1676, %v1676
        %v1704 = vpack.c.bf16 %v1677, %v1677
        %v1705 = vpack.c.bf16 %v1678, %v1678
        %v1706 = vpack.c.bf16 %v1679, %v1679
        %v1707 = vpack.c.bf16 %v1680, %v1680
        %v1708 = vld [vmem:[%s379] sm:$0xff]
        %v1709 = vld [vmem:[%s379 + $0x8] sm:$0xff]
        %v1710 = vld [vmem:[%s379 + $0x10] sm:$0xff]
        %v1711 = vld [vmem:[%s379 + $0x18] sm:$0xff]
        %v1712 = vld [vmem:[%s379 + $0x20] sm:$0xff]
        %v1713 = vld [vmem:[%s379 + $0x28] sm:$0xff]
        %v1714 = vld [vmem:[%s379 + $0x30] sm:$0xff]
        %v1715 = vld [vmem:[%s379 + $0x38] sm:$0xff]
        %v1716 = vld [vmem:[%s379 + $0x40] sm:$0xff]
        %v1717 = vld [vmem:[%s379 + $0x48] sm:$0xff]
        %v1718 = vld [vmem:[%s379 + $0x50] sm:$0xff]
        %v1719 = vld [vmem:[%s379 + $0x58] sm:$0xff]
        %v1720 = vld [vmem:[%s379 + $0x60] sm:$0xff]
        %v1721 = vld [vmem:[%s379 + $0x68] sm:$0xff]
        %v1722 = vld [vmem:[%s379 + $0x70] sm:$0xff]
        %v1723 = vld [vmem:[%s379 + $0x78] sm:$0xff]
        %v1724 = vld [vmem:[%s379 + $0x80] sm:$0xff]
        %v1725 = vld [vmem:[%s379 + $0x88] sm:$0xff]
        %v1726 = vld [vmem:[%s379 + $0x90] sm:$0xff]
        %v1727 = vld [vmem:[%s379 + $0x98] sm:$0xff]
        %v1728 = vld [vmem:[%s379 + $0xa0] sm:$0xff]
        %v1729 = vld [vmem:[%s379 + $0xa8] sm:$0xff]
        %v1730 = vld [vmem:[%s379 + $0xb0] sm:$0xff]
        %v1731 = vld [vmem:[%s379 + $0xb8] sm:$0xff]
        %v1732 = vld [vmem:[%s379 + $0xc0] sm:$0xff]
        %v1733 = vld [vmem:[%s379 + $0xc8] sm:$0xff]
        %v1734 = vld [vmem:[%s379 + $0xd0] sm:$0xff]
        %v1735 = vld [vmem:[%s379 + $0xd8] sm:$0xff]
        %v1736 = vld [vmem:[%s379 + $0xe0] sm:$0xff]
        %v1737 = vld [vmem:[%s379 + $0xe8] sm:$0xff]
        %v1738 = vld [vmem:[%s379 + $0xf0] sm:$0xff]
        %v1739 = vld [vmem:[%s379 + $0xf8] sm:$0xff]
        %v1740 = vld [vmem:[%s379 + $0x100] sm:$0xff]
        %v1741 = vld [vmem:[%s379 + $0x108] sm:$0xff]
        %v1742 = vld [vmem:[%s379 + $0x110] sm:$0xff]
        %v1743 = vld [vmem:[%s379 + $0x118] sm:$0xff]
        %v1744 = vld [vmem:[%s379 + $0x120] sm:$0xff]
        %v1745 = vld [vmem:[%s379 + $0x128] sm:$0xff]
        %v1746 = vld [vmem:[%s379 + $0x130] sm:$0xff]
        %v1747 = vld [vmem:[%s379 + $0x138] sm:$0xff]
        %v1748 = vld [vmem:[%s379 + $0x140] sm:$0xff]
        %v1749 = vld [vmem:[%s379 + $0x148] sm:$0xff]
        %v1750 = vld [vmem:[%s379 + $0x150] sm:$0xff]
        %v1751 = vld [vmem:[%s379 + $0x158] sm:$0xff]
        %v1752 = vld [vmem:[%s379 + $0x160] sm:$0xff]
        %v1753 = vld [vmem:[%s379 + $0x168] sm:$0xff]
        %v1754 = vld [vmem:[%s379 + $0x170] sm:$0xff]
        %v1755 = vld [vmem:[%s379 + $0x178] sm:$0xff]
        %v1756 = vld [vmem:[%s379 + $0x180] sm:$0xff]
        %v1757 = vld [vmem:[%s379 + $0x188] sm:$0xff]
        %v1758 = vld [vmem:[%s379 + $0x190] sm:$0xff]
        %v1759 = vld [vmem:[%s379 + $0x198] sm:$0xff]
        %v1760 = vld [vmem:[%s379 + $0x1a0] sm:$0xff]
        %v1761 = vld [vmem:[%s379 + $0x1a8] sm:$0xff]
        %v1762 = vld [vmem:[%s379 + $0x1b0] sm:$0xff]
        %v1763 = vld [vmem:[%s379 + $0x1b8] sm:$0xff]
        %v1764 = vld [vmem:[%s379 + $0x1c0] sm:$0xff]
        %v1765 = vld [vmem:[%s379 + $0x1c8] sm:$0xff]
        %v1766 = vld [vmem:[%s379 + $0x1d0] sm:$0xff]
        %v1767 = vld [vmem:[%s379 + $0x1d8] sm:$0xff]
        %v1768 = vld [vmem:[%s379 + $0x1e0] sm:$0xff]
        %v1769 = vld [vmem:[%s379 + $0x1e8] sm:$0xff]
        %v1770 = vld [vmem:[%s379 + $0x1f0] sm:$0xff]
        %v1771 = vld [vmem:[%s379 + $0x1f8] sm:$0xff]
        %v1772 = vld [vmem:[%s379 + $0x200] sm:$0xff]
        %v1773 = vld [vmem:[%s379 + $0x208] sm:$0xff]
        %v1774 = vld [vmem:[%s379 + $0x210] sm:$0xff]
        %v1775 = vld [vmem:[%s379 + $0x218] sm:$0xff]
        %v1776 = vld [vmem:[%s379 + $0x220] sm:$0xff]
        %v1777 = vld [vmem:[%s379 + $0x228] sm:$0xff]
        %v1778 = vld [vmem:[%s379 + $0x230] sm:$0xff]
        %v1779 = vld [vmem:[%s379 + $0x238] sm:$0xff]
        %v1780 = vld [vmem:[%s379 + $0x240] sm:$0xff]
        %v1781 = vld [vmem:[%s379 + $0x248] sm:$0xff]
        %v1782 = vld [vmem:[%s379 + $0x250] sm:$0xff]
        %v1783 = vld [vmem:[%s379 + $0x258] sm:$0xff]
        %v1784 = vld [vmem:[%s379 + $0x260] sm:$0xff]
        %v1785 = vld [vmem:[%s379 + $0x268] sm:$0xff]
        %v1786 = vld [vmem:[%s379 + $0x270] sm:$0xff]
        %v1787 = vld [vmem:[%s379 + $0x278] sm:$0xff]
        %v1788 = vld [vmem:[%s379 + $0x280] sm:$0xff]
        %v1789 = vld [vmem:[%s379 + $0x288] sm:$0xff]
        %v1790 = vld [vmem:[%s379 + $0x290] sm:$0xff]
        %v1791 = vld [vmem:[%s379 + $0x298] sm:$0xff]
        %v1792 = vld [vmem:[%s379 + $0x2a0] sm:$0xff]
        %v1793 = vld [vmem:[%s379 + $0x2a8] sm:$0xff]
        %v1794 = vld [vmem:[%s379 + $0x2b0] sm:$0xff]
        %v1795 = vld [vmem:[%s379 + $0x2b8] sm:$0xff]
        %v1796 = vld [vmem:[%s379 + $0x2c0] sm:$0xff]
        %v1797 = vld [vmem:[%s379 + $0x2c8] sm:$0xff]
        %v1798 = vld [vmem:[%s379 + $0x2d0] sm:$0xff]
        %v1799 = vld [vmem:[%s379 + $0x2d8] sm:$0xff]
        %v1800 = vld [vmem:[%s379 + $0x2e0] sm:$0xff]
        %v1801 = vld [vmem:[%s379 + $0x2e8] sm:$0xff]
        %v1802 = vld [vmem:[%s379 + $0x2f0] sm:$0xff]
        %v1803 = vld [vmem:[%s379 + $0x2f8] sm:$0xff]
        %v1804 = vld [vmem:[%s379 + $0x300] sm:$0xff]
        %v1805 = vld [vmem:[%s379 + $0x308] sm:$0xff]
        %v1806 = vld [vmem:[%s379 + $0x310] sm:$0xff]
        %v1807 = vld [vmem:[%s379 + $0x318] sm:$0xff]
        %v1808 = vld [vmem:[%s379 + $0x320] sm:$0xff]
        %v1809 = vld [vmem:[%s379 + $0x328] sm:$0xff]
        %v1810 = vld [vmem:[%s379 + $0x330] sm:$0xff]
        %v1811 = vld [vmem:[%s379 + $0x338] sm:$0xff]
        %v1812 = vld [vmem:[%s379 + $0x340] sm:$0xff]
        %v1813 = vld [vmem:[%s379 + $0x348] sm:$0xff]
        %v1814 = vld [vmem:[%s379 + $0x350] sm:$0xff]
        %v1815 = vld [vmem:[%s379 + $0x358] sm:$0xff]
        %v1816 = vld [vmem:[%s379 + $0x360] sm:$0xff]
        %v1817 = vld [vmem:[%s379 + $0x368] sm:$0xff]
        %v1818 = vld [vmem:[%s379 + $0x370] sm:$0xff]
        %v1819 = vld [vmem:[%s379 + $0x378] sm:$0xff]
        %v1820 = vld [vmem:[%s379 + $0x380] sm:$0xff]
        %v1821 = vld [vmem:[%s379 + $0x388] sm:$0xff]
        %v1822 = vld [vmem:[%s379 + $0x390] sm:$0xff]
        %v1823 = vld [vmem:[%s379 + $0x398] sm:$0xff]
        %v1824 = vld [vmem:[%s379 + $0x3a0] sm:$0xff]
        %v1825 = vld [vmem:[%s379 + $0x3a8] sm:$0xff]
        %v1826 = vld [vmem:[%s379 + $0x3b0] sm:$0xff]
        %v1827 = vld [vmem:[%s379 + $0x3b8] sm:$0xff]
        %v1828 = vld [vmem:[%s379 + $0x3c0] sm:$0xff]
        %v1829 = vld [vmem:[%s379 + $0x3c8] sm:$0xff]
        %v1830 = vld [vmem:[%s379 + $0x3d0] sm:$0xff]
        %v1831 = vld [vmem:[%s379 + $0x3d8] sm:$0xff]
        %v1832 = vld [vmem:[%s379 + $0x3e0] sm:$0xff]
        %v1833 = vld [vmem:[%s379 + $0x3e8] sm:$0xff]
        %v1834 = vld [vmem:[%s379 + $0x3f0] sm:$0xff]
        %v1835 = vld [vmem:[%s379 + $0x3f8] sm:$0xff]
        %v1836 = vld [vmem:[%s379 + $0x400] sm:$0xff]
        %v1837 = vld [vmem:[%s379 + $0x408] sm:$0xff]
        %v1838 = vld [vmem:[%s379 + $0x410] sm:$0xff]
        %v1839 = vld [vmem:[%s379 + $0x418] sm:$0xff]
        %v1840 = vld [vmem:[%s379 + $0x420] sm:$0xff]
        %v1841 = vld [vmem:[%s379 + $0x428] sm:$0xff]
        %v1842 = vld [vmem:[%s379 + $0x430] sm:$0xff]
        %v1843 = vld [vmem:[%s379 + $0x438] sm:$0xff]
        %v1844 = vld [vmem:[%s379 + $0x440] sm:$0xff]
        %v1845 = vld [vmem:[%s379 + $0x448] sm:$0xff]
        %v1846 = vld [vmem:[%s379 + $0x450] sm:$0xff]
        %v1847 = vld [vmem:[%s379 + $0x458] sm:$0xff]
        %v1848 = vld [vmem:[%s379 + $0x460] sm:$0xff]
        %v1849 = vld [vmem:[%s379 + $0x468] sm:$0xff]
        %v1850 = vld [vmem:[%s379 + $0x470] sm:$0xff]
        %v1851 = vld [vmem:[%s379 + $0x478] sm:$0xff]
        %v1852 = vld [vmem:[%s379 + $0x480] sm:$0xff]
        %v1853 = vld [vmem:[%s379 + $0x488] sm:$0xff]
        %v1854 = vld [vmem:[%s379 + $0x490] sm:$0xff]
        %v1855 = vld [vmem:[%s379 + $0x498] sm:$0xff]
        %v1856 = vld [vmem:[%s379 + $0x4a0] sm:$0xff]
        %v1857 = vld [vmem:[%s379 + $0x4a8] sm:$0xff]
        %v1858 = vld [vmem:[%s379 + $0x4b0] sm:$0xff]
        %v1859 = vld [vmem:[%s379 + $0x4b8] sm:$0xff]
        %v1860 = vld [vmem:[%s379 + $0x4c0] sm:$0xff]
        %v1861 = vld [vmem:[%s379 + $0x4c8] sm:$0xff]
        %v1862 = vld [vmem:[%s379 + $0x4d0] sm:$0xff]
        %v1863 = vld [vmem:[%s379 + $0x4d8] sm:$0xff]
        %v1864 = vld [vmem:[%s379 + $0x4e0] sm:$0xff]
        %v1865 = vld [vmem:[%s379 + $0x4e8] sm:$0xff]
        %v1866 = vld [vmem:[%s379 + $0x4f0] sm:$0xff]
        %v1867 = vld [vmem:[%s379 + $0x4f8] sm:$0xff]
        %v1868 = vld [vmem:[%s379 + $0x500] sm:$0xff]
        %v1869 = vld [vmem:[%s379 + $0x508] sm:$0xff]
        %v1870 = vld [vmem:[%s379 + $0x510] sm:$0xff]
        %v1871 = vld [vmem:[%s379 + $0x518] sm:$0xff]
        %v1872 = vld [vmem:[%s379 + $0x520] sm:$0xff]
        %v1873 = vld [vmem:[%s379 + $0x528] sm:$0xff]
        %v1874 = vld [vmem:[%s379 + $0x530] sm:$0xff]
        %v1875 = vld [vmem:[%s379 + $0x538] sm:$0xff]
        %v1876 = vld [vmem:[%s379 + $0x540] sm:$0xff]
        %v1877 = vld [vmem:[%s379 + $0x548] sm:$0xff]
        %v1878 = vld [vmem:[%s379 + $0x550] sm:$0xff]
        %v1879 = vld [vmem:[%s379 + $0x558] sm:$0xff]
        %v1880 = vld [vmem:[%s379 + $0x560] sm:$0xff]
        %v1881 = vld [vmem:[%s379 + $0x568] sm:$0xff]
        %v1882 = vld [vmem:[%s379 + $0x570] sm:$0xff]
        %v1883 = vld [vmem:[%s379 + $0x578] sm:$0xff]
        %v1884 = vld [vmem:[%s379 + $0x580] sm:$0xff]
        %v1885 = vld [vmem:[%s379 + $0x588] sm:$0xff]
        %v1886 = vld [vmem:[%s379 + $0x590] sm:$0xff]
        %v1887 = vld [vmem:[%s379 + $0x598] sm:$0xff]
        %v1888 = vld [vmem:[%s379 + $0x5a0] sm:$0xff]
        %v1889 = vld [vmem:[%s379 + $0x5a8] sm:$0xff]
        %v1890 = vld [vmem:[%s379 + $0x5b0] sm:$0xff]
        %v1891 = vld [vmem:[%s379 + $0x5b8] sm:$0xff]
        %v1892 = vld [vmem:[%s379 + $0x5c0] sm:$0xff]
        %v1893 = vld [vmem:[%s379 + $0x5c8] sm:$0xff]
        %v1894 = vld [vmem:[%s379 + $0x5d0] sm:$0xff]
        %v1895 = vld [vmem:[%s379 + $0x5d8] sm:$0xff]
        %v1896 = vld [vmem:[%s379 + $0x5e0] sm:$0xff]
        %v1897 = vld [vmem:[%s379 + $0x5e8] sm:$0xff]
        %v1898 = vld [vmem:[%s379 + $0x5f0] sm:$0xff]
        %v1899 = vld [vmem:[%s379 + $0x5f8] sm:$0xff]
        %v1900 = vld [vmem:[%s379 + $0x600] sm:$0xff]
        %v1901 = vld [vmem:[%s379 + $0x608] sm:$0xff]
        %v1902 = vld [vmem:[%s379 + $0x610] sm:$0xff]
        %v1903 = vld [vmem:[%s379 + $0x618] sm:$0xff]
        %v1904 = vld [vmem:[%s379 + $0x620] sm:$0xff]
        %v1905 = vld [vmem:[%s379 + $0x628] sm:$0xff]
        %v1906 = vld [vmem:[%s379 + $0x630] sm:$0xff]
        %v1907 = vld [vmem:[%s379 + $0x638] sm:$0xff]
        %v1908 = vld [vmem:[%s379 + $0x640] sm:$0xff]
        %v1909 = vld [vmem:[%s379 + $0x648] sm:$0xff]
        %v1910 = vld [vmem:[%s379 + $0x650] sm:$0xff]
        %v1911 = vld [vmem:[%s379 + $0x658] sm:$0xff]
        %v1912 = vld [vmem:[%s379 + $0x660] sm:$0xff]
        %v1913 = vld [vmem:[%s379 + $0x668] sm:$0xff]
        %v1914 = vld [vmem:[%s379 + $0x670] sm:$0xff]
        %v1915 = vld [vmem:[%s379 + $0x678] sm:$0xff]
        %v1916 = vld [vmem:[%s379 + $0x680] sm:$0xff]
        %v1917 = vld [vmem:[%s379 + $0x688] sm:$0xff]
        %v1918 = vld [vmem:[%s379 + $0x690] sm:$0xff]
        %v1919 = vld [vmem:[%s379 + $0x698] sm:$0xff]
        %v1920 = vld [vmem:[%s379 + $0x6a0] sm:$0xff]
        %v1921 = vld [vmem:[%s379 + $0x6a8] sm:$0xff]
        %v1922 = vld [vmem:[%s379 + $0x6b0] sm:$0xff]
        %v1923 = vld [vmem:[%s379 + $0x6b8] sm:$0xff]
        %v1924 = vld [vmem:[%s379 + $0x6c0] sm:$0xff]
        %v1925 = vld [vmem:[%s379 + $0x6c8] sm:$0xff]
        %v1926 = vld [vmem:[%s379 + $0x6d0] sm:$0xff]
        %v1927 = vld [vmem:[%s379 + $0x6d8] sm:$0xff]
        %v1928 = vld [vmem:[%s379 + $0x6e0] sm:$0xff]
        %v1929 = vld [vmem:[%s379 + $0x6e8] sm:$0xff]
        %v1930 = vld [vmem:[%s379 + $0x6f0] sm:$0xff]
        %v1931 = vld [vmem:[%s379 + $0x6f8] sm:$0xff]
        %v1932 = vld [vmem:[%s379 + $0x700] sm:$0xff]
        %v1933 = vld [vmem:[%s379 + $0x708] sm:$0xff]
        %v1934 = vld [vmem:[%s379 + $0x710] sm:$0xff]
        %v1935 = vld [vmem:[%s379 + $0x718] sm:$0xff]
        %v1936 = vld [vmem:[%s379 + $0x720] sm:$0xff]
        %v1937 = vld [vmem:[%s379 + $0x728] sm:$0xff]
        %v1938 = vld [vmem:[%s379 + $0x730] sm:$0xff]
        %v1939 = vld [vmem:[%s379 + $0x738] sm:$0xff]
        %v1940 = vld [vmem:[%s379 + $0x740] sm:$0xff]
        %v1941 = vld [vmem:[%s379 + $0x748] sm:$0xff]
        %v1942 = vld [vmem:[%s379 + $0x750] sm:$0xff]
        %v1943 = vld [vmem:[%s379 + $0x758] sm:$0xff]
        %v1944 = vld [vmem:[%s379 + $0x760] sm:$0xff]
        %v1945 = vld [vmem:[%s379 + $0x768] sm:$0xff]
        %v1946 = vld [vmem:[%s379 + $0x770] sm:$0xff]
        %v1947 = vld [vmem:[%s379 + $0x778] sm:$0xff]
        %v1948 = vld [vmem:[%s379 + $0x780] sm:$0xff]
        %v1949 = vld [vmem:[%s379 + $0x788] sm:$0xff]
        %v1950 = vld [vmem:[%s379 + $0x790] sm:$0xff]
        %v1951 = vld [vmem:[%s379 + $0x798] sm:$0xff]
        %v1952 = vld [vmem:[%s379 + $0x7a0] sm:$0xff]
        %v1953 = vld [vmem:[%s379 + $0x7a8] sm:$0xff]
        %v1954 = vld [vmem:[%s379 + $0x7b0] sm:$0xff]
        %v1955 = vld [vmem:[%s379 + $0x7b8] sm:$0xff]
        %v1956 = vld [vmem:[%s379 + $0x7c0] sm:$0xff]
        %v1957 = vld [vmem:[%s379 + $0x7c8] sm:$0xff]
        %v1958 = vld [vmem:[%s379 + $0x7d0] sm:$0xff]
        %v1959 = vld [vmem:[%s379 + $0x7d8] sm:$0xff]
        %v1960 = vld [vmem:[%s379 + $0x7e0] sm:$0xff]
        %v1961 = vld [vmem:[%s379 + $0x7e8] sm:$0xff]
        %v1962 = vld [vmem:[%s379 + $0x7f0] sm:$0xff]
        %v1963 = vld [vmem:[%s379 + $0x7f8] sm:$0xff]
        %v1964 = vld [vmem:[%s379 + $0x800] sm:$0xff]
        %v1965 = vld [vmem:[%s379 + $0x808] sm:$0xff]
        %v1966 = vld [vmem:[%s379 + $0x810] sm:$0xff]
        %v1967 = vld [vmem:[%s379 + $0x818] sm:$0xff]
        %v1968 = vld [vmem:[%s379 + $0x820] sm:$0xff]
        %v1969 = vld [vmem:[%s379 + $0x828] sm:$0xff]
        %v1970 = vld [vmem:[%s379 + $0x830] sm:$0xff]
        %v1971 = vld [vmem:[%s379 + $0x838] sm:$0xff]
        %v1972 = vld [vmem:[%s379 + $0x840] sm:$0xff]
        %v1973 = vld [vmem:[%s379 + $0x848] sm:$0xff]
        %v1974 = vld [vmem:[%s379 + $0x850] sm:$0xff]
        %v1975 = vld [vmem:[%s379 + $0x858] sm:$0xff]
        %v1976 = vld [vmem:[%s379 + $0x860] sm:$0xff]
        %v1977 = vld [vmem:[%s379 + $0x868] sm:$0xff]
        %v1978 = vld [vmem:[%s379 + $0x870] sm:$0xff]
        %v1979 = vld [vmem:[%s379 + $0x878] sm:$0xff]
        %v1980 = vld [vmem:[%s379 + $0x880] sm:$0xff]
        %v1981 = vld [vmem:[%s379 + $0x888] sm:$0xff]
        %v1982 = vld [vmem:[%s379 + $0x890] sm:$0xff]
        %v1983 = vld [vmem:[%s379 + $0x898] sm:$0xff]
        %v1984 = vld [vmem:[%s379 + $0x8a0] sm:$0xff]
        %v1985 = vld [vmem:[%s379 + $0x8a8] sm:$0xff]
        %v1986 = vld [vmem:[%s379 + $0x8b0] sm:$0xff]
        %v1987 = vld [vmem:[%s379 + $0x8b8] sm:$0xff]
        %v1988 = vld [vmem:[%s379 + $0x8c0] sm:$0xff]
        %v1989 = vld [vmem:[%s379 + $0x8c8] sm:$0xff]
        %v1990 = vld [vmem:[%s379 + $0x8d0] sm:$0xff]
        %v1991 = vld [vmem:[%s379 + $0x8d8] sm:$0xff]
        %v1992 = vld [vmem:[%s379 + $0x8e0] sm:$0xff]
        %v1993 = vld [vmem:[%s379 + $0x8e8] sm:$0xff]
        %v1994 = vld [vmem:[%s379 + $0x8f0] sm:$0xff]
        %v1995 = vld [vmem:[%s379 + $0x8f8] sm:$0xff]
        %v1996 = vld [vmem:[%s379 + $0x900] sm:$0xff]
        %v1997 = vld [vmem:[%s379 + $0x908] sm:$0xff]
        %v1998 = vld [vmem:[%s379 + $0x910] sm:$0xff]
        %v1999 = vld [vmem:[%s379 + $0x918] sm:$0xff]
        %v2000 = vld [vmem:[%s379 + $0x920] sm:$0xff]
        %v2001 = vld [vmem:[%s379 + $0x928] sm:$0xff]
        %v2002 = vld [vmem:[%s379 + $0x930] sm:$0xff]
        %v2003 = vld [vmem:[%s379 + $0x938] sm:$0xff]
        %v2004 = vld [vmem:[%s379 + $0x940] sm:$0xff]
        %v2005 = vld [vmem:[%s379 + $0x948] sm:$0xff]
        %v2006 = vld [vmem:[%s379 + $0x950] sm:$0xff]
        %v2007 = vld [vmem:[%s379 + $0x958] sm:$0xff]
        %v2008 = vld [vmem:[%s379 + $0x960] sm:$0xff]
        %v2009 = vld [vmem:[%s379 + $0x968] sm:$0xff]
        %v2010 = vld [vmem:[%s379 + $0x970] sm:$0xff]
        %v2011 = vld [vmem:[%s379 + $0x978] sm:$0xff]
        %v2012 = vld [vmem:[%s379 + $0x980] sm:$0xff]
        %v2013 = vld [vmem:[%s379 + $0x988] sm:$0xff]
        %v2014 = vld [vmem:[%s379 + $0x990] sm:$0xff]
        %v2015 = vld [vmem:[%s379 + $0x998] sm:$0xff]
        %v2016 = vld [vmem:[%s379 + $0x9a0] sm:$0xff]
        %v2017 = vld [vmem:[%s379 + $0x9a8] sm:$0xff]
        %v2018 = vld [vmem:[%s379 + $0x9b0] sm:$0xff]
        %v2019 = vld [vmem:[%s379 + $0x9b8] sm:$0xff]
        %v2020 = vld [vmem:[%s379 + $0x9c0] sm:$0xff]
        %v2021 = vld [vmem:[%s379 + $0x9c8] sm:$0xff]
        %v2022 = vld [vmem:[%s379 + $0x9d0] sm:$0xff]
        %v2023 = vld [vmem:[%s379 + $0x9d8] sm:$0xff]
        %v2024 = vld [vmem:[%s379 + $0x9e0] sm:$0xff]
        %v2025 = vld [vmem:[%s379 + $0x9e8] sm:$0xff]
        %v2026 = vld [vmem:[%s379 + $0x9f0] sm:$0xff]
        %v2027 = vld [vmem:[%s379 + $0x9f8] sm:$0xff]
        %v2028 = vld [vmem:[%s379 + $0xa00] sm:$0xff]
        %v2029 = vld [vmem:[%s379 + $0xa08] sm:$0xff]
        %v2030 = vld [vmem:[%s379 + $0xa10] sm:$0xff]
        %v2031 = vld [vmem:[%s379 + $0xa18] sm:$0xff]
        %v2032 = vld [vmem:[%s379 + $0xa20] sm:$0xff]
        %v2033 = vld [vmem:[%s379 + $0xa28] sm:$0xff]
        %v2034 = vld [vmem:[%s379 + $0xa30] sm:$0xff]
        %v2035 = vld [vmem:[%s379 + $0xa38] sm:$0xff]
        %v2036 = vld [vmem:[%s379 + $0xa40] sm:$0xff]
        %v2037 = vld [vmem:[%s379 + $0xa48] sm:$0xff]
        %v2038 = vld [vmem:[%s379 + $0xa50] sm:$0xff]
        %v2039 = vld [vmem:[%s379 + $0xa58] sm:$0xff]
        %v2040 = vld [vmem:[%s379 + $0xa60] sm:$0xff]
        %v2041 = vld [vmem:[%s379 + $0xa68] sm:$0xff]
        %v2042 = vld [vmem:[%s379 + $0xa70] sm:$0xff]
        %v2043 = vld [vmem:[%s379 + $0xa78] sm:$0xff]
        %v2044 = vld [vmem:[%s379 + $0xa80] sm:$0xff]
        %v2045 = vld [vmem:[%s379 + $0xa88] sm:$0xff]
        %v2046 = vld [vmem:[%s379 + $0xa90] sm:$0xff]
        %v2047 = vld [vmem:[%s379 + $0xa98] sm:$0xff]
        %v2048 = vld [vmem:[%s379 + $0xaa0] sm:$0xff]
        %v2049 = vld [vmem:[%s379 + $0xaa8] sm:$0xff]
        %v2050 = vld [vmem:[%s379 + $0xab0] sm:$0xff]
        %v2051 = vld [vmem:[%s379 + $0xab8] sm:$0xff]
        %v2052 = vld [vmem:[%s379 + $0xac0] sm:$0xff]
        %v2053 = vld [vmem:[%s379 + $0xac8] sm:$0xff]
        %v2054 = vld [vmem:[%s379 + $0xad0] sm:$0xff]
        %v2055 = vld [vmem:[%s379 + $0xad8] sm:$0xff]
        %v2056 = vld [vmem:[%s379 + $0xae0] sm:$0xff]
        %v2057 = vld [vmem:[%s379 + $0xae8] sm:$0xff]
        %v2058 = vld [vmem:[%s379 + $0xaf0] sm:$0xff]
        %v2059 = vld [vmem:[%s379 + $0xaf8] sm:$0xff]
        %v2060 = vld [vmem:[%s379 + $0xb00] sm:$0xff]
        %v2061 = vld [vmem:[%s379 + $0xb08] sm:$0xff]
        %v2062 = vld [vmem:[%s379 + $0xb10] sm:$0xff]
        %v2063 = vld [vmem:[%s379 + $0xb18] sm:$0xff]
        %v2064 = vld [vmem:[%s379 + $0xb20] sm:$0xff]
        %v2065 = vld [vmem:[%s379 + $0xb28] sm:$0xff]
        %v2066 = vld [vmem:[%s379 + $0xb30] sm:$0xff]
        %v2067 = vld [vmem:[%s379 + $0xb38] sm:$0xff]
        %v2068 = vld [vmem:[%s379 + $0xb40] sm:$0xff]
        %v2069 = vld [vmem:[%s379 + $0xb48] sm:$0xff]
        %v2070 = vld [vmem:[%s379 + $0xb50] sm:$0xff]
        %v2071 = vld [vmem:[%s379 + $0xb58] sm:$0xff]
        %v2072 = vld [vmem:[%s379 + $0xb60] sm:$0xff]
        %v2073 = vld [vmem:[%s379 + $0xb68] sm:$0xff]
        %v2074 = vld [vmem:[%s379 + $0xb70] sm:$0xff]
        %v2075 = vld [vmem:[%s379 + $0xb78] sm:$0xff]
        %v2076 = vld [vmem:[%s379 + $0xb80] sm:$0xff]
        %v2077 = vld [vmem:[%s379 + $0xb88] sm:$0xff]
        %v2078 = vld [vmem:[%s379 + $0xb90] sm:$0xff]
        %v2079 = vld [vmem:[%s379 + $0xb98] sm:$0xff]
        %v2080 = vld [vmem:[%s379 + $0xba0] sm:$0xff]
        %v2081 = vld [vmem:[%s379 + $0xba8] sm:$0xff]
        %v2082 = vld [vmem:[%s379 + $0xbb0] sm:$0xff]
        %v2083 = vld [vmem:[%s379 + $0xbb8] sm:$0xff]
        %v2084 = vld [vmem:[%s379 + $0xbc0] sm:$0xff]
        %v2085 = vld [vmem:[%s379 + $0xbc8] sm:$0xff]
        %v2086 = vld [vmem:[%s379 + $0xbd0] sm:$0xff]
        %v2087 = vld [vmem:[%s379 + $0xbd8] sm:$0xff]
        %v2088 = vld [vmem:[%s379 + $0xbe0] sm:$0xff]
        %v2089 = vld [vmem:[%s379 + $0xbe8] sm:$0xff]
        %v2090 = vld [vmem:[%s379 + $0xbf0] sm:$0xff]
        %v2091 = vld [vmem:[%s379 + $0xbf8] sm:$0xff]
        %v2092 = vld [vmem:[%s379 + $0xc00] sm:$0xff]
        %v2093 = vld [vmem:[%s379 + $0xc08] sm:$0xff]
        %v2094 = vld [vmem:[%s379 + $0xc10] sm:$0xff]
        %v2095 = vld [vmem:[%s379 + $0xc18] sm:$0xff]
        %v2096 = vld [vmem:[%s379 + $0xc20] sm:$0xff]
        %v2097 = vld [vmem:[%s379 + $0xc28] sm:$0xff]
        %v2098 = vld [vmem:[%s379 + $0xc30] sm:$0xff]
        %v2099 = vld [vmem:[%s379 + $0xc38] sm:$0xff]
        %v2100 = vld [vmem:[%s379 + $0xc40] sm:$0xff]
        %v2101 = vld [vmem:[%s379 + $0xc48] sm:$0xff]
        %v2102 = vld [vmem:[%s379 + $0xc50] sm:$0xff]
        %v2103 = vld [vmem:[%s379 + $0xc58] sm:$0xff]
        %v2104 = vld [vmem:[%s379 + $0xc60] sm:$0xff]
        %v2105 = vld [vmem:[%s379 + $0xc68] sm:$0xff]
        %v2106 = vld [vmem:[%s379 + $0xc70] sm:$0xff]
        %v2107 = vld [vmem:[%s379 + $0xc78] sm:$0xff]
        %v2108 = vld [vmem:[%s379 + $0xc80] sm:$0xff]
        %v2109 = vld [vmem:[%s379 + $0xc88] sm:$0xff]
        %v2110 = vld [vmem:[%s379 + $0xc90] sm:$0xff]
        %v2111 = vld [vmem:[%s379 + $0xc98] sm:$0xff]
        %v2112 = vld [vmem:[%s379 + $0xca0] sm:$0xff]
        %v2113 = vld [vmem:[%s379 + $0xca8] sm:$0xff]
        %v2114 = vld [vmem:[%s379 + $0xcb0] sm:$0xff]
        %v2115 = vld [vmem:[%s379 + $0xcb8] sm:$0xff]
        %v2116 = vld [vmem:[%s379 + $0xcc0] sm:$0xff]
        %v2117 = vld [vmem:[%s379 + $0xcc8] sm:$0xff]
        %v2118 = vld [vmem:[%s379 + $0xcd0] sm:$0xff]
        %v2119 = vld [vmem:[%s379 + $0xcd8] sm:$0xff]
        %v2120 = vld [vmem:[%s379 + $0xce0] sm:$0xff]
        %v2121 = vld [vmem:[%s379 + $0xce8] sm:$0xff]
        %v2122 = vld [vmem:[%s379 + $0xcf0] sm:$0xff]
        %v2123 = vld [vmem:[%s379 + $0xcf8] sm:$0xff]
        %v2124 = vld [vmem:[%s379 + $0xd00] sm:$0xff]
        %v2125 = vld [vmem:[%s379 + $0xd08] sm:$0xff]
        %v2126 = vld [vmem:[%s379 + $0xd10] sm:$0xff]
        %v2127 = vld [vmem:[%s379 + $0xd18] sm:$0xff]
        %v2128 = vld [vmem:[%s379 + $0xd20] sm:$0xff]
        %v2129 = vld [vmem:[%s379 + $0xd28] sm:$0xff]
        %v2130 = vld [vmem:[%s379 + $0xd30] sm:$0xff]
        %v2131 = vld [vmem:[%s379 + $0xd38] sm:$0xff]
        %v2132 = vld [vmem:[%s379 + $0xd40] sm:$0xff]
        %v2133 = vld [vmem:[%s379 + $0xd48] sm:$0xff]
        %v2134 = vld [vmem:[%s379 + $0xd50] sm:$0xff]
        %v2135 = vld [vmem:[%s379 + $0xd58] sm:$0xff]
        %v2136 = vld [vmem:[%s379 + $0xd60] sm:$0xff]
        %v2137 = vld [vmem:[%s379 + $0xd68] sm:$0xff]
        %v2138 = vld [vmem:[%s379 + $0xd70] sm:$0xff]
        %v2139 = vld [vmem:[%s379 + $0xd78] sm:$0xff]
        %v2572 = vunpack.c.l.b16 %v1708
        %v2573 = vunpack.c.h.b16 %v1708
        %v2574 = vunpack.c.l.b16 %v1709
        %v2575 = vunpack.c.h.b16 %v1709
        %v2576 = vunpack.c.l.b16 %v1710
        %v2577 = vunpack.c.h.b16 %v1710
        %v2578 = vunpack.c.l.b16 %v1711
        %v2579 = vunpack.c.h.b16 %v1711
        %v2580 = vunpack.c.l.b16 %v1712
        %v2581 = vunpack.c.h.b16 %v1712
        %v2582 = vunpack.c.l.b16 %v1713
        %v2583 = vunpack.c.h.b16 %v1713
        %v2584 = vunpack.c.l.b16 %v1714
        %v2585 = vunpack.c.h.b16 %v1714
        %v2586 = vunpack.c.l.b16 %v1715
        %v2587 = vunpack.c.h.b16 %v1715
        %v2588 = vunpack.c.l.b16 %v1716
        %v2589 = vunpack.c.h.b16 %v1716
        %v2590 = vunpack.c.l.b16 %v1717
        %v2591 = vunpack.c.h.b16 %v1717
        %v2592 = vunpack.c.l.b16 %v1718
        %v2593 = vunpack.c.h.b16 %v1718
        %v2594 = vunpack.c.l.b16 %v1719
        %v2595 = vunpack.c.h.b16 %v1719
        %v2596 = vunpack.c.l.b16 %v1720
        %v2597 = vunpack.c.h.b16 %v1720
        %v2598 = vunpack.c.l.b16 %v1721
        %v2599 = vunpack.c.h.b16 %v1721
        %v2600 = vunpack.c.l.b16 %v1722
        %v2601 = vunpack.c.h.b16 %v1722
        %v2602 = vunpack.c.l.b16 %v1723
        %v2603 = vunpack.c.h.b16 %v1723
        %v2604 = vunpack.c.l.b16 %v1724
        %v2605 = vunpack.c.h.b16 %v1724
        %v2606 = vunpack.c.l.b16 %v1725
        %v2607 = vunpack.c.h.b16 %v1725
        %v2608 = vunpack.c.l.b16 %v1726
        %v2609 = vunpack.c.h.b16 %v1726
        %v2610 = vunpack.c.l.b16 %v1727
        %v2611 = vunpack.c.h.b16 %v1727
        %v2612 = vunpack.c.l.b16 %v1728
        %v2613 = vunpack.c.h.b16 %v1728
        %v2614 = vunpack.c.l.b16 %v1729
        %v2615 = vunpack.c.h.b16 %v1729
        %v2616 = vunpack.c.l.b16 %v1730
        %v2617 = vunpack.c.h.b16 %v1730
        %v2618 = vunpack.c.l.b16 %v1731
        %v2619 = vunpack.c.h.b16 %v1731
        %v2620 = vunpack.c.l.b16 %v1732
        %v2621 = vunpack.c.h.b16 %v1732
        %v2622 = vunpack.c.l.b16 %v1733
        %v2623 = vunpack.c.h.b16 %v1733
        %v2624 = vunpack.c.l.b16 %v1734
        %v2625 = vunpack.c.h.b16 %v1734
        %v2626 = vunpack.c.l.b16 %v1735
        %v2627 = vunpack.c.h.b16 %v1735
        %v2628 = vunpack.c.l.b16 %v1736
        %v2629 = vunpack.c.h.b16 %v1736
        %v2630 = vunpack.c.l.b16 %v1737
        %v2631 = vunpack.c.h.b16 %v1737
        %v2632 = vunpack.c.l.b16 %v1738
        %v2633 = vunpack.c.h.b16 %v1738
        %v2634 = vunpack.c.l.b16 %v1739
        %v2635 = vunpack.c.h.b16 %v1739
        %v2636 = vunpack.c.l.b16 %v1740
        %v2637 = vunpack.c.h.b16 %v1740
        %v2638 = vunpack.c.l.b16 %v1741
        %v2639 = vunpack.c.h.b16 %v1741
        %v2640 = vunpack.c.l.b16 %v1742
        %v2641 = vunpack.c.h.b16 %v1742
        %v2642 = vunpack.c.l.b16 %v1743
        %v2643 = vunpack.c.h.b16 %v1743
        %v2644 = vunpack.c.l.b16 %v1744
        %v2645 = vunpack.c.h.b16 %v1744
        %v2646 = vunpack.c.l.b16 %v1745
        %v2647 = vunpack.c.h.b16 %v1745
        %v2648 = vunpack.c.l.b16 %v1746
        %v2649 = vunpack.c.h.b16 %v1746
        %v2650 = vunpack.c.l.b16 %v1747
        %v2651 = vunpack.c.h.b16 %v1747
        %v2652 = vunpack.c.l.b16 %v1748
        %v2653 = vunpack.c.h.b16 %v1748
        %v2654 = vunpack.c.l.b16 %v1749
        %v2655 = vunpack.c.h.b16 %v1749
        %v2656 = vunpack.c.l.b16 %v1750
        %v2657 = vunpack.c.h.b16 %v1750
        %v2658 = vunpack.c.l.b16 %v1751
        %v2659 = vunpack.c.h.b16 %v1751
        %v2660 = vunpack.c.l.b16 %v1752
        %v2661 = vunpack.c.h.b16 %v1752
        %v2662 = vunpack.c.l.b16 %v1753
        %v2663 = vunpack.c.h.b16 %v1753
        %v2664 = vunpack.c.l.b16 %v1754
        %v2665 = vunpack.c.h.b16 %v1754
        %v2666 = vunpack.c.l.b16 %v1755
        %v2667 = vunpack.c.h.b16 %v1755
        %v2668 = vunpack.c.l.b16 %v1756
        %v2669 = vunpack.c.h.b16 %v1756
        %v2670 = vunpack.c.l.b16 %v1757
        %v2671 = vunpack.c.h.b16 %v1757
        %v2672 = vunpack.c.l.b16 %v1758
        %v2673 = vunpack.c.h.b16 %v1758
        %v2674 = vunpack.c.l.b16 %v1759
        %v2675 = vunpack.c.h.b16 %v1759
        %v2676 = vunpack.c.l.b16 %v1760
        %v2677 = vunpack.c.h.b16 %v1760
        %v2678 = vunpack.c.l.b16 %v1761
        %v2679 = vunpack.c.h.b16 %v1761
        %v2680 = vunpack.c.l.b16 %v1762
        %v2681 = vunpack.c.h.b16 %v1762
        %v2682 = vunpack.c.l.b16 %v1763
        %v2683 = vunpack.c.h.b16 %v1763
        %v2684 = vunpack.c.l.b16 %v1764
        %v2685 = vunpack.c.h.b16 %v1764
        %v2686 = vunpack.c.l.b16 %v1765
        %v2687 = vunpack.c.h.b16 %v1765
        %v2688 = vunpack.c.l.b16 %v1766
        %v2689 = vunpack.c.h.b16 %v1766
        %v2690 = vunpack.c.l.b16 %v1767
        %v2691 = vunpack.c.h.b16 %v1767
        %v2692 = vunpack.c.l.b16 %v1768
        %v2693 = vunpack.c.h.b16 %v1768
        %v2694 = vunpack.c.l.b16 %v1769
        %v2695 = vunpack.c.h.b16 %v1769
        %v2696 = vunpack.c.l.b16 %v1770
        %v2697 = vunpack.c.h.b16 %v1770
        %v2698 = vunpack.c.l.b16 %v1771
        %v2699 = vunpack.c.h.b16 %v1771
        %v2700 = vunpack.c.l.b16 %v1772
        %v2701 = vunpack.c.h.b16 %v1772
        %v2702 = vunpack.c.l.b16 %v1773
        %v2703 = vunpack.c.h.b16 %v1773
        %v2704 = vunpack.c.l.b16 %v1774
        %v2705 = vunpack.c.h.b16 %v1774
        %v2706 = vunpack.c.l.b16 %v1775
        %v2707 = vunpack.c.h.b16 %v1775
        %v2708 = vunpack.c.l.b16 %v1776
        %v2709 = vunpack.c.h.b16 %v1776
        %v2710 = vunpack.c.l.b16 %v1777
        %v2711 = vunpack.c.h.b16 %v1777
        %v2712 = vunpack.c.l.b16 %v1778
        %v2713 = vunpack.c.h.b16 %v1778
        %v2714 = vunpack.c.l.b16 %v1779
        %v2715 = vunpack.c.h.b16 %v1779
        %v2716 = vunpack.c.l.b16 %v1780
        %v2717 = vunpack.c.h.b16 %v1780
        %v2718 = vunpack.c.l.b16 %v1781
        %v2719 = vunpack.c.h.b16 %v1781
        %v2720 = vunpack.c.l.b16 %v1782
        %v2721 = vunpack.c.h.b16 %v1782
        %v2722 = vunpack.c.l.b16 %v1783
        %v2723 = vunpack.c.h.b16 %v1783
        %v2724 = vunpack.c.l.b16 %v1784
        %v2725 = vunpack.c.h.b16 %v1784
        %v2726 = vunpack.c.l.b16 %v1785
        %v2727 = vunpack.c.h.b16 %v1785
        %v2728 = vunpack.c.l.b16 %v1786
        %v2729 = vunpack.c.h.b16 %v1786
        %v2730 = vunpack.c.l.b16 %v1787
        %v2731 = vunpack.c.h.b16 %v1787
        %v2732 = vunpack.c.l.b16 %v1788
        %v2733 = vunpack.c.h.b16 %v1788
        %v2734 = vunpack.c.l.b16 %v1789
        %v2735 = vunpack.c.h.b16 %v1789
        %v2736 = vunpack.c.l.b16 %v1790
        %v2737 = vunpack.c.h.b16 %v1790
        %v2738 = vunpack.c.l.b16 %v1791
        %v2739 = vunpack.c.h.b16 %v1791
        %v2740 = vunpack.c.l.b16 %v1792
        %v2741 = vunpack.c.h.b16 %v1792
        %v2742 = vunpack.c.l.b16 %v1793
        %v2743 = vunpack.c.h.b16 %v1793
        %v2744 = vunpack.c.l.b16 %v1794
        %v2745 = vunpack.c.h.b16 %v1794
        %v2746 = vunpack.c.l.b16 %v1795
        %v2747 = vunpack.c.h.b16 %v1795
        %v2748 = vunpack.c.l.b16 %v1796
        %v2749 = vunpack.c.h.b16 %v1796
        %v2750 = vunpack.c.l.b16 %v1797
        %v2751 = vunpack.c.h.b16 %v1797
        %v2752 = vunpack.c.l.b16 %v1798
        %v2753 = vunpack.c.h.b16 %v1798
        %v2754 = vunpack.c.l.b16 %v1799
        %v2755 = vunpack.c.h.b16 %v1799
        %v2756 = vunpack.c.l.b16 %v1800
        %v2757 = vunpack.c.h.b16 %v1800
        %v2758 = vunpack.c.l.b16 %v1801
        %v2759 = vunpack.c.h.b16 %v1801
        %v2760 = vunpack.c.l.b16 %v1802
        %v2761 = vunpack.c.h.b16 %v1802
        %v2762 = vunpack.c.l.b16 %v1803
        %v2763 = vunpack.c.h.b16 %v1803
        %v2764 = vunpack.c.l.b16 %v1804
        %v2765 = vunpack.c.h.b16 %v1804
        %v2766 = vunpack.c.l.b16 %v1805
        %v2767 = vunpack.c.h.b16 %v1805
        %v2768 = vunpack.c.l.b16 %v1806
        %v2769 = vunpack.c.h.b16 %v1806
        %v2770 = vunpack.c.l.b16 %v1807
        %v2771 = vunpack.c.h.b16 %v1807
        %v2772 = vunpack.c.l.b16 %v1808
        %v2773 = vunpack.c.h.b16 %v1808
        %v2774 = vunpack.c.l.b16 %v1809
        %v2775 = vunpack.c.h.b16 %v1809
        %v2776 = vunpack.c.l.b16 %v1810
        %v2777 = vunpack.c.h.b16 %v1810
        %v2778 = vunpack.c.l.b16 %v1811
        %v2779 = vunpack.c.h.b16 %v1811
        %v2780 = vunpack.c.l.b16 %v1812
        %v2781 = vunpack.c.h.b16 %v1812
        %v2782 = vunpack.c.l.b16 %v1813
        %v2783 = vunpack.c.h.b16 %v1813
        %v2784 = vunpack.c.l.b16 %v1814
        %v2785 = vunpack.c.h.b16 %v1814
        %v2786 = vunpack.c.l.b16 %v1815
        %v2787 = vunpack.c.h.b16 %v1815
        %v2788 = vunpack.c.l.b16 %v1816
        %v2789 = vunpack.c.h.b16 %v1816
        %v2790 = vunpack.c.l.b16 %v1817
        %v2791 = vunpack.c.h.b16 %v1817
        %v2792 = vunpack.c.l.b16 %v1818
        %v2793 = vunpack.c.h.b16 %v1818
        %v2794 = vunpack.c.l.b16 %v1819
        %v2795 = vunpack.c.h.b16 %v1819
        %v2796 = vunpack.c.l.b16 %v1820
        %v2797 = vunpack.c.h.b16 %v1820
        %v2798 = vunpack.c.l.b16 %v1821
        %v2799 = vunpack.c.h.b16 %v1821
        %v2800 = vunpack.c.l.b16 %v1822
        %v2801 = vunpack.c.h.b16 %v1822
        %v2802 = vunpack.c.l.b16 %v1823
        %v2803 = vunpack.c.h.b16 %v1823
        %v2804 = vunpack.c.l.b16 %v1824
        %v2805 = vunpack.c.h.b16 %v1824
        %v2806 = vunpack.c.l.b16 %v1825
        %v2807 = vunpack.c.h.b16 %v1825
        %v2808 = vunpack.c.l.b16 %v1826
        %v2809 = vunpack.c.h.b16 %v1826
        %v2810 = vunpack.c.l.b16 %v1827
        %v2811 = vunpack.c.h.b16 %v1827
        %v2812 = vunpack.c.l.b16 %v1828
        %v2813 = vunpack.c.h.b16 %v1828
        %v2814 = vunpack.c.l.b16 %v1829
        %v2815 = vunpack.c.h.b16 %v1829
        %v2816 = vunpack.c.l.b16 %v1830
        %v2817 = vunpack.c.h.b16 %v1830
        %v2818 = vunpack.c.l.b16 %v1831
        %v2819 = vunpack.c.h.b16 %v1831
        %v2820 = vunpack.c.l.b16 %v1832
        %v2821 = vunpack.c.h.b16 %v1832
        %v2822 = vunpack.c.l.b16 %v1833
        %v2823 = vunpack.c.h.b16 %v1833
        %v2824 = vunpack.c.l.b16 %v1834
        %v2825 = vunpack.c.h.b16 %v1834
        %v2826 = vunpack.c.l.b16 %v1835
        %v2827 = vunpack.c.h.b16 %v1835
        %v2828 = vunpack.c.l.b16 %v1836
        %v2829 = vunpack.c.h.b16 %v1836
        %v2830 = vunpack.c.l.b16 %v1837
        %v2831 = vunpack.c.h.b16 %v1837
        %v2832 = vunpack.c.l.b16 %v1838
        %v2833 = vunpack.c.h.b16 %v1838
        %v2834 = vunpack.c.l.b16 %v1839
        %v2835 = vunpack.c.h.b16 %v1839
        %v2836 = vunpack.c.l.b16 %v1840
        %v2837 = vunpack.c.h.b16 %v1840
        %v2838 = vunpack.c.l.b16 %v1841
        %v2839 = vunpack.c.h.b16 %v1841
        %v2840 = vunpack.c.l.b16 %v1842
        %v2841 = vunpack.c.h.b16 %v1842
        %v2842 = vunpack.c.l.b16 %v1843
        %v2843 = vunpack.c.h.b16 %v1843
        %v2844 = vunpack.c.l.b16 %v1844
        %v2845 = vunpack.c.h.b16 %v1844
        %v2846 = vunpack.c.l.b16 %v1845
        %v2847 = vunpack.c.h.b16 %v1845
        %v2848 = vunpack.c.l.b16 %v1846
        %v2849 = vunpack.c.h.b16 %v1846
        %v2850 = vunpack.c.l.b16 %v1847
        %v2851 = vunpack.c.h.b16 %v1847
        %v2852 = vunpack.c.l.b16 %v1848
        %v2853 = vunpack.c.h.b16 %v1848
        %v2854 = vunpack.c.l.b16 %v1849
        %v2855 = vunpack.c.h.b16 %v1849
        %v2856 = vunpack.c.l.b16 %v1850
        %v2857 = vunpack.c.h.b16 %v1850
        %v2858 = vunpack.c.l.b16 %v1851
        %v2859 = vunpack.c.h.b16 %v1851
        %v2860 = vunpack.c.l.b16 %v1852
        %v2861 = vunpack.c.h.b16 %v1852
        %v2862 = vunpack.c.l.b16 %v1853
        %v2863 = vunpack.c.h.b16 %v1853
        %v2864 = vunpack.c.l.b16 %v1854
        %v2865 = vunpack.c.h.b16 %v1854
        %v2866 = vunpack.c.l.b16 %v1855
        %v2867 = vunpack.c.h.b16 %v1855
        %v2868 = vunpack.c.l.b16 %v1856
        %v2869 = vunpack.c.h.b16 %v1856
        %v2870 = vunpack.c.l.b16 %v1857
        %v2871 = vunpack.c.h.b16 %v1857
        %v2872 = vunpack.c.l.b16 %v1858
        %v2873 = vunpack.c.h.b16 %v1858
        %v2874 = vunpack.c.l.b16 %v1859
        %v2875 = vunpack.c.h.b16 %v1859
        %v2876 = vunpack.c.l.b16 %v1860
        %v2877 = vunpack.c.h.b16 %v1860
        %v2878 = vunpack.c.l.b16 %v1861
        %v2879 = vunpack.c.h.b16 %v1861
        %v2880 = vunpack.c.l.b16 %v1862
        %v2881 = vunpack.c.h.b16 %v1862
        %v2882 = vunpack.c.l.b16 %v1863
        %v2883 = vunpack.c.h.b16 %v1863
        %v2884 = vunpack.c.l.b16 %v1864
        %v2885 = vunpack.c.h.b16 %v1864
        %v2886 = vunpack.c.l.b16 %v1865
        %v2887 = vunpack.c.h.b16 %v1865
        %v2888 = vunpack.c.l.b16 %v1866
        %v2889 = vunpack.c.h.b16 %v1866
        %v2890 = vunpack.c.l.b16 %v1867
        %v2891 = vunpack.c.h.b16 %v1867
        %v2892 = vunpack.c.l.b16 %v1868
        %v2893 = vunpack.c.h.b16 %v1868
        %v2894 = vunpack.c.l.b16 %v1869
        %v2895 = vunpack.c.h.b16 %v1869
        %v2896 = vunpack.c.l.b16 %v1870
        %v2897 = vunpack.c.h.b16 %v1870
        %v2898 = vunpack.c.l.b16 %v1871
        %v2899 = vunpack.c.h.b16 %v1871
        %v2900 = vunpack.c.l.b16 %v1872
        %v2901 = vunpack.c.h.b16 %v1872
        %v2902 = vunpack.c.l.b16 %v1873
        %v2903 = vunpack.c.h.b16 %v1873
        %v2904 = vunpack.c.l.b16 %v1874
        %v2905 = vunpack.c.h.b16 %v1874
        %v2906 = vunpack.c.l.b16 %v1875
        %v2907 = vunpack.c.h.b16 %v1875
        %v2908 = vunpack.c.l.b16 %v1876
        %v2909 = vunpack.c.h.b16 %v1876
        %v2910 = vunpack.c.l.b16 %v1877
        %v2911 = vunpack.c.h.b16 %v1877
        %v2912 = vunpack.c.l.b16 %v1878
        %v2913 = vunpack.c.h.b16 %v1878
        %v2914 = vunpack.c.l.b16 %v1879
        %v2915 = vunpack.c.h.b16 %v1879
        %v2916 = vunpack.c.l.b16 %v1880
        %v2917 = vunpack.c.h.b16 %v1880
        %v2918 = vunpack.c.l.b16 %v1881
        %v2919 = vunpack.c.h.b16 %v1881
        %v2920 = vunpack.c.l.b16 %v1882
        %v2921 = vunpack.c.h.b16 %v1882
        %v2922 = vunpack.c.l.b16 %v1883
        %v2923 = vunpack.c.h.b16 %v1883
        %v2924 = vunpack.c.l.b16 %v1884
        %v2925 = vunpack.c.h.b16 %v1884
        %v2926 = vunpack.c.l.b16 %v1885
        %v2927 = vunpack.c.h.b16 %v1885
        %v2928 = vunpack.c.l.b16 %v1886
        %v2929 = vunpack.c.h.b16 %v1886
        %v2930 = vunpack.c.l.b16 %v1887
        %v2931 = vunpack.c.h.b16 %v1887
        %v2932 = vunpack.c.l.b16 %v1888
        %v2933 = vunpack.c.h.b16 %v1888
        %v2934 = vunpack.c.l.b16 %v1889
        %v2935 = vunpack.c.h.b16 %v1889
        %v2936 = vunpack.c.l.b16 %v1890
        %v2937 = vunpack.c.h.b16 %v1890
        %v2938 = vunpack.c.l.b16 %v1891
        %v2939 = vunpack.c.h.b16 %v1891
        %v2940 = vunpack.c.l.b16 %v1892
        %v2941 = vunpack.c.h.b16 %v1892
        %v2942 = vunpack.c.l.b16 %v1893
        %v2943 = vunpack.c.h.b16 %v1893
        %v2944 = vunpack.c.l.b16 %v1894
        %v2945 = vunpack.c.h.b16 %v1894
        %v2946 = vunpack.c.l.b16 %v1895
        %v2947 = vunpack.c.h.b16 %v1895
        %v2948 = vunpack.c.l.b16 %v1896
        %v2949 = vunpack.c.h.b16 %v1896
        %v2950 = vunpack.c.l.b16 %v1897
        %v2951 = vunpack.c.h.b16 %v1897
        %v2952 = vunpack.c.l.b16 %v1898
        %v2953 = vunpack.c.h.b16 %v1898
        %v2954 = vunpack.c.l.b16 %v1899
        %v2955 = vunpack.c.h.b16 %v1899
        %v2956 = vunpack.c.l.b16 %v1900
        %v2957 = vunpack.c.h.b16 %v1900
        %v2958 = vunpack.c.l.b16 %v1901
        %v2959 = vunpack.c.h.b16 %v1901
        %v2960 = vunpack.c.l.b16 %v1902
        %v2961 = vunpack.c.h.b16 %v1902
        %v2962 = vunpack.c.l.b16 %v1903
        %v2963 = vunpack.c.h.b16 %v1903
        %v2964 = vunpack.c.l.b16 %v1904
        %v2965 = vunpack.c.h.b16 %v1904
        %v2966 = vunpack.c.l.b16 %v1905
        %v2967 = vunpack.c.h.b16 %v1905
        %v2968 = vunpack.c.l.b16 %v1906
        %v2969 = vunpack.c.h.b16 %v1906
        %v2970 = vunpack.c.l.b16 %v1907
        %v2971 = vunpack.c.h.b16 %v1907
        %v2972 = vunpack.c.l.b16 %v1908
        %v2973 = vunpack.c.h.b16 %v1908
        %v2974 = vunpack.c.l.b16 %v1909
        %v2975 = vunpack.c.h.b16 %v1909
        %v2976 = vunpack.c.l.b16 %v1910
        %v2977 = vunpack.c.h.b16 %v1910
        %v2978 = vunpack.c.l.b16 %v1911
        %v2979 = vunpack.c.h.b16 %v1911
        %v2980 = vunpack.c.l.b16 %v1912
        %v2981 = vunpack.c.h.b16 %v1912
        %v2982 = vunpack.c.l.b16 %v1913
        %v2983 = vunpack.c.h.b16 %v1913
        %v2984 = vunpack.c.l.b16 %v1914
        %v2985 = vunpack.c.h.b16 %v1914
        %v2986 = vunpack.c.l.b16 %v1915
        %v2987 = vunpack.c.h.b16 %v1915
        %v2988 = vunpack.c.l.b16 %v1916
        %v2989 = vunpack.c.h.b16 %v1916
        %v2990 = vunpack.c.l.b16 %v1917
        %v2991 = vunpack.c.h.b16 %v1917
        %v2992 = vunpack.c.l.b16 %v1918
        %v2993 = vunpack.c.h.b16 %v1918
        %v2994 = vunpack.c.l.b16 %v1919
        %v2995 = vunpack.c.h.b16 %v1919
        %v2996 = vunpack.c.l.b16 %v1920
        %v2997 = vunpack.c.h.b16 %v1920
        %v2998 = vunpack.c.l.b16 %v1921
        %v2999 = vunpack.c.h.b16 %v1921
        %v3000 = vunpack.c.l.b16 %v1922
        %v3001 = vunpack.c.h.b16 %v1922
        %v3002 = vunpack.c.l.b16 %v1923
        %v3003 = vunpack.c.h.b16 %v1923
        %v3004 = vunpack.c.l.b16 %v1924
        %v3005 = vunpack.c.h.b16 %v1924
        %v3006 = vunpack.c.l.b16 %v1925
        %v3007 = vunpack.c.h.b16 %v1925
        %v3008 = vunpack.c.l.b16 %v1926
        %v3009 = vunpack.c.h.b16 %v1926
        %v3010 = vunpack.c.l.b16 %v1927
        %v3011 = vunpack.c.h.b16 %v1927
        %v3012 = vunpack.c.l.b16 %v1928
        %v3013 = vunpack.c.h.b16 %v1928
        %v3014 = vunpack.c.l.b16 %v1929
        %v3015 = vunpack.c.h.b16 %v1929
        %v3016 = vunpack.c.l.b16 %v1930
        %v3017 = vunpack.c.h.b16 %v1930
        %v3018 = vunpack.c.l.b16 %v1931
        %v3019 = vunpack.c.h.b16 %v1931
        %v3020 = vunpack.c.l.b16 %v1932
        %v3021 = vunpack.c.h.b16 %v1932
        %v3022 = vunpack.c.l.b16 %v1933
        %v3023 = vunpack.c.h.b16 %v1933
        %v3024 = vunpack.c.l.b16 %v1934
        %v3025 = vunpack.c.h.b16 %v1934
        %v3026 = vunpack.c.l.b16 %v1935
        %v3027 = vunpack.c.h.b16 %v1935
        %v3028 = vunpack.c.l.b16 %v1936
        %v3029 = vunpack.c.h.b16 %v1936
        %v3030 = vunpack.c.l.b16 %v1937
        %v3031 = vunpack.c.h.b16 %v1937
        %v3032 = vunpack.c.l.b16 %v1938
        %v3033 = vunpack.c.h.b16 %v1938
        %v3034 = vunpack.c.l.b16 %v1939
        %v3035 = vunpack.c.h.b16 %v1939
        %v3036 = vunpack.c.l.b16 %v1940
        %v3037 = vunpack.c.h.b16 %v1940
        %v3038 = vunpack.c.l.b16 %v1941
        %v3039 = vunpack.c.h.b16 %v1941
        %v3040 = vunpack.c.l.b16 %v1942
        %v3041 = vunpack.c.h.b16 %v1942
        %v3042 = vunpack.c.l.b16 %v1943
        %v3043 = vunpack.c.h.b16 %v1943
        %v3044 = vunpack.c.l.b16 %v1944
        %v3045 = vunpack.c.h.b16 %v1944
        %v3046 = vunpack.c.l.b16 %v1945
        %v3047 = vunpack.c.h.b16 %v1945
        %v3048 = vunpack.c.l.b16 %v1946
        %v3049 = vunpack.c.h.b16 %v1946
        %v3050 = vunpack.c.l.b16 %v1947
        %v3051 = vunpack.c.h.b16 %v1947
        %v3052 = vunpack.c.l.b16 %v1948
        %v3053 = vunpack.c.h.b16 %v1948
        %v3054 = vunpack.c.l.b16 %v1949
        %v3055 = vunpack.c.h.b16 %v1949
        %v3056 = vunpack.c.l.b16 %v1950
        %v3057 = vunpack.c.h.b16 %v1950
        %v3058 = vunpack.c.l.b16 %v1951
        %v3059 = vunpack.c.h.b16 %v1951
        %v3060 = vunpack.c.l.b16 %v1952
        %v3061 = vunpack.c.h.b16 %v1952
        %v3062 = vunpack.c.l.b16 %v1953
        %v3063 = vunpack.c.h.b16 %v1953
        %v3064 = vunpack.c.l.b16 %v1954
        %v3065 = vunpack.c.h.b16 %v1954
        %v3066 = vunpack.c.l.b16 %v1955
        %v3067 = vunpack.c.h.b16 %v1955
        %v3068 = vunpack.c.l.b16 %v1956
        %v3069 = vunpack.c.h.b16 %v1956
        %v3070 = vunpack.c.l.b16 %v1957
        %v3071 = vunpack.c.h.b16 %v1957
        %v3072 = vunpack.c.l.b16 %v1958
        %v3073 = vunpack.c.h.b16 %v1958
        %v3074 = vunpack.c.l.b16 %v1959
        %v3075 = vunpack.c.h.b16 %v1959
        %v3076 = vunpack.c.l.b16 %v1960
        %v3077 = vunpack.c.h.b16 %v1960
        %v3078 = vunpack.c.l.b16 %v1961
        %v3079 = vunpack.c.h.b16 %v1961
        %v3080 = vunpack.c.l.b16 %v1962
        %v3081 = vunpack.c.h.b16 %v1962
        %v3082 = vunpack.c.l.b16 %v1963
        %v3083 = vunpack.c.h.b16 %v1963
        %v3084 = vunpack.c.l.b16 %v1964
        %v3085 = vunpack.c.h.b16 %v1964
        %v3086 = vunpack.c.l.b16 %v1965
        %v3087 = vunpack.c.h.b16 %v1965
        %v3088 = vunpack.c.l.b16 %v1966
        %v3089 = vunpack.c.h.b16 %v1966
        %v3090 = vunpack.c.l.b16 %v1967
        %v3091 = vunpack.c.h.b16 %v1967
        %v3092 = vunpack.c.l.b16 %v1968
        %v3093 = vunpack.c.h.b16 %v1968
        %v3094 = vunpack.c.l.b16 %v1969
        %v3095 = vunpack.c.h.b16 %v1969
        %v3096 = vunpack.c.l.b16 %v1970
        %v3097 = vunpack.c.h.b16 %v1970
        %v3098 = vunpack.c.l.b16 %v1971
        %v3099 = vunpack.c.h.b16 %v1971
        %v3100 = vunpack.c.l.b16 %v1972
        %v3101 = vunpack.c.h.b16 %v1972
        %v3102 = vunpack.c.l.b16 %v1973
        %v3103 = vunpack.c.h.b16 %v1973
        %v3104 = vunpack.c.l.b16 %v1974
        %v3105 = vunpack.c.h.b16 %v1974
        %v3106 = vunpack.c.l.b16 %v1975
        %v3107 = vunpack.c.h.b16 %v1975
        %v3108 = vunpack.c.l.b16 %v1976
        %v3109 = vunpack.c.h.b16 %v1976
        %v3110 = vunpack.c.l.b16 %v1977
        %v3111 = vunpack.c.h.b16 %v1977
        %v3112 = vunpack.c.l.b16 %v1978
        %v3113 = vunpack.c.h.b16 %v1978
        %v3114 = vunpack.c.l.b16 %v1979
        %v3115 = vunpack.c.h.b16 %v1979
        %v3116 = vunpack.c.l.b16 %v1980
        %v3117 = vunpack.c.h.b16 %v1980
        %v3118 = vunpack.c.l.b16 %v1981
        %v3119 = vunpack.c.h.b16 %v1981
        %v3120 = vunpack.c.l.b16 %v1982
        %v3121 = vunpack.c.h.b16 %v1982
        %v3122 = vunpack.c.l.b16 %v1983
        %v3123 = vunpack.c.h.b16 %v1983
        %v3124 = vunpack.c.l.b16 %v1984
        %v3125 = vunpack.c.h.b16 %v1984
        %v3126 = vunpack.c.l.b16 %v1985
        %v3127 = vunpack.c.h.b16 %v1985
        %v3128 = vunpack.c.l.b16 %v1986
        %v3129 = vunpack.c.h.b16 %v1986
        %v3130 = vunpack.c.l.b16 %v1987
        %v3131 = vunpack.c.h.b16 %v1987
        %v3132 = vunpack.c.l.b16 %v1988
        %v3133 = vunpack.c.h.b16 %v1988
        %v3134 = vunpack.c.l.b16 %v1989
        %v3135 = vunpack.c.h.b16 %v1989
        %v3136 = vunpack.c.l.b16 %v1990
        %v3137 = vunpack.c.h.b16 %v1990
        %v3138 = vunpack.c.l.b16 %v1991
        %v3139 = vunpack.c.h.b16 %v1991
        %v3140 = vunpack.c.l.b16 %v1992
        %v3141 = vunpack.c.h.b16 %v1992
        %v3142 = vunpack.c.l.b16 %v1993
        %v3143 = vunpack.c.h.b16 %v1993
        %v3144 = vunpack.c.l.b16 %v1994
        %v3145 = vunpack.c.h.b16 %v1994
        %v3146 = vunpack.c.l.b16 %v1995
        %v3147 = vunpack.c.h.b16 %v1995
        %v3148 = vunpack.c.l.b16 %v1996
        %v3149 = vunpack.c.h.b16 %v1996
        %v3150 = vunpack.c.l.b16 %v1997
        %v3151 = vunpack.c.h.b16 %v1997
        %v3152 = vunpack.c.l.b16 %v1998
        %v3153 = vunpack.c.h.b16 %v1998
        %v3154 = vunpack.c.l.b16 %v1999
        %v3155 = vunpack.c.h.b16 %v1999
        %v3156 = vunpack.c.l.b16 %v2000
        %v3157 = vunpack.c.h.b16 %v2000
        %v3158 = vunpack.c.l.b16 %v2001
        %v3159 = vunpack.c.h.b16 %v2001
        %v3160 = vunpack.c.l.b16 %v2002
        %v3161 = vunpack.c.h.b16 %v2002
        %v3162 = vunpack.c.l.b16 %v2003
        %v3163 = vunpack.c.h.b16 %v2003
        %v3164 = vunpack.c.l.b16 %v2004
        %v3165 = vunpack.c.h.b16 %v2004
        %v3166 = vunpack.c.l.b16 %v2005
        %v3167 = vunpack.c.h.b16 %v2005
        %v3168 = vunpack.c.l.b16 %v2006
        %v3169 = vunpack.c.h.b16 %v2006
        %v3170 = vunpack.c.l.b16 %v2007
        %v3171 = vunpack.c.h.b16 %v2007
        %v3172 = vunpack.c.l.b16 %v2008
        %v3173 = vunpack.c.h.b16 %v2008
        %v3174 = vunpack.c.l.b16 %v2009
        %v3175 = vunpack.c.h.b16 %v2009
        %v3176 = vunpack.c.l.b16 %v2010
        %v3177 = vunpack.c.h.b16 %v2010
        %v3178 = vunpack.c.l.b16 %v2011
        %v3179 = vunpack.c.h.b16 %v2011
        %v3180 = vunpack.c.l.b16 %v2012
        %v3181 = vunpack.c.h.b16 %v2012
        %v3182 = vunpack.c.l.b16 %v2013
        %v3183 = vunpack.c.h.b16 %v2013
        %v3184 = vunpack.c.l.b16 %v2014
        %v3185 = vunpack.c.h.b16 %v2014
        %v3186 = vunpack.c.l.b16 %v2015
        %v3187 = vunpack.c.h.b16 %v2015
        %v3188 = vunpack.c.l.b16 %v2016
        %v3189 = vunpack.c.h.b16 %v2016
        %v3190 = vunpack.c.l.b16 %v2017
        %v3191 = vunpack.c.h.b16 %v2017
        %v3192 = vunpack.c.l.b16 %v2018
        %v3193 = vunpack.c.h.b16 %v2018
        %v3194 = vunpack.c.l.b16 %v2019
        %v3195 = vunpack.c.h.b16 %v2019
        %v3196 = vunpack.c.l.b16 %v2020
        %v3197 = vunpack.c.h.b16 %v2020
        %v3198 = vunpack.c.l.b16 %v2021
        %v3199 = vunpack.c.h.b16 %v2021
        %v3200 = vunpack.c.l.b16 %v2022
        %v3201 = vunpack.c.h.b16 %v2022
        %v3202 = vunpack.c.l.b16 %v2023
        %v3203 = vunpack.c.h.b16 %v2023
        %v3204 = vunpack.c.l.b16 %v2024
        %v3205 = vunpack.c.h.b16 %v2024
        %v3206 = vunpack.c.l.b16 %v2025
        %v3207 = vunpack.c.h.b16 %v2025
        %v3208 = vunpack.c.l.b16 %v2026
        %v3209 = vunpack.c.h.b16 %v2026
        %v3210 = vunpack.c.l.b16 %v2027
        %v3211 = vunpack.c.h.b16 %v2027
        %v3212 = vunpack.c.l.b16 %v2028
        %v3213 = vunpack.c.h.b16 %v2028
        %v3214 = vunpack.c.l.b16 %v2029
        %v3215 = vunpack.c.h.b16 %v2029
        %v3216 = vunpack.c.l.b16 %v2030
        %v3217 = vunpack.c.h.b16 %v2030
        %v3218 = vunpack.c.l.b16 %v2031
        %v3219 = vunpack.c.h.b16 %v2031
        %v3220 = vunpack.c.l.b16 %v2032
        %v3221 = vunpack.c.h.b16 %v2032
        %v3222 = vunpack.c.l.b16 %v2033
        %v3223 = vunpack.c.h.b16 %v2033
        %v3224 = vunpack.c.l.b16 %v2034
        %v3225 = vunpack.c.h.b16 %v2034
        %v3226 = vunpack.c.l.b16 %v2035
        %v3227 = vunpack.c.h.b16 %v2035
        %v3228 = vunpack.c.l.b16 %v2036
        %v3229 = vunpack.c.h.b16 %v2036
        %v3230 = vunpack.c.l.b16 %v2037
        %v3231 = vunpack.c.h.b16 %v2037
        %v3232 = vunpack.c.l.b16 %v2038
        %v3233 = vunpack.c.h.b16 %v2038
        %v3234 = vunpack.c.l.b16 %v2039
        %v3235 = vunpack.c.h.b16 %v2039
        %v3236 = vunpack.c.l.b16 %v2040
        %v3237 = vunpack.c.h.b16 %v2040
        %v3238 = vunpack.c.l.b16 %v2041
        %v3239 = vunpack.c.h.b16 %v2041
        %v3240 = vunpack.c.l.b16 %v2042
        %v3241 = vunpack.c.h.b16 %v2042
        %v3242 = vunpack.c.l.b16 %v2043
        %v3243 = vunpack.c.h.b16 %v2043
        %v3244 = vunpack.c.l.b16 %v2044
        %v3245 = vunpack.c.h.b16 %v2044
        %v3246 = vunpack.c.l.b16 %v2045
        %v3247 = vunpack.c.h.b16 %v2045
        %v3248 = vunpack.c.l.b16 %v2046
        %v3249 = vunpack.c.h.b16 %v2046
        %v3250 = vunpack.c.l.b16 %v2047
        %v3251 = vunpack.c.h.b16 %v2047
        %v3252 = vunpack.c.l.b16 %v2048
        %v3253 = vunpack.c.h.b16 %v2048
        %v3254 = vunpack.c.l.b16 %v2049
        %v3255 = vunpack.c.h.b16 %v2049
        %v3256 = vunpack.c.l.b16 %v2050
        %v3257 = vunpack.c.h.b16 %v2050
        %v3258 = vunpack.c.l.b16 %v2051
        %v3259 = vunpack.c.h.b16 %v2051
        %v3260 = vunpack.c.l.b16 %v2052
        %v3261 = vunpack.c.h.b16 %v2052
        %v3262 = vunpack.c.l.b16 %v2053
        %v3263 = vunpack.c.h.b16 %v2053
        %v3264 = vunpack.c.l.b16 %v2054
        %v3265 = vunpack.c.h.b16 %v2054
        %v3266 = vunpack.c.l.b16 %v2055
        %v3267 = vunpack.c.h.b16 %v2055
        %v3268 = vunpack.c.l.b16 %v2056
        %v3269 = vunpack.c.h.b16 %v2056
        %v3270 = vunpack.c.l.b16 %v2057
        %v3271 = vunpack.c.h.b16 %v2057
        %v3272 = vunpack.c.l.b16 %v2058
        %v3273 = vunpack.c.h.b16 %v2058
        %v3274 = vunpack.c.l.b16 %v2059
        %v3275 = vunpack.c.h.b16 %v2059
        %v3276 = vunpack.c.l.b16 %v2060
        %v3277 = vunpack.c.h.b16 %v2060
        %v3278 = vunpack.c.l.b16 %v2061
        %v3279 = vunpack.c.h.b16 %v2061
        %v3280 = vunpack.c.l.b16 %v2062
        %v3281 = vunpack.c.h.b16 %v2062
        %v3282 = vunpack.c.l.b16 %v2063
        %v3283 = vunpack.c.h.b16 %v2063
        %v3284 = vunpack.c.l.b16 %v2064
        %v3285 = vunpack.c.h.b16 %v2064
        %v3286 = vunpack.c.l.b16 %v2065
        %v3287 = vunpack.c.h.b16 %v2065
        %v3288 = vunpack.c.l.b16 %v2066
        %v3289 = vunpack.c.h.b16 %v2066
        %v3290 = vunpack.c.l.b16 %v2067
        %v3291 = vunpack.c.h.b16 %v2067
        %v3292 = vunpack.c.l.b16 %v2068
        %v3293 = vunpack.c.h.b16 %v2068
        %v3294 = vunpack.c.l.b16 %v2069
        %v3295 = vunpack.c.h.b16 %v2069
        %v3296 = vunpack.c.l.b16 %v2070
        %v3297 = vunpack.c.h.b16 %v2070
        %v3298 = vunpack.c.l.b16 %v2071
        %v3299 = vunpack.c.h.b16 %v2071
        %v3300 = vunpack.c.l.b16 %v2072
        %v3301 = vunpack.c.h.b16 %v2072
        %v3302 = vunpack.c.l.b16 %v2073
        %v3303 = vunpack.c.h.b16 %v2073
        %v3304 = vunpack.c.l.b16 %v2074
        %v3305 = vunpack.c.h.b16 %v2074
        %v3306 = vunpack.c.l.b16 %v2075
        %v3307 = vunpack.c.h.b16 %v2075
        %v3308 = vunpack.c.l.b16 %v2076
        %v3309 = vunpack.c.h.b16 %v2076
        %v3310 = vunpack.c.l.b16 %v2077
        %v3311 = vunpack.c.h.b16 %v2077
        %v3312 = vunpack.c.l.b16 %v2078
        %v3313 = vunpack.c.h.b16 %v2078
        %v3314 = vunpack.c.l.b16 %v2079
        %v3315 = vunpack.c.h.b16 %v2079
        %v3316 = vunpack.c.l.b16 %v2080
        %v3317 = vunpack.c.h.b16 %v2080
        %v3318 = vunpack.c.l.b16 %v2081
        %v3319 = vunpack.c.h.b16 %v2081
        %v3320 = vunpack.c.l.b16 %v2082
        %v3321 = vunpack.c.h.b16 %v2082
        %v3322 = vunpack.c.l.b16 %v2083
        %v3323 = vunpack.c.h.b16 %v2083
        %v3324 = vunpack.c.l.b16 %v2084
        %v3325 = vunpack.c.h.b16 %v2084
        %v3326 = vunpack.c.l.b16 %v2085
        %v3327 = vunpack.c.h.b16 %v2085
        %v3328 = vunpack.c.l.b16 %v2086
        %v3329 = vunpack.c.h.b16 %v2086
        %v3330 = vunpack.c.l.b16 %v2087
        %v3331 = vunpack.c.h.b16 %v2087
        %v3332 = vunpack.c.l.b16 %v2088
        %v3333 = vunpack.c.h.b16 %v2088
        %v3334 = vunpack.c.l.b16 %v2089
        %v3335 = vunpack.c.h.b16 %v2089
        %v3336 = vunpack.c.l.b16 %v2090
        %v3337 = vunpack.c.h.b16 %v2090
        %v3338 = vunpack.c.l.b16 %v2091
        %v3339 = vunpack.c.h.b16 %v2091
        %v3340 = vunpack.c.l.b16 %v2092
        %v3341 = vunpack.c.h.b16 %v2092
        %v3342 = vunpack.c.l.b16 %v2093
        %v3343 = vunpack.c.h.b16 %v2093
        %v3344 = vunpack.c.l.b16 %v2094
        %v3345 = vunpack.c.h.b16 %v2094
        %v3346 = vunpack.c.l.b16 %v2095
        %v3347 = vunpack.c.h.b16 %v2095
        %v3348 = vunpack.c.l.b16 %v2096
        %v3349 = vunpack.c.h.b16 %v2096
        %v3350 = vunpack.c.l.b16 %v2097
        %v3351 = vunpack.c.h.b16 %v2097
        %v3352 = vunpack.c.l.b16 %v2098
        %v3353 = vunpack.c.h.b16 %v2098
        %v3354 = vunpack.c.l.b16 %v2099
        %v3355 = vunpack.c.h.b16 %v2099
        %v3356 = vunpack.c.l.b16 %v2100
        %v3357 = vunpack.c.h.b16 %v2100
        %v3358 = vunpack.c.l.b16 %v2101
        %v3359 = vunpack.c.h.b16 %v2101
        %v3360 = vunpack.c.l.b16 %v2102
        %v3361 = vunpack.c.h.b16 %v2102
        %v3362 = vunpack.c.l.b16 %v2103
        %v3363 = vunpack.c.h.b16 %v2103
        %v3364 = vunpack.c.l.b16 %v2104
        %v3365 = vunpack.c.h.b16 %v2104
        %v3366 = vunpack.c.l.b16 %v2105
        %v3367 = vunpack.c.h.b16 %v2105
        %v3368 = vunpack.c.l.b16 %v2106
        %v3369 = vunpack.c.h.b16 %v2106
        %v3370 = vunpack.c.l.b16 %v2107
        %v3371 = vunpack.c.h.b16 %v2107
        %v3372 = vunpack.c.l.b16 %v2108
        %v3373 = vunpack.c.h.b16 %v2108
        %v3374 = vunpack.c.l.b16 %v2109
        %v3375 = vunpack.c.h.b16 %v2109
        %v3376 = vunpack.c.l.b16 %v2110
        %v3377 = vunpack.c.h.b16 %v2110
        %v3378 = vunpack.c.l.b16 %v2111
        %v3379 = vunpack.c.h.b16 %v2111
        %v3380 = vunpack.c.l.b16 %v2112
        %v3381 = vunpack.c.h.b16 %v2112
        %v3382 = vunpack.c.l.b16 %v2113
        %v3383 = vunpack.c.h.b16 %v2113
        %v3384 = vunpack.c.l.b16 %v2114
        %v3385 = vunpack.c.h.b16 %v2114
        %v3386 = vunpack.c.l.b16 %v2115
        %v3387 = vunpack.c.h.b16 %v2115
        %v3388 = vunpack.c.l.b16 %v2116
        %v3389 = vunpack.c.h.b16 %v2116
        %v3390 = vunpack.c.l.b16 %v2117
        %v3391 = vunpack.c.h.b16 %v2117
        %v3392 = vunpack.c.l.b16 %v2118
        %v3393 = vunpack.c.h.b16 %v2118
        %v3394 = vunpack.c.l.b16 %v2119
        %v3395 = vunpack.c.h.b16 %v2119
        %v3396 = vunpack.c.l.b16 %v2120
        %v3397 = vunpack.c.h.b16 %v2120
        %v3398 = vunpack.c.l.b16 %v2121
        %v3399 = vunpack.c.h.b16 %v2121
        %v3400 = vunpack.c.l.b16 %v2122
        %v3401 = vunpack.c.h.b16 %v2122
        %v3402 = vunpack.c.l.b16 %v2123
        %v3403 = vunpack.c.h.b16 %v2123
        %v3404 = vunpack.c.l.b16 %v2124
        %v3405 = vunpack.c.h.b16 %v2124
        %v3406 = vunpack.c.l.b16 %v2125
        %v3407 = vunpack.c.h.b16 %v2125
        %v3408 = vunpack.c.l.b16 %v2126
        %v3409 = vunpack.c.h.b16 %v2126
        %v3410 = vunpack.c.l.b16 %v2127
        %v3411 = vunpack.c.h.b16 %v2127
        %v3412 = vunpack.c.l.b16 %v2128
        %v3413 = vunpack.c.h.b16 %v2128
        %v3414 = vunpack.c.l.b16 %v2129
        %v3415 = vunpack.c.h.b16 %v2129
        %v3416 = vunpack.c.l.b16 %v2130
        %v3417 = vunpack.c.h.b16 %v2130
        %v3418 = vunpack.c.l.b16 %v2131
        %v3419 = vunpack.c.h.b16 %v2131
        %v3420 = vunpack.c.l.b16 %v2132
        %v3421 = vunpack.c.h.b16 %v2132
        %v3422 = vunpack.c.l.b16 %v2133
        %v3423 = vunpack.c.h.b16 %v2133
        %v3424 = vunpack.c.l.b16 %v2134
        %v3425 = vunpack.c.h.b16 %v2134
        %v3426 = vunpack.c.l.b16 %v2135
        %v3427 = vunpack.c.h.b16 %v2135
        %v3428 = vunpack.c.l.b16 %v2136
        %v3429 = vunpack.c.h.b16 %v2136
        %v3430 = vunpack.c.l.b16 %v2137
        %v3431 = vunpack.c.h.b16 %v2137
        %v3432 = vunpack.c.l.b16 %v2138
        %v3433 = vunpack.c.h.b16 %v2138
        %v3434 = vunpack.c.l.b16 %v2139
        %v3435 = vunpack.c.h.b16 %v2139
        %v3436 = vpack.c.b16 %v2574, %v2572
        %v3437 = vpack.c.b16 %v2575, %v2573
        %v3438 = vpack.c.b16 %v2578, %v2576
        %v3439 = vpack.c.b16 %v2579, %v2577
        %v3440 = vpack.c.b16 %v2582, %v2580
        %v3441 = vpack.c.b16 %v2583, %v2581
        %v3442 = vpack.c.b16 %v2586, %v2584
        %v3443 = vpack.c.b16 %v2587, %v2585
        %v3444 = vpack.c.b16 %v2590, %v2588
        %v3445 = vpack.c.b16 %v2591, %v2589
        %v3446 = vpack.c.b16 %v2594, %v2592
        %v3447 = vpack.c.b16 %v2595, %v2593
        %v3448 = vpack.c.b16 %v2598, %v2596
        %v3449 = vpack.c.b16 %v2599, %v2597
        %v3450 = vpack.c.b16 %v2602, %v2600
        %v3451 = vpack.c.b16 %v2603, %v2601
        %v3452 = vpack.c.b16 %v2606, %v2604
        %v3453 = vpack.c.b16 %v2607, %v2605
        %v3454 = vpack.c.b16 %v2610, %v2608
        %v3455 = vpack.c.b16 %v2611, %v2609
        %v3456 = vpack.c.b16 %v2614, %v2612
        %v3457 = vpack.c.b16 %v2615, %v2613
        %v3458 = vpack.c.b16 %v2618, %v2616
        %v3459 = vpack.c.b16 %v2619, %v2617
        %v3460 = vpack.c.b16 %v2622, %v2620
        %v3461 = vpack.c.b16 %v2623, %v2621
        %v3462 = vpack.c.b16 %v2626, %v2624
        %v3463 = vpack.c.b16 %v2627, %v2625
        %v3464 = vpack.c.b16 %v2630, %v2628
        %v3465 = vpack.c.b16 %v2631, %v2629
        %v3466 = vpack.c.b16 %v2634, %v2632
        %v3467 = vpack.c.b16 %v2635, %v2633
        %v3468 = vpack.c.b16 %v2638, %v2636
        %v3469 = vpack.c.b16 %v2639, %v2637
        %v3470 = vpack.c.b16 %v2642, %v2640
        %v3471 = vpack.c.b16 %v2643, %v2641
        %v3472 = vpack.c.b16 %v2646, %v2644
        %v3473 = vpack.c.b16 %v2647, %v2645
        %v3474 = vpack.c.b16 %v2650, %v2648
        %v3475 = vpack.c.b16 %v2651, %v2649
        %v3476 = vpack.c.b16 %v2654, %v2652
        %v3477 = vpack.c.b16 %v2655, %v2653
        %v3478 = vpack.c.b16 %v2658, %v2656
        %v3479 = vpack.c.b16 %v2659, %v2657
        %v3480 = vpack.c.b16 %v2662, %v2660
        %v3481 = vpack.c.b16 %v2663, %v2661
        %v3482 = vpack.c.b16 %v2666, %v2664
        %v3483 = vpack.c.b16 %v2667, %v2665
        %v3484 = vpack.c.b16 %v2670, %v2668
        %v3485 = vpack.c.b16 %v2671, %v2669
        %v3486 = vpack.c.b16 %v2674, %v2672
        %v3487 = vpack.c.b16 %v2675, %v2673
        %v3488 = vpack.c.b16 %v2678, %v2676
        %v3489 = vpack.c.b16 %v2679, %v2677
        %v3490 = vpack.c.b16 %v2682, %v2680
        %v3491 = vpack.c.b16 %v2683, %v2681
        %v3492 = vpack.c.b16 %v2686, %v2684
        %v3493 = vpack.c.b16 %v2687, %v2685
        %v3494 = vpack.c.b16 %v2690, %v2688
        %v3495 = vpack.c.b16 %v2691, %v2689
        %v3496 = vpack.c.b16 %v2694, %v2692
        %v3497 = vpack.c.b16 %v2695, %v2693
        %v3498 = vpack.c.b16 %v2698, %v2696
        %v3499 = vpack.c.b16 %v2699, %v2697
        %v3500 = vpack.c.b16 %v2702, %v2700
        %v3501 = vpack.c.b16 %v2703, %v2701
        %v3502 = vpack.c.b16 %v2706, %v2704
        %v3503 = vpack.c.b16 %v2707, %v2705
        %v3504 = vpack.c.b16 %v2710, %v2708
        %v3505 = vpack.c.b16 %v2711, %v2709
        %v3506 = vpack.c.b16 %v2714, %v2712
        %v3507 = vpack.c.b16 %v2715, %v2713
        %v3508 = vpack.c.b16 %v2718, %v2716
        %v3509 = vpack.c.b16 %v2719, %v2717
        %v3510 = vpack.c.b16 %v2722, %v2720
        %v3511 = vpack.c.b16 %v2723, %v2721
        %v3512 = vpack.c.b16 %v2726, %v2724
        %v3513 = vpack.c.b16 %v2727, %v2725
        %v3514 = vpack.c.b16 %v2730, %v2728
        %v3515 = vpack.c.b16 %v2731, %v2729
        %v3516 = vpack.c.b16 %v2734, %v2732
        %v3517 = vpack.c.b16 %v2735, %v2733
        %v3518 = vpack.c.b16 %v2738, %v2736
        %v3519 = vpack.c.b16 %v2739, %v2737
        %v3520 = vpack.c.b16 %v2742, %v2740
        %v3521 = vpack.c.b16 %v2743, %v2741
        %v3522 = vpack.c.b16 %v2746, %v2744
        %v3523 = vpack.c.b16 %v2747, %v2745
        %v3524 = vpack.c.b16 %v2750, %v2748
        %v3525 = vpack.c.b16 %v2751, %v2749
        %v3526 = vpack.c.b16 %v2754, %v2752
        %v3527 = vpack.c.b16 %v2755, %v2753
        %v3528 = vpack.c.b16 %v2758, %v2756
        %v3529 = vpack.c.b16 %v2759, %v2757
        %v3530 = vpack.c.b16 %v2762, %v2760
        %v3531 = vpack.c.b16 %v2763, %v2761
        %v3532 = vpack.c.b16 %v2766, %v2764
        %v3533 = vpack.c.b16 %v2767, %v2765
        %v3534 = vpack.c.b16 %v2770, %v2768
        %v3535 = vpack.c.b16 %v2771, %v2769
        %v3536 = vpack.c.b16 %v2774, %v2772
        %v3537 = vpack.c.b16 %v2775, %v2773
        %v3538 = vpack.c.b16 %v2778, %v2776
        %v3539 = vpack.c.b16 %v2779, %v2777
        %v3540 = vpack.c.b16 %v2782, %v2780
        %v3541 = vpack.c.b16 %v2783, %v2781
        %v3542 = vpack.c.b16 %v2786, %v2784
        %v3543 = vpack.c.b16 %v2787, %v2785
        %v3544 = vpack.c.b16 %v2790, %v2788
        %v3545 = vpack.c.b16 %v2791, %v2789
        %v3546 = vpack.c.b16 %v2794, %v2792
        %v3547 = vpack.c.b16 %v2795, %v2793
        %v3548 = vpack.c.b16 %v2798, %v2796
        %v3549 = vpack.c.b16 %v2799, %v2797
        %v3550 = vpack.c.b16 %v2802, %v2800
        %v3551 = vpack.c.b16 %v2803, %v2801
        %v3552 = vpack.c.b16 %v2806, %v2804
        %v3553 = vpack.c.b16 %v2807, %v2805
        %v3554 = vpack.c.b16 %v2810, %v2808
        %v3555 = vpack.c.b16 %v2811, %v2809
        %v3556 = vpack.c.b16 %v2814, %v2812
        %v3557 = vpack.c.b16 %v2815, %v2813
        %v3558 = vpack.c.b16 %v2818, %v2816
        %v3559 = vpack.c.b16 %v2819, %v2817
        %v3560 = vpack.c.b16 %v2822, %v2820
        %v3561 = vpack.c.b16 %v2823, %v2821
        %v3562 = vpack.c.b16 %v2826, %v2824
        %v3563 = vpack.c.b16 %v2827, %v2825
        %v3564 = vpack.c.b16 %v2830, %v2828
        %v3565 = vpack.c.b16 %v2831, %v2829
        %v3566 = vpack.c.b16 %v2834, %v2832
        %v3567 = vpack.c.b16 %v2835, %v2833
        %v3568 = vpack.c.b16 %v2838, %v2836
        %v3569 = vpack.c.b16 %v2839, %v2837
        %v3570 = vpack.c.b16 %v2842, %v2840
        %v3571 = vpack.c.b16 %v2843, %v2841
        %v3572 = vpack.c.b16 %v2846, %v2844
        %v3573 = vpack.c.b16 %v2847, %v2845
        %v3574 = vpack.c.b16 %v2850, %v2848
        %v3575 = vpack.c.b16 %v2851, %v2849
        %v3576 = vpack.c.b16 %v2854, %v2852
        %v3577 = vpack.c.b16 %v2855, %v2853
        %v3578 = vpack.c.b16 %v2858, %v2856
        %v3579 = vpack.c.b16 %v2859, %v2857
        %v3580 = vpack.c.b16 %v2862, %v2860
        %v3581 = vpack.c.b16 %v2863, %v2861
        %v3582 = vpack.c.b16 %v2866, %v2864
        %v3583 = vpack.c.b16 %v2867, %v2865
        %v3584 = vpack.c.b16 %v2870, %v2868
        %v3585 = vpack.c.b16 %v2871, %v2869
        %v3586 = vpack.c.b16 %v2874, %v2872
        %v3587 = vpack.c.b16 %v2875, %v2873
        %v3588 = vpack.c.b16 %v2878, %v2876
        %v3589 = vpack.c.b16 %v2879, %v2877
        %v3590 = vpack.c.b16 %v2882, %v2880
        %v3591 = vpack.c.b16 %v2883, %v2881
        %v3592 = vpack.c.b16 %v2886, %v2884
        %v3593 = vpack.c.b16 %v2887, %v2885
        %v3594 = vpack.c.b16 %v2890, %v2888
        %v3595 = vpack.c.b16 %v2891, %v2889
        %v3596 = vpack.c.b16 %v2894, %v2892
        %v3597 = vpack.c.b16 %v2895, %v2893
        %v3598 = vpack.c.b16 %v2898, %v2896
        %v3599 = vpack.c.b16 %v2899, %v2897
        %v3600 = vpack.c.b16 %v2902, %v2900
        %v3601 = vpack.c.b16 %v2903, %v2901
        %v3602 = vpack.c.b16 %v2906, %v2904
        %v3603 = vpack.c.b16 %v2907, %v2905
        %v3604 = vpack.c.b16 %v2910, %v2908
        %v3605 = vpack.c.b16 %v2911, %v2909
        %v3606 = vpack.c.b16 %v2914, %v2912
        %v3607 = vpack.c.b16 %v2915, %v2913
        %v3608 = vpack.c.b16 %v2918, %v2916
        %v3609 = vpack.c.b16 %v2919, %v2917
        %v3610 = vpack.c.b16 %v2922, %v2920
        %v3611 = vpack.c.b16 %v2923, %v2921
        %v3612 = vpack.c.b16 %v2926, %v2924
        %v3613 = vpack.c.b16 %v2927, %v2925
        %v3614 = vpack.c.b16 %v2930, %v2928
        %v3615 = vpack.c.b16 %v2931, %v2929
        %v3616 = vpack.c.b16 %v2934, %v2932
        %v3617 = vpack.c.b16 %v2935, %v2933
        %v3618 = vpack.c.b16 %v2938, %v2936
        %v3619 = vpack.c.b16 %v2939, %v2937
        %v3620 = vpack.c.b16 %v2942, %v2940
        %v3621 = vpack.c.b16 %v2943, %v2941
        %v3622 = vpack.c.b16 %v2946, %v2944
        %v3623 = vpack.c.b16 %v2947, %v2945
        %v3624 = vpack.c.b16 %v2950, %v2948
        %v3625 = vpack.c.b16 %v2951, %v2949
        %v3626 = vpack.c.b16 %v2954, %v2952
        %v3627 = vpack.c.b16 %v2955, %v2953
        %v3628 = vpack.c.b16 %v2958, %v2956
        %v3629 = vpack.c.b16 %v2959, %v2957
        %v3630 = vpack.c.b16 %v2962, %v2960
        %v3631 = vpack.c.b16 %v2963, %v2961
        %v3632 = vpack.c.b16 %v2966, %v2964
        %v3633 = vpack.c.b16 %v2967, %v2965
        %v3634 = vpack.c.b16 %v2970, %v2968
        %v3635 = vpack.c.b16 %v2971, %v2969
        %v3636 = vpack.c.b16 %v2974, %v2972
        %v3637 = vpack.c.b16 %v2975, %v2973
        %v3638 = vpack.c.b16 %v2978, %v2976
        %v3639 = vpack.c.b16 %v2979, %v2977
        %v3640 = vpack.c.b16 %v2982, %v2980
        %v3641 = vpack.c.b16 %v2983, %v2981
        %v3642 = vpack.c.b16 %v2986, %v2984
        %v3643 = vpack.c.b16 %v2987, %v2985
        %v3644 = vpack.c.b16 %v2990, %v2988
        %v3645 = vpack.c.b16 %v2991, %v2989
        %v3646 = vpack.c.b16 %v2994, %v2992
        %v3647 = vpack.c.b16 %v2995, %v2993
        %v3648 = vpack.c.b16 %v2998, %v2996
        %v3649 = vpack.c.b16 %v2999, %v2997
        %v3650 = vpack.c.b16 %v3002, %v3000
        %v3651 = vpack.c.b16 %v3003, %v3001
        %v3652 = vpack.c.b16 %v3006, %v3004
        %v3653 = vpack.c.b16 %v3007, %v3005
        %v3654 = vpack.c.b16 %v3010, %v3008
        %v3655 = vpack.c.b16 %v3011, %v3009
        %v3656 = vpack.c.b16 %v3014, %v3012
        %v3657 = vpack.c.b16 %v3015, %v3013
        %v3658 = vpack.c.b16 %v3018, %v3016
        %v3659 = vpack.c.b16 %v3019, %v3017
        %v3660 = vpack.c.b16 %v3022, %v3020
        %v3661 = vpack.c.b16 %v3023, %v3021
        %v3662 = vpack.c.b16 %v3026, %v3024
        %v3663 = vpack.c.b16 %v3027, %v3025
        %v3664 = vpack.c.b16 %v3030, %v3028
        %v3665 = vpack.c.b16 %v3031, %v3029
        %v3666 = vpack.c.b16 %v3034, %v3032
        %v3667 = vpack.c.b16 %v3035, %v3033
        %v3668 = vpack.c.b16 %v3038, %v3036
        %v3669 = vpack.c.b16 %v3039, %v3037
        %v3670 = vpack.c.b16 %v3042, %v3040
        %v3671 = vpack.c.b16 %v3043, %v3041
        %v3672 = vpack.c.b16 %v3046, %v3044
        %v3673 = vpack.c.b16 %v3047, %v3045
        %v3674 = vpack.c.b16 %v3050, %v3048
        %v3675 = vpack.c.b16 %v3051, %v3049
        %v3676 = vpack.c.b16 %v3054, %v3052
        %v3677 = vpack.c.b16 %v3055, %v3053
        %v3678 = vpack.c.b16 %v3058, %v3056
        %v3679 = vpack.c.b16 %v3059, %v3057
        %v3680 = vpack.c.b16 %v3062, %v3060
        %v3681 = vpack.c.b16 %v3063, %v3061
        %v3682 = vpack.c.b16 %v3066, %v3064
        %v3683 = vpack.c.b16 %v3067, %v3065
        %v3684 = vpack.c.b16 %v3070, %v3068
        %v3685 = vpack.c.b16 %v3071, %v3069
        %v3686 = vpack.c.b16 %v3074, %v3072
        %v3687 = vpack.c.b16 %v3075, %v3073
        %v3688 = vpack.c.b16 %v3078, %v3076
        %v3689 = vpack.c.b16 %v3079, %v3077
        %v3690 = vpack.c.b16 %v3082, %v3080
        %v3691 = vpack.c.b16 %v3083, %v3081
        %v3692 = vpack.c.b16 %v3086, %v3084
        %v3693 = vpack.c.b16 %v3087, %v3085
        %v3694 = vpack.c.b16 %v3090, %v3088
        %v3695 = vpack.c.b16 %v3091, %v3089
        %v3696 = vpack.c.b16 %v3094, %v3092
        %v3697 = vpack.c.b16 %v3095, %v3093
        %v3698 = vpack.c.b16 %v3098, %v3096
        %v3699 = vpack.c.b16 %v3099, %v3097
        %v3700 = vpack.c.b16 %v3102, %v3100
        %v3701 = vpack.c.b16 %v3103, %v3101
        %v3702 = vpack.c.b16 %v3106, %v3104
        %v3703 = vpack.c.b16 %v3107, %v3105
        %v3704 = vpack.c.b16 %v3110, %v3108
        %v3705 = vpack.c.b16 %v3111, %v3109
        %v3706 = vpack.c.b16 %v3114, %v3112
        %v3707 = vpack.c.b16 %v3115, %v3113
        %v3708 = vpack.c.b16 %v3118, %v3116
        %v3709 = vpack.c.b16 %v3119, %v3117
        %v3710 = vpack.c.b16 %v3122, %v3120
        %v3711 = vpack.c.b16 %v3123, %v3121
        %v3712 = vpack.c.b16 %v3126, %v3124
        %v3713 = vpack.c.b16 %v3127, %v3125
        %v3714 = vpack.c.b16 %v3130, %v3128
        %v3715 = vpack.c.b16 %v3131, %v3129
        %v3716 = vpack.c.b16 %v3134, %v3132
        %v3717 = vpack.c.b16 %v3135, %v3133
        %v3718 = vpack.c.b16 %v3138, %v3136
        %v3719 = vpack.c.b16 %v3139, %v3137
        %v3720 = vpack.c.b16 %v3142, %v3140
        %v3721 = vpack.c.b16 %v3143, %v3141
        %v3722 = vpack.c.b16 %v3146, %v3144
        %v3723 = vpack.c.b16 %v3147, %v3145
        %v3724 = vpack.c.b16 %v3150, %v3148
        %v3725 = vpack.c.b16 %v3151, %v3149
        %v3726 = vpack.c.b16 %v3154, %v3152
        %v3727 = vpack.c.b16 %v3155, %v3153
        %v3728 = vpack.c.b16 %v3158, %v3156
        %v3729 = vpack.c.b16 %v3159, %v3157
        %v3730 = vpack.c.b16 %v3162, %v3160
        %v3731 = vpack.c.b16 %v3163, %v3161
        %v3732 = vpack.c.b16 %v3166, %v3164
        %v3733 = vpack.c.b16 %v3167, %v3165
        %v3734 = vpack.c.b16 %v3170, %v3168
        %v3735 = vpack.c.b16 %v3171, %v3169
        %v3736 = vpack.c.b16 %v3174, %v3172
        %v3737 = vpack.c.b16 %v3175, %v3173
        %v3738 = vpack.c.b16 %v3178, %v3176
        %v3739 = vpack.c.b16 %v3179, %v3177
        %v3740 = vpack.c.b16 %v3182, %v3180
        %v3741 = vpack.c.b16 %v3183, %v3181
        %v3742 = vpack.c.b16 %v3186, %v3184
        %v3743 = vpack.c.b16 %v3187, %v3185
        %v3744 = vpack.c.b16 %v3190, %v3188
        %v3745 = vpack.c.b16 %v3191, %v3189
        %v3746 = vpack.c.b16 %v3194, %v3192
        %v3747 = vpack.c.b16 %v3195, %v3193
        %v3748 = vpack.c.b16 %v3198, %v3196
        %v3749 = vpack.c.b16 %v3199, %v3197
        %v3750 = vpack.c.b16 %v3202, %v3200
        %v3751 = vpack.c.b16 %v3203, %v3201
        %v3752 = vpack.c.b16 %v3206, %v3204
        %v3753 = vpack.c.b16 %v3207, %v3205
        %v3754 = vpack.c.b16 %v3210, %v3208
        %v3755 = vpack.c.b16 %v3211, %v3209
        %v3756 = vpack.c.b16 %v3214, %v3212
        %v3757 = vpack.c.b16 %v3215, %v3213
        %v3758 = vpack.c.b16 %v3218, %v3216
        %v3759 = vpack.c.b16 %v3219, %v3217
        %v3760 = vpack.c.b16 %v3222, %v3220
        %v3761 = vpack.c.b16 %v3223, %v3221
        %v3762 = vpack.c.b16 %v3226, %v3224
        %v3763 = vpack.c.b16 %v3227, %v3225
        %v3764 = vpack.c.b16 %v3230, %v3228
        %v3765 = vpack.c.b16 %v3231, %v3229
        %v3766 = vpack.c.b16 %v3234, %v3232
        %v3767 = vpack.c.b16 %v3235, %v3233
        %v3768 = vpack.c.b16 %v3238, %v3236
        %v3769 = vpack.c.b16 %v3239, %v3237
        %v3770 = vpack.c.b16 %v3242, %v3240
        %v3771 = vpack.c.b16 %v3243, %v3241
        %v3772 = vpack.c.b16 %v3246, %v3244
        %v3773 = vpack.c.b16 %v3247, %v3245
        %v3774 = vpack.c.b16 %v3250, %v3248
        %v3775 = vpack.c.b16 %v3251, %v3249
        %v3776 = vpack.c.b16 %v3254, %v3252
        %v3777 = vpack.c.b16 %v3255, %v3253
        %v3778 = vpack.c.b16 %v3258, %v3256
        %v3779 = vpack.c.b16 %v3259, %v3257
        %v3780 = vpack.c.b16 %v3262, %v3260
        %v3781 = vpack.c.b16 %v3263, %v3261
        %v3782 = vpack.c.b16 %v3266, %v3264
        %v3783 = vpack.c.b16 %v3267, %v3265
        %v3784 = vpack.c.b16 %v3270, %v3268
        %v3785 = vpack.c.b16 %v3271, %v3269
        %v3786 = vpack.c.b16 %v3274, %v3272
        %v3787 = vpack.c.b16 %v3275, %v3273
        %v3788 = vpack.c.b16 %v3278, %v3276
        %v3789 = vpack.c.b16 %v3279, %v3277
        %v3790 = vpack.c.b16 %v3282, %v3280
        %v3791 = vpack.c.b16 %v3283, %v3281
        %v3792 = vpack.c.b16 %v3286, %v3284
        %v3793 = vpack.c.b16 %v3287, %v3285
        %v3794 = vpack.c.b16 %v3290, %v3288
        %v3795 = vpack.c.b16 %v3291, %v3289
        %v3796 = vpack.c.b16 %v3294, %v3292
        %v3797 = vpack.c.b16 %v3295, %v3293
        %v3798 = vpack.c.b16 %v3298, %v3296
        %v3799 = vpack.c.b16 %v3299, %v3297
        %v3800 = vpack.c.b16 %v3302, %v3300
        %v3801 = vpack.c.b16 %v3303, %v3301
        %v3802 = vpack.c.b16 %v3306, %v3304
        %v3803 = vpack.c.b16 %v3307, %v3305
        %v3804 = vpack.c.b16 %v3310, %v3308
        %v3805 = vpack.c.b16 %v3311, %v3309
        %v3806 = vpack.c.b16 %v3314, %v3312
        %v3807 = vpack.c.b16 %v3315, %v3313
        %v3808 = vpack.c.b16 %v3318, %v3316
        %v3809 = vpack.c.b16 %v3319, %v3317
        %v3810 = vpack.c.b16 %v3322, %v3320
        %v3811 = vpack.c.b16 %v3323, %v3321
        %v3812 = vpack.c.b16 %v3326, %v3324
        %v3813 = vpack.c.b16 %v3327, %v3325
        %v3814 = vpack.c.b16 %v3330, %v3328
        %v3815 = vpack.c.b16 %v3331, %v3329
        %v3816 = vpack.c.b16 %v3334, %v3332
        %v3817 = vpack.c.b16 %v3335, %v3333
        %v3818 = vpack.c.b16 %v3338, %v3336
        %v3819 = vpack.c.b16 %v3339, %v3337
        %v3820 = vpack.c.b16 %v3342, %v3340
        %v3821 = vpack.c.b16 %v3343, %v3341
        %v3822 = vpack.c.b16 %v3346, %v3344
        %v3823 = vpack.c.b16 %v3347, %v3345
        %v3824 = vpack.c.b16 %v3350, %v3348
        %v3825 = vpack.c.b16 %v3351, %v3349
        %v3826 = vpack.c.b16 %v3354, %v3352
        %v3827 = vpack.c.b16 %v3355, %v3353
        %v3828 = vpack.c.b16 %v3358, %v3356
        %v3829 = vpack.c.b16 %v3359, %v3357
        %v3830 = vpack.c.b16 %v3362, %v3360
        %v3831 = vpack.c.b16 %v3363, %v3361
        %v3832 = vpack.c.b16 %v3366, %v3364
        %v3833 = vpack.c.b16 %v3367, %v3365
        %v3834 = vpack.c.b16 %v3370, %v3368
        %v3835 = vpack.c.b16 %v3371, %v3369
        %v3836 = vpack.c.b16 %v3374, %v3372
        %v3837 = vpack.c.b16 %v3375, %v3373
        %v3838 = vpack.c.b16 %v3378, %v3376
        %v3839 = vpack.c.b16 %v3379, %v3377
        %v3840 = vpack.c.b16 %v3382, %v3380
        %v3841 = vpack.c.b16 %v3383, %v3381
        %v3842 = vpack.c.b16 %v3386, %v3384
        %v3843 = vpack.c.b16 %v3387, %v3385
        %v3844 = vpack.c.b16 %v3390, %v3388
        %v3845 = vpack.c.b16 %v3391, %v3389
        %v3846 = vpack.c.b16 %v3394, %v3392
        %v3847 = vpack.c.b16 %v3395, %v3393
        %v3848 = vpack.c.b16 %v3398, %v3396
        %v3849 = vpack.c.b16 %v3399, %v3397
        %v3850 = vpack.c.b16 %v3402, %v3400
        %v3851 = vpack.c.b16 %v3403, %v3401
        %v3852 = vpack.c.b16 %v3406, %v3404
        %v3853 = vpack.c.b16 %v3407, %v3405
        %v3854 = vpack.c.b16 %v3410, %v3408
        %v3855 = vpack.c.b16 %v3411, %v3409
        %v3856 = vpack.c.b16 %v3414, %v3412
        %v3857 = vpack.c.b16 %v3415, %v3413
        %v3858 = vpack.c.b16 %v3418, %v3416
        %v3859 = vpack.c.b16 %v3419, %v3417
        %v3860 = vpack.c.b16 %v3422, %v3420
        %v3861 = vpack.c.b16 %v3423, %v3421
        %v3862 = vpack.c.b16 %v3426, %v3424
        %v3863 = vpack.c.b16 %v3427, %v3425
        %v3864 = vpack.c.b16 %v3430, %v3428
        %v3865 = vpack.c.b16 %v3431, %v3429
        %v3866 = vpack.c.b16 %v3434, %v3432
        %v3867 = vpack.c.b16 %v3435, %v3433
        %4300 = vmatprep.subr.bf16.mxu0 %v3437
        %4301 = vmatpush1.bf16.msra.mxu0 %v3436
        %4302 = vmatprep.subr.bf16.mxu0 %v3439
        %4303 = vmatpush1.bf16.msra.mxu0 %v3438
        %4304 = vmatprep.subr.bf16.mxu0 %v3441
        %4305 = vmatpush1.bf16.msra.mxu0 %v3440
        %4306 = vmatprep.subr.bf16.mxu0 %v3443
        %4307 = vmatpush1.bf16.msra.mxu0 %v3442
        %4308 = vmatprep.subr.bf16.mxu0 %v3445
        %4309 = vmatpush1.bf16.msra.mxu0 %v3444
        %4310 = vmatprep.subr.bf16.mxu0 %v3447
        %4311 = vmatpush1.bf16.msra.mxu0 %v3446
        %4312 = vmatprep.subr.bf16.mxu0 %v3449
        %4313 = vmatpush1.bf16.msra.mxu0 %v3448
        %4314 = vmatprep.subr.bf16.mxu0 %v3451
        %4315 = vmatpush1.bf16.msra.mxu0 %v3450
        %4316 = vmatprep.subr.bf16.mxu0 %v3453
        %4317 = vmatpush1.bf16.msra.mxu0 %v3452
        %4318 = vmatprep.subr.bf16.mxu0 %v3455
        %4319 = vmatpush1.bf16.msra.mxu0 %v3454
        %4320 = vmatprep.subr.bf16.mxu0 %v3457
        %4321 = vmatpush1.bf16.msra.mxu0 %v3456
        %4322 = vmatprep.subr.bf16.mxu0 %v3459
        %4323 = vmatpush1.bf16.msra.mxu0 %v3458
        %4324 = vmatprep.subr.bf16.mxu0 %v3461
        %4325 = vmatpush1.bf16.msra.mxu0 %v3460
        %4326 = vmatprep.subr.bf16.mxu0 %v3463
        %4327 = vmatpush1.bf16.msra.mxu0 %v3462
        %4328 = vmatprep.subr.bf16.mxu0 %v3465
        %4329 = vmatpush1.bf16.msra.mxu0 %v3464
        %4330 = vmatprep.subr.bf16.mxu0 %v3467
        %4331 = vmatpush1.bf16.msra.mxu0 %v3466
        %4332 = vmatprep.mubr.bf16.mxu0 %v1682
        %4333 = vmatmul.mubr.bf16.gmra.mrb[0].mxu0 %v1681
        %v4334 = vpop.f32.mrb[0].mxu0
        %v4335 = vadd.f32 0.0, %v4334
        %v4336 = vpop.f32.mrb[0].mxu0
        %v4337 = vadd.f32 0.0, %v4336
        %v4338 = vpop.f32.mrb[0].mxu0
        %v4339 = vpop.f32.mrb[0].mxu0
        %4340 = vdwg.mxu0
        %4341 = vmatprep.subr.bf16.mxu0 %v3469
        %4342 = vmatpush1.bf16.msra.mxu0 %v3468
        %4343 = vmatprep.subr.bf16.mxu0 %v3471
        %4344 = vmatpush1.bf16.msra.mxu0 %v3470
        %4345 = vmatprep.subr.bf16.mxu0 %v3473
        %4346 = vmatpush1.bf16.msra.mxu0 %v3472
        %4347 = vmatprep.subr.bf16.mxu0 %v3475
        %4348 = vmatpush1.bf16.msra.mxu0 %v3474
        %4349 = vmatprep.subr.bf16.mxu0 %v3477
        %4350 = vmatpush1.bf16.msra.mxu0 %v3476
        %4351 = vmatprep.subr.bf16.mxu0 %v3479
        %4352 = vmatpush1.bf16.msra.mxu0 %v3478
        %4353 = vmatprep.subr.bf16.mxu0 %v3481
        %4354 = vmatpush1.bf16.msra.mxu0 %v3480
        %4355 = vmatprep.subr.bf16.mxu0 %v3483
        %4356 = vmatpush1.bf16.msra.mxu0 %v3482
        %4357 = vmatprep.subr.bf16.mxu0 %v3485
        %4358 = vmatpush1.bf16.msra.mxu0 %v3484
        %4359 = vmatprep.subr.bf16.mxu0 %v3487
        %4360 = vmatpush1.bf16.msra.mxu0 %v3486
        %4361 = vmatprep.subr.bf16.mxu0 %v3489
        %4362 = vmatpush1.bf16.msra.mxu0 %v3488
        %4363 = vmatprep.subr.bf16.mxu0 %v3491
        %4364 = vmatpush1.bf16.msra.mxu0 %v3490
        %4365 = vmatprep.subr.bf16.mxu0 %v3493
        %4366 = vmatpush1.bf16.msra.mxu0 %v3492
        %4367 = vmatprep.subr.bf16.mxu0 %v3495
        %4368 = vmatpush1.bf16.msra.mxu0 %v3494
        %4369 = vmatprep.subr.bf16.mxu0 %v3497
        %4370 = vmatpush1.bf16.msra.mxu0 %v3496
        %4371 = vmatprep.subr.bf16.mxu0 %v3499
        %4372 = vmatpush1.bf16.msra.mxu0 %v3498
        %4373 = vmatprep.mubr.bf16.mxu0 %v1684
        %4374 = vmatmul.mubr.bf16.gmra.mrb[0].mxu0 %v1683
        %v4375 = vpop.f32.mrb[0].mxu0
        %v4376 = vadd.f32 %v4335, %v4375
        %v4377 = vpop.f32.mrb[0].mxu0
        %v4378 = vadd.f32 %v4337, %v4377
        %v4379 = vpop.f32.mrb[0].mxu0
        %v4380 = vpop.f32.mrb[0].mxu0
        %4381 = vdwg.mxu0
        %4382 = vmatprep.subr.bf16.mxu0 %v3501
        %4383 = vmatpush1.bf16.msra.mxu0 %v3500
        %4384 = vmatprep.subr.bf16.mxu0 %v3503
        %4385 = vmatpush1.bf16.msra.mxu0 %v3502
        %4386 = vmatprep.subr.bf16.mxu0 %v3505
        %4387 = vmatpush1.bf16.msra.mxu0 %v3504
        %4388 = vmatprep.subr.bf16.mxu0 %v3507
        %4389 = vmatpush1.bf16.msra.mxu0 %v3506
        %4390 = vmatprep.subr.bf16.mxu0 %v3509
        %4391 = vmatpush1.bf16.msra.mxu0 %v3508
        %4392 = vmatprep.subr.bf16.mxu0 %v3511
        %4393 = vmatpush1.bf16.msra.mxu0 %v3510
        %4394 = vmatprep.subr.bf16.mxu0 %v3513
        %4395 = vmatpush1.bf16.msra.mxu0 %v3512
        %4396 = vmatprep.subr.bf16.mxu0 %v3515
        %4397 = vmatpush1.bf16.msra.mxu0 %v3514
        %4398 = vmatprep.subr.bf16.mxu0 %v3517
        %4399 = vmatpush1.bf16.msra.mxu0 %v3516
        %4400 = vmatprep.subr.bf16.mxu0 %v3519
        %4401 = vmatpush1.bf16.msra.mxu0 %v3518
        %4402 = vmatprep.subr.bf16.mxu0 %v3521
        %4403 = vmatpush1.bf16.msra.mxu0 %v3520
        %4404 = vmatprep.subr.bf16.mxu0 %v3523
        %4405 = vmatpush1.bf16.msra.mxu0 %v3522
        %4406 = vmatprep.subr.bf16.mxu0 %v3525
        %4407 = vmatpush1.bf16.msra.mxu0 %v3524
        %4408 = vmatprep.subr.bf16.mxu0 %v3527
        %4409 = vmatpush1.bf16.msra.mxu0 %v3526
        %4410 = vmatprep.subr.bf16.mxu0 %v3529
        %4411 = vmatpush1.bf16.msra.mxu0 %v3528
        %4412 = vmatprep.subr.bf16.mxu0 %v3531
        %4413 = vmatpush1.bf16.msra.mxu0 %v3530
        %4414 = vmatprep.mubr.bf16.mxu0 %v1686
        %4415 = vmatmul.mubr.bf16.gmra.mrb[0].mxu0 %v1685
        %v4416 = vpop.f32.mrb[0].mxu0
        %v4417 = vadd.f32 %v4376, %v4416
        %v4418 = vpop.f32.mrb[0].mxu0
        %v4419 = vadd.f32 %v4378, %v4418
        %v4420 = vpop.f32.mrb[0].mxu0
        %v4421 = vpop.f32.mrb[0].mxu0
        %4422 = vdwg.mxu0
        %4423 = vmatprep.subr.bf16.mxu0 %v3533
        %4424 = vmatpush1.bf16.msra.mxu0 %v3532
        %4425 = vmatprep.subr.bf16.mxu0 %v3535
        %4426 = vmatpush1.bf16.msra.mxu0 %v3534
        %4427 = vmatprep.subr.bf16.mxu0 %v3537
        %4428 = vmatpush1.bf16.msra.mxu0 %v3536
        %4429 = vmatprep.subr.bf16.mxu0 %v3539
        %4430 = vmatpush1.bf16.msra.mxu0 %v3538
        %4431 = vmatprep.subr.bf16.mxu0 %v3541
        %4432 = vmatpush1.bf16.msra.mxu0 %v3540
        %4433 = vmatprep.subr.bf16.mxu0 %v3543
        %4434 = vmatpush1.bf16.msra.mxu0 %v3542
        %4435 = vmatprep.subr.bf16.mxu0 %v3545
        %4436 = vmatpush1.bf16.msra.mxu0 %v3544
        %4437 = vmatprep.subr.bf16.mxu0 %v3547
        %4438 = vmatpush1.bf16.msra.mxu0 %v3546
        %4439 = vmatprep.subr.bf16.mxu0 %v3549
        %4440 = vmatpush1.bf16.msra.mxu0 %v3548
        %4441 = vmatprep.subr.bf16.mxu0 %v3551
        %4442 = vmatpush1.bf16.msra.mxu0 %v3550
        %4443 = vmatprep.subr.bf16.mxu0 %v3553
        %4444 = vmatpush1.bf16.msra.mxu0 %v3552
        %4445 = vmatprep.subr.bf16.mxu0 %v3555
        %4446 = vmatpush1.bf16.msra.mxu0 %v3554
        %4447 = vmatprep.subr.bf16.mxu0 %v3557
        %4448 = vmatpush1.bf16.msra.mxu0 %v3556
        %4449 = vmatprep.subr.bf16.mxu0 %v3559
        %4450 = vmatpush1.bf16.msra.mxu0 %v3558
        %4451 = vmatprep.subr.bf16.mxu0 %v3561
        %4452 = vmatpush1.bf16.msra.mxu0 %v3560
        %4453 = vmatprep.subr.bf16.mxu0 %v3563
        %4454 = vmatpush1.bf16.msra.mxu0 %v3562
        %4455 = vmatprep.mubr.bf16.mxu0 %v1688
        %4456 = vmatmul.mubr.bf16.gmra.mrb[0].mxu0 %v1687
        %v4457 = vpop.f32.mrb[0].mxu0
        %v4458 = vadd.f32 %v4417, %v4457
        %v4459 = vpop.f32.mrb[0].mxu0
        %v4460 = vadd.f32 %v4419, %v4459
        %v4461 = vpop.f32.mrb[0].mxu0
        %v4462 = vpop.f32.mrb[0].mxu0
        %4463 = vdwg.mxu0
        %4464 = vmatprep.subr.bf16.mxu0 %v3565
        %4465 = vmatpush1.bf16.msra.mxu0 %v3564
        %4466 = vmatprep.subr.bf16.mxu0 %v3567
        %4467 = vmatpush1.bf16.msra.mxu0 %v3566
        %4468 = vmatprep.subr.bf16.mxu0 %v3569
        %4469 = vmatpush1.bf16.msra.mxu0 %v3568
        %4470 = vmatprep.subr.bf16.mxu0 %v3571
        %4471 = vmatpush1.bf16.msra.mxu0 %v3570
        %4472 = vmatprep.subr.bf16.mxu0 %v3573
        %4473 = vmatpush1.bf16.msra.mxu0 %v3572
        %4474 = vmatprep.subr.bf16.mxu0 %v3575
        %4475 = vmatpush1.bf16.msra.mxu0 %v3574
        %4476 = vmatprep.subr.bf16.mxu0 %v3577
        %4477 = vmatpush1.bf16.msra.mxu0 %v3576
        %4478 = vmatprep.subr.bf16.mxu0 %v3579
        %4479 = vmatpush1.bf16.msra.mxu0 %v3578
        %4480 = vmatprep.subr.bf16.mxu0 %v3581
        %4481 = vmatpush1.bf16.msra.mxu0 %v3580
        %4482 = vmatprep.subr.bf16.mxu0 %v3583
        %4483 = vmatpush1.bf16.msra.mxu0 %v3582
        %4484 = vmatprep.subr.bf16.mxu0 %v3585
        %4485 = vmatpush1.bf16.msra.mxu0 %v3584
        %4486 = vmatprep.subr.bf16.mxu0 %v3587
        %4487 = vmatpush1.bf16.msra.mxu0 %v3586
        %4488 = vmatprep.subr.bf16.mxu0 %v3589
        %4489 = vmatpush1.bf16.msra.mxu0 %v3588
        %4490 = vmatprep.subr.bf16.mxu0 %v3591
        %4491 = vmatpush1.bf16.msra.mxu0 %v3590
        %4492 = vmatprep.subr.bf16.mxu0 %v3593
        %4493 = vmatpush1.bf16.msra.mxu0 %v3592
        %4494 = vmatprep.subr.bf16.mxu0 %v3595
        %4495 = vmatpush1.bf16.msra.mxu0 %v3594
        %4496 = vmatprep.mubr.bf16.mxu0 %v1690
        %4497 = vmatmul.mubr.bf16.gmra.mrb[0].mxu0 %v1689
        %v4498 = vpop.f32.mrb[0].mxu0
        %v4499 = vadd.f32 %v4458, %v4498
        %v4500 = vpop.f32.mrb[0].mxu0
        %v4501 = vadd.f32 %v4460, %v4500
        %v4502 = vpop.f32.mrb[0].mxu0
        %v4503 = vpop.f32.mrb[0].mxu0
        %4504 = vdwg.mxu0
        %4505 = vmatprep.subr.bf16.mxu0 %v3597
        %4506 = vmatpush1.bf16.msra.mxu0 %v3596
        %4507 = vmatprep.subr.bf16.mxu0 %v3599
        %4508 = vmatpush1.bf16.msra.mxu0 %v3598
        %4509 = vmatprep.subr.bf16.mxu0 %v3601
        %4510 = vmatpush1.bf16.msra.mxu0 %v3600
        %4511 = vmatprep.subr.bf16.mxu0 %v3603
        %4512 = vmatpush1.bf16.msra.mxu0 %v3602
        %4513 = vmatprep.subr.bf16.mxu0 %v3605
        %4514 = vmatpush1.bf16.msra.mxu0 %v3604
        %4515 = vmatprep.subr.bf16.mxu0 %v3607
        %4516 = vmatpush1.bf16.msra.mxu0 %v3606
        %4517 = vmatprep.subr.bf16.mxu0 %v3609
        %4518 = vmatpush1.bf16.msra.mxu0 %v3608
        %4519 = vmatprep.subr.bf16.mxu0 %v3611
        %4520 = vmatpush1.bf16.msra.mxu0 %v3610
        %4521 = vmatprep.subr.bf16.mxu0 %v3613
        %4522 = vmatpush1.bf16.msra.mxu0 %v3612
        %4523 = vmatprep.subr.bf16.mxu0 %v3615
        %4524 = vmatpush1.bf16.msra.mxu0 %v3614
        %4525 = vmatprep.subr.bf16.mxu0 %v3617
        %4526 = vmatpush1.bf16.msra.mxu0 %v3616
        %4527 = vmatprep.subr.bf16.mxu0 %v3619
        %4528 = vmatpush1.bf16.msra.mxu0 %v3618
        %4529 = vmatprep.subr.bf16.mxu0 %v3621
        %4530 = vmatpush1.bf16.msra.mxu0 %v3620
        %4531 = vmatprep.subr.bf16.mxu0 %v3623
        %4532 = vmatpush1.bf16.msra.mxu0 %v3622
        %4533 = vmatprep.subr.bf16.mxu0 %v3625
        %4534 = vmatpush1.bf16.msra.mxu0 %v3624
        %4535 = vmatprep.subr.bf16.mxu0 %v3627
        %4536 = vmatpush1.bf16.msra.mxu0 %v3626
        %4537 = vmatprep.mubr.bf16.mxu0 %v1692
        %4538 = vmatmul.mubr.bf16.gmra.mrb[0].mxu0 %v1691
        %v4539 = vpop.f32.mrb[0].mxu0
        %v4540 = vadd.f32 %v4499, %v4539
        %v4541 = vpop.f32.mrb[0].mxu0
        %v4542 = vadd.f32 %v4501, %v4541
        %v4543 = vpop.f32.mrb[0].mxu0
        %v4544 = vpop.f32.mrb[0].mxu0
        %4545 = vdwg.mxu0
        %4546 = vmatprep.subr.bf16.mxu0 %v3629
        %4547 = vmatpush1.bf16.msra.mxu0 %v3628
        %4548 = vmatprep.subr.bf16.mxu0 %v3631
        %4549 = vmatpush1.bf16.msra.mxu0 %v3630
        %4550 = vmatprep.subr.bf16.mxu0 %v3633
        %4551 = vmatpush1.bf16.msra.mxu0 %v3632
        %4552 = vmatprep.subr.bf16.mxu0 %v3635
        %4553 = vmatpush1.bf16.msra.mxu0 %v3634
        %4554 = vmatprep.subr.bf16.mxu0 %v3637
        %4555 = vmatpush1.bf16.msra.mxu0 %v3636
        %4556 = vmatprep.subr.bf16.mxu0 %v3639
        %4557 = vmatpush1.bf16.msra.mxu0 %v3638
        %4558 = vmatprep.subr.bf16.mxu0 %v3641
        %4559 = vmatpush1.bf16.msra.mxu0 %v3640
        %4560 = vmatprep.subr.bf16.mxu0 %v3643
        %4561 = vmatpush1.bf16.msra.mxu0 %v3642
        %4562 = vmatprep.subr.bf16.mxu0 %v3645
        %4563 = vmatpush1.bf16.msra.mxu0 %v3644
        %4564 = vmatprep.subr.bf16.mxu0 %v3647
        %4565 = vmatpush1.bf16.msra.mxu0 %v3646
        %4566 = vmatprep.subr.bf16.mxu0 %v3649
        %4567 = vmatpush1.bf16.msra.mxu0 %v3648
        %4568 = vmatprep.subr.bf16.mxu0 %v3651
        %4569 = vmatpush1.bf16.msra.mxu0 %v3650
        %4570 = vmatprep.subr.bf16.mxu0 %v3653
        %4571 = vmatpush1.bf16.msra.mxu0 %v3652
        %4572 = vmatprep.subr.bf16.mxu0 %v3655
        %4573 = vmatpush1.bf16.msra.mxu0 %v3654
        %4574 = vmatprep.subr.bf16.mxu0 %v3657
        %4575 = vmatpush1.bf16.msra.mxu0 %v3656
        %4576 = vmatprep.subr.bf16.mxu0 %v3659
        %4577 = vmatpush1.bf16.msra.mxu0 %v3658
        %4578 = vmatprep.mubr.bf16.mxu0 %v1694
        %4579 = vmatmul.mubr.bf16.gmra.mrb[0].mxu0 %v1693
        %v4580 = vpop.f32.mrb[0].mxu0
        %v4581 = vadd.f32 %v4540, %v4580
        %v4582 = vpop.f32.mrb[0].mxu0
        %v4583 = vadd.f32 %v4542, %v4582
        %v4584 = vpop.f32.mrb[0].mxu0
        %v4585 = vpop.f32.mrb[0].mxu0
        %4586 = vdwg.mxu0
        %4587 = vmatprep.subr.bf16.mxu0 %v3661
        %4588 = vmatpush1.bf16.msra.mxu0 %v3660
        %4589 = vmatprep.subr.bf16.mxu0 %v3663
        %4590 = vmatpush1.bf16.msra.mxu0 %v3662
        %4591 = vmatprep.subr.bf16.mxu0 %v3665
        %4592 = vmatpush1.bf16.msra.mxu0 %v3664
        %4593 = vmatprep.subr.bf16.mxu0 %v3667
        %4594 = vmatpush1.bf16.msra.mxu0 %v3666
        %4595 = vmatprep.subr.bf16.mxu0 %v3669
        %4596 = vmatpush1.bf16.msra.mxu0 %v3668
        %4597 = vmatprep.subr.bf16.mxu0 %v3671
        %4598 = vmatpush1.bf16.msra.mxu0 %v3670
        %4599 = vmatprep.subr.bf16.mxu0 %v3673
        %4600 = vmatpush1.bf16.msra.mxu0 %v3672
        %4601 = vmatprep.subr.bf16.mxu0 %v3675
        %4602 = vmatpush1.bf16.msra.mxu0 %v3674
        %4603 = vmatprep.subr.bf16.mxu0 %v3677
        %4604 = vmatpush1.bf16.msra.mxu0 %v3676
        %4605 = vmatprep.subr.bf16.mxu0 %v3679
        %4606 = vmatpush1.bf16.msra.mxu0 %v3678
        %4607 = vmatprep.subr.bf16.mxu0 %v3681
        %4608 = vmatpush1.bf16.msra.mxu0 %v3680
        %4609 = vmatprep.subr.bf16.mxu0 %v3683
        %4610 = vmatpush1.bf16.msra.mxu0 %v3682
        %4611 = vmatprep.subr.bf16.mxu0 %v3685
        %4612 = vmatpush1.bf16.msra.mxu0 %v3684
        %4613 = vmatprep.subr.bf16.mxu0 %v3687
        %4614 = vmatpush1.bf16.msra.mxu0 %v3686
        %4615 = vmatprep.subr.bf16.mxu0 %v3689
        %4616 = vmatpush1.bf16.msra.mxu0 %v3688
        %4617 = vmatprep.subr.bf16.mxu0 %v3691
        %4618 = vmatpush1.bf16.msra.mxu0 %v3690
        %4619 = vmatprep.mubr.bf16.mxu0 %v1696
        %4620 = vmatmul.mubr.bf16.gmra.mrb[0].mxu0 %v1695
        %v4621 = vpop.f32.mrb[0].mxu0
        %v4622 = vadd.f32 %v4581, %v4621
        %v4623 = vpop.f32.mrb[0].mxu0
        %v4624 = vadd.f32 %v4583, %v4623
        %v4625 = vpop.f32.mrb[0].mxu0
        %v4626 = vpop.f32.mrb[0].mxu0
        %4627 = vdwg.mxu0
        %4628 = vmatprep.subr.bf16.mxu0 %v3693
        %4629 = vmatpush1.bf16.msra.mxu0 %v3692
        %4630 = vmatprep.subr.bf16.mxu0 %v3695
        %4631 = vmatpush1.bf16.msra.mxu0 %v3694
        %4632 = vmatprep.subr.bf16.mxu0 %v3697
        %4633 = vmatpush1.bf16.msra.mxu0 %v3696
        %4634 = vmatprep.subr.bf16.mxu0 %v3699
        %4635 = vmatpush1.bf16.msra.mxu0 %v3698
        %4636 = vmatprep.subr.bf16.mxu0 %v3701
        %4637 = vmatpush1.bf16.msra.mxu0 %v3700
        %4638 = vmatprep.subr.bf16.mxu0 %v3703
        %4639 = vmatpush1.bf16.msra.mxu0 %v3702
        %4640 = vmatprep.subr.bf16.mxu0 %v3705
        %4641 = vmatpush1.bf16.msra.mxu0 %v3704
        %4642 = vmatprep.subr.bf16.mxu0 %v3707
        %4643 = vmatpush1.bf16.msra.mxu0 %v3706
        %4644 = vmatprep.subr.bf16.mxu0 %v3709
        %4645 = vmatpush1.bf16.msra.mxu0 %v3708
        %4646 = vmatprep.subr.bf16.mxu0 %v3711
        %4647 = vmatpush1.bf16.msra.mxu0 %v3710
        %4648 = vmatprep.subr.bf16.mxu0 %v3713
        %4649 = vmatpush1.bf16.msra.mxu0 %v3712
        %4650 = vmatprep.subr.bf16.mxu0 %v3715
        %4651 = vmatpush1.bf16.msra.mxu0 %v3714
        %4652 = vmatprep.subr.bf16.mxu0 %v3717
        %4653 = vmatpush1.bf16.msra.mxu0 %v3716
        %4654 = vmatprep.subr.bf16.mxu0 %v3719
        %4655 = vmatpush1.bf16.msra.mxu0 %v3718
        %4656 = vmatprep.subr.bf16.mxu0 %v3721
        %4657 = vmatpush1.bf16.msra.mxu0 %v3720
        %4658 = vmatprep.subr.bf16.mxu0 %v3723
        %4659 = vmatpush1.bf16.msra.mxu0 %v3722
        %4660 = vmatprep.mubr.bf16.mxu0 %v1698
        %4661 = vmatmul.mubr.bf16.gmra.mrb[0].mxu0 %v1697
        %v4662 = vpop.f32.mrb[0].mxu0
        %v4663 = vadd.f32 %v4622, %v4662
        %v4664 = vpop.f32.mrb[0].mxu0
        %v4665 = vadd.f32 %v4624, %v4664
        %v4666 = vpop.f32.mrb[0].mxu0
        %v4667 = vpop.f32.mrb[0].mxu0
        %4668 = vdwg.mxu0
        %4669 = vmatprep.subr.bf16.mxu0 %v3725
        %4670 = vmatpush1.bf16.msra.mxu0 %v3724
        %4671 = vmatprep.subr.bf16.mxu0 %v3727
        %4672 = vmatpush1.bf16.msra.mxu0 %v3726
        %4673 = vmatprep.subr.bf16.mxu0 %v3729
        %4674 = vmatpush1.bf16.msra.mxu0 %v3728
        %4675 = vmatprep.subr.bf16.mxu0 %v3731
        %4676 = vmatpush1.bf16.msra.mxu0 %v3730
        %4677 = vmatprep.subr.bf16.mxu0 %v3733
        %4678 = vmatpush1.bf16.msra.mxu0 %v3732
        %4679 = vmatprep.subr.bf16.mxu0 %v3735
        %4680 = vmatpush1.bf16.msra.mxu0 %v3734
        %4681 = vmatprep.subr.bf16.mxu0 %v3737
        %4682 = vmatpush1.bf16.msra.mxu0 %v3736
        %4683 = vmatprep.subr.bf16.mxu0 %v3739
        %4684 = vmatpush1.bf16.msra.mxu0 %v3738
        %4685 = vmatprep.subr.bf16.mxu0 %v3741
        %4686 = vmatpush1.bf16.msra.mxu0 %v3740
        %4687 = vmatprep.subr.bf16.mxu0 %v3743
        %4688 = vmatpush1.bf16.msra.mxu0 %v3742
        %4689 = vmatprep.subr.bf16.mxu0 %v3745
        %4690 = vmatpush1.bf16.msra.mxu0 %v3744
        %4691 = vmatprep.subr.bf16.mxu0 %v3747
        %4692 = vmatpush1.bf16.msra.mxu0 %v3746
        %4693 = vmatprep.subr.bf16.mxu0 %v3749
        %4694 = vmatpush1.bf16.msra.mxu0 %v3748
        %4695 = vmatprep.subr.bf16.mxu0 %v3751
        %4696 = vmatpush1.bf16.msra.mxu0 %v3750
        %4697 = vmatprep.subr.bf16.mxu0 %v3753
        %4698 = vmatpush1.bf16.msra.mxu0 %v3752
        %4699 = vmatprep.subr.bf16.mxu0 %v3755
        %4700 = vmatpush1.bf16.msra.mxu0 %v3754
        %4701 = vmatprep.mubr.bf16.mxu0 %v1700
        %4702 = vmatmul.mubr.bf16.gmra.mrb[0].mxu0 %v1699
        %v4703 = vpop.f32.mrb[0].mxu0
        %v4704 = vadd.f32 %v4663, %v4703
        %v4705 = vpop.f32.mrb[0].mxu0
        %v4706 = vadd.f32 %v4665, %v4705
        %v4707 = vpop.f32.mrb[0].mxu0
        %v4708 = vpop.f32.mrb[0].mxu0
        %4709 = vdwg.mxu0
        %4710 = vmatprep.subr.bf16.mxu0 %v3757
        %4711 = vmatpush1.bf16.msra.mxu0 %v3756
        %4712 = vmatprep.subr.bf16.mxu0 %v3759
        %4713 = vmatpush1.bf16.msra.mxu0 %v3758
        %4714 = vmatprep.subr.bf16.mxu0 %v3761
        %4715 = vmatpush1.bf16.msra.mxu0 %v3760
        %4716 = vmatprep.subr.bf16.mxu0 %v3763
        %4717 = vmatpush1.bf16.msra.mxu0 %v3762
        %4718 = vmatprep.subr.bf16.mxu0 %v3765
        %4719 = vmatpush1.bf16.msra.mxu0 %v3764
        %4720 = vmatprep.subr.bf16.mxu0 %v3767
        %4721 = vmatpush1.bf16.msra.mxu0 %v3766
        %4722 = vmatprep.subr.bf16.mxu0 %v3769
        %4723 = vmatpush1.bf16.msra.mxu0 %v3768
        %4724 = vmatprep.subr.bf16.mxu0 %v3771
        %4725 = vmatpush1.bf16.msra.mxu0 %v3770
        %4726 = vmatprep.subr.bf16.mxu0 %v3773
        %4727 = vmatpush1.bf16.msra.mxu0 %v3772
        %4728 = vmatprep.subr.bf16.mxu0 %v3775
        %4729 = vmatpush1.bf16.msra.mxu0 %v3774
        %4730 = vmatprep.subr.bf16.mxu0 %v3777
        %4731 = vmatpush1.bf16.msra.mxu0 %v3776
        %4732 = vmatprep.subr.bf16.mxu0 %v3779
        %4733 = vmatpush1.bf16.msra.mxu0 %v3778
        %4734 = vmatprep.subr.bf16.mxu0 %v3781
        %4735 = vmatpush1.bf16.msra.mxu0 %v3780
        %4736 = vmatprep.subr.bf16.mxu0 %v3783
        %4737 = vmatpush1.bf16.msra.mxu0 %v3782
        %4738 = vmatprep.subr.bf16.mxu0 %v3785
        %4739 = vmatpush1.bf16.msra.mxu0 %v3784
        %4740 = vmatprep.subr.bf16.mxu0 %v3787
        %4741 = vmatpush1.bf16.msra.mxu0 %v3786
        %4742 = vmatprep.mubr.bf16.mxu0 %v1702
        %4743 = vmatmul.mubr.bf16.gmra.mrb[0].mxu0 %v1701
        %v4744 = vpop.f32.mrb[0].mxu0
        %v4745 = vadd.f32 %v4704, %v4744
        %v4746 = vpop.f32.mrb[0].mxu0
        %v4747 = vadd.f32 %v4706, %v4746
        %v4748 = vpop.f32.mrb[0].mxu0
        %v4749 = vpop.f32.mrb[0].mxu0
        %4750 = vdwg.mxu0
        %4751 = vmatprep.subr.bf16.mxu0 %v3789
        %4752 = vmatpush1.bf16.msra.mxu0 %v3788
        %4753 = vmatprep.subr.bf16.mxu0 %v3791
        %4754 = vmatpush1.bf16.msra.mxu0 %v3790
        %4755 = vmatprep.subr.bf16.mxu0 %v3793
        %4756 = vmatpush1.bf16.msra.mxu0 %v3792
        %4757 = vmatprep.subr.bf16.mxu0 %v3795
        %4758 = vmatpush1.bf16.msra.mxu0 %v3794
        %4759 = vmatprep.subr.bf16.mxu0 %v3797
        %4760 = vmatpush1.bf16.msra.mxu0 %v3796
        %4761 = vmatprep.subr.bf16.mxu0 %v3799
        %4762 = vmatpush1.bf16.msra.mxu0 %v3798
        %4763 = vmatprep.subr.bf16.mxu0 %v3801
        %4764 = vmatpush1.bf16.msra.mxu0 %v3800
        %4765 = vmatprep.subr.bf16.mxu0 %v3803
        %4766 = vmatpush1.bf16.msra.mxu0 %v3802
        %4767 = vmatprep.subr.bf16.mxu0 %v3805
        %4768 = vmatpush1.bf16.msra.mxu0 %v3804
        %4769 = vmatprep.subr.bf16.mxu0 %v3807
        %4770 = vmatpush1.bf16.msra.mxu0 %v3806
        %4771 = vmatprep.subr.bf16.mxu0 %v3809
        %4772 = vmatpush1.bf16.msra.mxu0 %v3808
        %4773 = vmatprep.subr.bf16.mxu0 %v3811
        %4774 = vmatpush1.bf16.msra.mxu0 %v3810
        %4775 = vmatprep.subr.bf16.mxu0 %v3813
        %4776 = vmatpush1.bf16.msra.mxu0 %v3812
        %4777 = vmatprep.subr.bf16.mxu0 %v3815
        %4778 = vmatpush1.bf16.msra.mxu0 %v3814
        %4779 = vmatprep.subr.bf16.mxu0 %v3817
        %4780 = vmatpush1.bf16.msra.mxu0 %v3816
        %4781 = vmatprep.subr.bf16.mxu0 %v3819
        %4782 = vmatpush1.bf16.msra.mxu0 %v3818
        %4783 = vmatprep.mubr.bf16.mxu0 %v1704
        %4784 = vmatmul.mubr.bf16.gmra.mrb[0].mxu0 %v1703
        %v4785 = vpop.f32.mrb[0].mxu0
        %v4786 = vadd.f32 %v4745, %v4785
        %v4787 = vpop.f32.mrb[0].mxu0
        %v4788 = vadd.f32 %v4747, %v4787
        %v4789 = vpop.f32.mrb[0].mxu0
        %v4790 = vpop.f32.mrb[0].mxu0
        %4791 = vdwg.mxu0
        %4792 = vmatprep.subr.bf16.mxu0 %v3821
        %4793 = vmatpush1.bf16.msra.mxu0 %v3820
        %4794 = vmatprep.subr.bf16.mxu0 %v3823
        %4795 = vmatpush1.bf16.msra.mxu0 %v3822
        %4796 = vmatprep.subr.bf16.mxu0 %v3825
        %4797 = vmatpush1.bf16.msra.mxu0 %v3824
        %4798 = vmatprep.subr.bf16.mxu0 %v3827
        %4799 = vmatpush1.bf16.msra.mxu0 %v3826
        %4800 = vmatprep.subr.bf16.mxu0 %v3829
        %4801 = vmatpush1.bf16.msra.mxu0 %v3828
        %4802 = vmatprep.subr.bf16.mxu0 %v3831
        %4803 = vmatpush1.bf16.msra.mxu0 %v3830
        %4804 = vmatprep.subr.bf16.mxu0 %v3833
        %4805 = vmatpush1.bf16.msra.mxu0 %v3832
        %4806 = vmatprep.subr.bf16.mxu0 %v3835
        %4807 = vmatpush1.bf16.msra.mxu0 %v3834
        %4808 = vmatprep.subr.bf16.mxu0 %v3837
        %4809 = vmatpush1.bf16.msra.mxu0 %v3836
        %4810 = vmatprep.subr.bf16.mxu0 %v3839
        %4811 = vmatpush1.bf16.msra.mxu0 %v3838
        %4812 = vmatprep.subr.bf16.mxu0 %v3841
        %4813 = vmatpush1.bf16.msra.mxu0 %v3840
        %4814 = vmatprep.subr.bf16.mxu0 %v3843
        %4815 = vmatpush1.bf16.msra.mxu0 %v3842
        %4816 = vmatprep.subr.bf16.mxu0 %v3845
        %4817 = vmatpush1.bf16.msra.mxu0 %v3844
        %4818 = vmatprep.subr.bf16.mxu0 %v3847
        %4819 = vmatpush1.bf16.msra.mxu0 %v3846
        %4820 = vmatprep.subr.bf16.mxu0 %v3849
        %4821 = vmatpush1.bf16.msra.mxu0 %v3848
        %4822 = vmatprep.subr.bf16.mxu0 %v3851
        %4823 = vmatpush1.bf16.msra.mxu0 %v3850
        %4824 = vmatprep.mubr.bf16.mxu0 %v1706
        %4825 = vmatmul.mubr.bf16.gmra.mrb[0].mxu0 %v1705
        %v4826 = vpop.f32.mrb[0].mxu0
        %v4827 = vadd.f32 %v4786, %v4826
        %v4828 = vpop.f32.mrb[0].mxu0
        %v4829 = vadd.f32 %v4788, %v4828
        %v4830 = vpop.f32.mrb[0].mxu0
        %v4831 = vpop.f32.mrb[0].mxu0
        %4832 = vdwg.mxu0
        %4833 = vmatprep.subr.bf16.mxu0 %v3853
        %4834 = vmatpush1.bf16.msra.mxu0 %v3852
        %4835 = vmatprep.subr.bf16.mxu0 %v3855
        %4836 = vmatpush1.bf16.msra.mxu0 %v3854
        %4837 = vmatprep.subr.bf16.mxu0 %v3857
        %4838 = vmatpush1.bf16.msra.mxu0 %v3856
        %4839 = vmatprep.subr.bf16.mxu0 %v3859
        %4840 = vmatpush1.bf16.msra.mxu0 %v3858
        %4841 = vmatprep.subr.bf16.mxu0 %v3861
        %4842 = vmatpush1.bf16.msra.mxu0 %v3860
        %4843 = vmatprep.subr.bf16.mxu0 %v3863
        %4844 = vmatpush1.bf16.msra.mxu0 %v3862
        %4845 = vmatprep.subr.bf16.mxu0 %v3865
        %4846 = vmatpush1.bf16.msra.mxu0 %v3864
        %4847 = vmatprep.subr.bf16.mxu0 %v3867
        %4848 = vmatpush1.bf16.msra.mxu0 %v3866
        %4849 = vmatprep.subr.bf16.mxu0 0
        %4850 = vmatpush1.bf16.msra.mxu0 0
        %4851 = vmatprep.subr.bf16.mxu0 0
        %4852 = vmatpush1.bf16.msra.mxu0 0
        %4853 = vmatprep.subr.bf16.mxu0 0
        %4854 = vmatpush1.bf16.msra.mxu0 0
        %4855 = vmatprep.subr.bf16.mxu0 0
        %4856 = vmatpush1.bf16.msra.mxu0 0
        %4857 = vmatprep.subr.bf16.mxu0 0
        %4858 = vmatpush1.bf16.msra.mxu0 0
        %4859 = vmatprep.subr.bf16.mxu0 0
        %4860 = vmatpush1.bf16.msra.mxu0 0
        %4861 = vmatprep.subr.bf16.mxu0 0
        %4862 = vmatpush1.bf16.msra.mxu0 0
        %4863 = vmatprep.subr.bf16.mxu0 0
        %4864 = vmatpush1.bf16.msra.mxu0 0
        %4865 = vmatprep.mubr.bf16.mxu0 0
        %4866 = vmatmul.mubr.bf16.gmra.mrb[0].mxu0 %v1707
        %v4867 = vpop.f32.mrb[0].mxu0
        %v4868 = vadd.f32 %v4827, %v4867
        %v4869 = vpop.f32.mrb[0].mxu0
        %v4870 = vadd.f32 %v4829, %v4869
        %v4871 = vpop.f32.mrb[0].mxu0
        %v4872 = vpop.f32.mrb[0].mxu0
        %4873 = vdwg.mxu0
        %v4874 = vadd.f32 %v1652, %v4868
        %v4875 = vadd.f32 %v1653, %v4870
        %4876 = vst [vmem:[#allocation2] sm:$0xff] %v4874
        %4877 = vst [vmem:[#allocation2 + $0x8] sm:$0xff] %v4875
        %p4878 = scmp.eq.s32.totalorder %s24, 3
        // Predicated region
        $region85: #{objmjmodel1_forward.1} parent=55 // pred_check
          %p4879 = pneg %p4878
        $region86: #{objmjmodel1_forward.1} parent=55 // pred_check_branch
          %4881 = sbr.rel (%p4879) target = $region88
        $region87: #{objmjmodel1_forward.1} parent=55 // pred_region
          %v4882 = vld [vmem:[#allocation13] sm:$0xff]
          %v4883 = vld [vmem:[#allocation13 + $0x8] sm:$0xff]
          %v4884 = vld [vmem:[#allocation13 + $0x10] sm:$0x1]
          %v4885 = vld [vmem:[#allocation2] sm:$0xff]
          %v4886 = vld [vmem:[#allocation2 + $0x8] sm:$0xff]
          %v4887 = vrot.slane %v4885, 4
          %v4888 = vadd.f32 %v4885, %v4887
          %v4889 = vrot.slane %v4888, 2
          %v4890 = vadd.f32 %v4888, %v4889
          %v4891 = vrot.slane %v4890, 1
          %v4892 = vadd.f32 %v4890, %v4891
          %v4893 = vrot.slane %v4886, 4
          %v4894 = vadd.f32 %v4886, %v4893
          %v4895 = vrot.slane %v4894, 2
          %v4896 = vadd.f32 %v4894, %v4895
          %v4897 = vrot.slane %v4896, 1
          %v4898 = vadd.f32 %v4896, %v4897
          %v4899 = vrcp.pop 8.0
          %v4900 = vmul.f32 %v4892, %v4899
          %v4901 = vmul.f32 %v4898, %v4899
          %v4902 = vsub.f32 %v4885, %v4900
          %v4903 = vsub.f32 %v4886, %v4901
          %v4904 = vmul.f32 %v4902, %v4902
          %v4905 = vmul.f32 %v4903, %v4903
          %v4906 = vrot.slane %v4904, 4
          %v4907 = vadd.f32 %v4904, %v4906
          %v4908 = vrot.slane %v4907, 2
          %v4909 = vadd.f32 %v4907, %v4908
          %v4910 = vrot.slane %v4909, 1
          %v4911 = vadd.f32 %v4909, %v4910
          %v4912 = vrot.slane %v4905, 4
          %v4913 = vadd.f32 %v4905, %v4912
          %v4914 = vrot.slane %v4913, 2
          %v4915 = vadd.f32 %v4913, %v4914
          %v4916 = vrot.slane %v4915, 1
          %v4917 = vadd.f32 %v4915, %v4916
          %v4918 = vmul.f32 %v4911, %v4899
          %v4919 = vmul.f32 %v4917, %v4899
          %v4920 = vadd.f32 %v4918, 1e-05
          %v4921 = vadd.f32 %v4919, 1e-05
          %v4922 = vrsqrt.pop %v4920
          %v4923 = vrsqrt.pop %v4921
          %v4924 = vmul.f32 %v4882, %v4922
          %v4925 = vmul.f32 %v4883, %v4923
          %v4926 = vlaneseq
          %v4927 = vshrl.u32 %v4926, 7
          %v4928 = vsub.s32 4, %v4927
          %v4929 = vrot.slane %v4924, %v4928
          %v4930 = vlaneseq
          %v4931 = vshrl.u32 %v4930, 7
          %v4932 = vsub.s32 4, %v4931
          %v4933 = vrot.slane %v4925, %v4932
          %v4934 = vmul.f32 %v4902, %v4929
          %v4935 = vmul.f32 %v4903, %v4933
          %v4936 = vlaneseq
          %v4937 = vshrl.u32 %v4936, 7
          %v4938 = vsub.s32 5, %v4937
          %v4939 = vrot.slane %v4882, %v4938
          %v4940 = vlaneseq
          %v4941 = vshrl.u32 %v4940, 7
          %v4942 = vsub.s32 5, %v4941
          %v4943 = vrot.slane %v4883, %v4942
          %v4944 = vadd.f32 %v4934, %v4939
          %v4945 = vadd.f32 %v4935, %v4943
          %v4946 = vxor.u32 %v4944, 2147483648
          %v4947 = vxor.u32 %v4945, 2147483648
          %v4948 = vmul.f32 %v4946, 1.442695
          %v4949 = vpow.pop %v4948
          %v4950 = vmul.f32 %v4947, 1.442695
          %v4951 = vpow.pop %v4950
          %v4952 = vadd.f32 %v4949, 1.0
          %v4953 = vadd.f32 %v4951, 1.0
          %v4954 = vrcp.pop %v4952
          %v4955 = vmul.f32 1.0, %v4954
          %v4956 = vrcp.pop %v4953
          %v4957 = vmul.f32 1.0, %v4956
          %v4958 = vpack.c.bf16 %v4955, %v4955
          %v4959 = vpack.c.bf16 %v4957, %v4957
          %v4960 = vld [vmem:[#allocation10] sm:$0xf]
          %v4961 = vld [vmem:[#allocation10 + $0x4] sm:$0xf]
          %v4962 = vld [vmem:[#allocation10 + $0x8] sm:$0xf]
          %v4963 = vld [vmem:[#allocation10 + $0xc] sm:$0xf]
          %v4964 = vld [vmem:[#allocation10 + $0x10] sm:$0xf]
          %v4965 = vld [vmem:[#allocation10 + $0x14] sm:$0xf]
          %v4966 = vld [vmem:[#allocation10 + $0x18] sm:$0xf]
          %v4967 = vld [vmem:[#allocation10 + $0x1c] sm:$0xf]
          %v4968 = vld [vmem:[#allocation10 + $0x20] sm:$0xf]
          %v4969 = vld [vmem:[#allocation10 + $0x24] sm:$0xf]
          %v4970 = vld [vmem:[#allocation10 + $0x28] sm:$0xf]
          %v4971 = vld [vmem:[#allocation10 + $0x2c] sm:$0xf]
          %v4972 = vld [vmem:[#allocation10 + $0x30] sm:$0xf]
          %v4973 = vld [vmem:[#allocation10 + $0x34] sm:$0xf]
          %v4974 = vld [vmem:[#allocation10 + $0x38] sm:$0xf]
          %v4975 = vld [vmem:[#allocation10 + $0x3c] sm:$0xf]
          %v4976 = vld [vmem:[#allocation10 + $0x40] sm:$0xf]
          %v4977 = vld [vmem:[#allocation10 + $0x44] sm:$0xf]
          %v4978 = vld [vmem:[#allocation10 + $0x48] sm:$0xf]
          %v4979 = vld [vmem:[#allocation10 + $0x4c] sm:$0xf]
          %v4980 = vld [vmem:[#allocation10 + $0x50] sm:$0xf]
          %v4981 = vld [vmem:[#allocation10 + $0x54] sm:$0xf]
          %v4982 = vld [vmem:[#allocation10 + $0x58] sm:$0xf]
          %v4983 = vld [vmem:[#allocation10 + $0x5c] sm:$0xf]
          %v4984 = vld [vmem:[#allocation10 + $0x60] sm:$0xf]
          %v4985 = vld [vmem:[#allocation10 + $0x64] sm:$0xf]
          %v4986 = vld [vmem:[#allocation10 + $0x68] sm:$0xf]
          %v4987 = vld [vmem:[#allocation10 + $0x6c] sm:$0xf]
          %v4988 = vld [vmem:[#allocation10 + $0x70] sm:$0xf]
          %v4989 = vld [vmem:[#allocation10 + $0x74] sm:$0xf]
          %v4990 = vld [vmem:[#allocation10 + $0x78] sm:$0xf]
          %v4991 = vld [vmem:[#allocation10 + $0x7c] sm:$0xf]
          %v5024 = vunpack.c.l.b16 %v4960
          %v5025 = vunpack.c.l.b16 %v4961
          %v5026 = vunpack.c.l.b16 %v4962
          %v5027 = vunpack.c.l.b16 %v4963
          %v5028 = vunpack.c.l.b16 %v4964
          %v5029 = vunpack.c.l.b16 %v4965
          %v5030 = vunpack.c.l.b16 %v4966
          %v5031 = vunpack.c.l.b16 %v4967
          %v5032 = vunpack.c.l.b16 %v4968
          %v5033 = vunpack.c.l.b16 %v4969
          %v5034 = vunpack.c.l.b16 %v4970
          %v5035 = vunpack.c.l.b16 %v4971
          %v5036 = vunpack.c.l.b16 %v4972
          %v5037 = vunpack.c.l.b16 %v4973
          %v5038 = vunpack.c.l.b16 %v4974
          %v5039 = vunpack.c.l.b16 %v4975
          %v5040 = vunpack.c.l.b16 %v4976
          %v5041 = vunpack.c.l.b16 %v4977
          %v5042 = vunpack.c.l.b16 %v4978
          %v5043 = vunpack.c.l.b16 %v4979
          %v5044 = vunpack.c.l.b16 %v4980
          %v5045 = vunpack.c.l.b16 %v4981
          %v5046 = vunpack.c.l.b16 %v4982
          %v5047 = vunpack.c.l.b16 %v4983
          %v5048 = vunpack.c.l.b16 %v4984
          %v5049 = vunpack.c.l.b16 %v4985
          %v5050 = vunpack.c.l.b16 %v4986
          %v5051 = vunpack.c.l.b16 %v4987
          %v5052 = vunpack.c.l.b16 %v4988
          %v5053 = vunpack.c.l.b16 %v4989
          %v5054 = vunpack.c.l.b16 %v4990
          %v5055 = vunpack.c.l.b16 %v4991
          %v5056 = vpack.c.b16 %v5025, %v5024
          %v5057 = vpack.c.b16 %v5027, %v5026
          %v5058 = vpack.c.b16 %v5029, %v5028
          %v5059 = vpack.c.b16 %v5031, %v5030
          %v5060 = vpack.c.b16 %v5033, %v5032
          %v5061 = vpack.c.b16 %v5035, %v5034
          %v5062 = vpack.c.b16 %v5037, %v5036
          %v5063 = vpack.c.b16 %v5039, %v5038
          %v5064 = vpack.c.b16 %v5041, %v5040
          %v5065 = vpack.c.b16 %v5043, %v5042
          %v5066 = vpack.c.b16 %v5045, %v5044
          %v5067 = vpack.c.b16 %v5047, %v5046
          %v5068 = vpack.c.b16 %v5049, %v5048
          %v5069 = vpack.c.b16 %v5051, %v5050
          %v5070 = vpack.c.b16 %v5053, %v5052
          %v5071 = vpack.c.b16 %v5055, %v5054
          %5088 = vmatprep.subr.bf16.mxu0 0
          %5089 = vmatpush1.bf16.msra.mxu0 %v5056
          %5090 = vmatprep.subr.bf16.mxu0 0
          %5091 = vmatpush1.bf16.msra.mxu0 %v5057
          %5092 = vmatprep.subr.bf16.mxu0 0
          %5093 = vmatpush1.bf16.msra.mxu0 %v5058
          %5094 = vmatprep.subr.bf16.mxu0 0
          %5095 = vmatpush1.bf16.msra.mxu0 %v5059
          %5096 = vmatprep.subr.bf16.mxu0 0
          %5097 = vmatpush1.bf16.msra.mxu0 %v5060
          %5098 = vmatprep.subr.bf16.mxu0 0
          %5099 = vmatpush1.bf16.msra.mxu0 %v5061
          %5100 = vmatprep.subr.bf16.mxu0 0
          %5101 = vmatpush1.bf16.msra.mxu0 %v5062
          %5102 = vmatprep.subr.bf16.mxu0 0
          %5103 = vmatpush1.bf16.msra.mxu0 %v5063
          %5104 = vmatprep.subr.bf16.mxu0 0
          %5105 = vmatpush1.bf16.msra.mxu0 %v5064
          %5106 = vmatprep.subr.bf16.mxu0 0
          %5107 = vmatpush1.bf16.msra.mxu0 %v5065
          %5108 = vmatprep.subr.bf16.mxu0 0
          %5109 = vmatpush1.bf16.msra.mxu0 %v5066
          %5110 = vmatprep.subr.bf16.mxu0 0
          %5111 = vmatpush1.bf16.msra.mxu0 %v5067
          %5112 = vmatprep.subr.bf16.mxu0 0
          %5113 = vmatpush1.bf16.msra.mxu0 %v5068
          %5114 = vmatprep.subr.bf16.mxu0 0
          %5115 = vmatpush1.bf16.msra.mxu0 %v5069
          %5116 = vmatprep.subr.bf16.mxu0 0
          %5117 = vmatpush1.bf16.msra.mxu0 %v5070
          %5118 = vmatprep.subr.bf16.mxu0 0
          %5119 = vmatpush1.bf16.msra.mxu0 %v5071
          %5120 = vmatprep.mubr.bf16.mxu0 %v4959
          %5121 = vmatmul.mubr.bf16.gmra.mrb[0].mxu0 %v4958
          %v5122 = vpop.f32.mrb[0].mxu0
          %v5123 = vadd.f32 0.0, %v5122
          %v5124 = vpop.f32.mrb[0].mxu0
          %v5125 = vpop.f32.mrb[0].mxu0
          %v5126 = vpop.f32.mrb[0].mxu0
          %5127 = vdwg.mxu0
          %v5128 = vrot.slane %v5123, 4
          %v5129 = vadd.f32 %v5123, %v5128
          %v5130 = vrot.slane %v5129, 2
          %v5131 = vadd.f32 %v5129, %v5130
          %v5132 = vrot.slane %v5131, 1
          %v5133 = vadd.f32 %v5131, %v5132
          %v5134 = vmul.f32 %v5133, %v4899
          %v5135 = vsub.f32 %v5123, %v5134
          %v5136 = vmul.f32 %v5135, %v5135
          %v5137 = vrot.slane %v5136, 4
          %v5138 = vadd.f32 %v5136, %v5137
          %v5139 = vrot.slane %v5138, 2
          %v5140 = vadd.f32 %v5138, %v5139
          %v5141 = vrot.slane %v5140, 1
          %v5142 = vadd.f32 %v5140, %v5141
          %v5143 = vmul.f32 %v5142, %v4899
          %v5144 = vadd.f32 %v5143, 1e-05
          %v5145 = vrsqrt.pop %v5144
          %v5146 = vmul.f32 %v4882, %v5145
          %v5147 = vlaneseq
          %v5148 = vshrl.u32 %v5147, 7
          %v5149 = vsub.s32 6, %v5148
          %v5150 = vrot.slane %v5146, %v5149
          %v5151 = vmul.f32 %v5135, %v5150
          %v5152 = vlaneseq
          %v5153 = vshrl.u32 %v5152, 7
          %v5154 = vsub.s32 7, %v5153
          %v5155 = vrot.slane %v4882, %v5154
          %v5156 = vadd.f32 %v5151, %v5155
          %v5157 = vmax.f32 %v5156, 0.0
          %v5158 = vld [vmem:[#allocation3] sm:$0xff]
          %v5159 = vld [vmem:[#allocation3 + $0x8] sm:$0xff]
          %v5160 = vpack.c.bf16 %v5157, %v5157
          %v5161 = vpack.c.bf16 %v5158, %v5158
          %v5162 = vpack.c.bf16 %v5159, %v5159
          %v5163 = vld [vmem:[#allocation11] sm:$0xf]
          %v5164 = vld [vmem:[#allocation11 + $0x4] sm:$0xf]
          %v5165 = vld [vmem:[#allocation11 + $0x8] sm:$0xf]
          %v5166 = vld [vmem:[#allocation11 + $0xc] sm:$0xf]
          %v5167 = vld [vmem:[#allocation11 + $0x10] sm:$0xf]
          %v5168 = vld [vmem:[#allocation11 + $0x14] sm:$0xf]
          %v5169 = vld [vmem:[#allocation11 + $0x18] sm:$0xf]
          %v5170 = vld [vmem:[#allocation11 + $0x1c] sm:$0xf]
          %v5171 = vld [vmem:[#allocation11 + $0x20] sm:$0xf]
          %v5172 = vld [vmem:[#allocation11 + $0x24] sm:$0xf]
          %v5173 = vld [vmem:[#allocation11 + $0x28] sm:$0xf]
          %v5174 = vld [vmem:[#allocation11 + $0x2c] sm:$0xf]
          %v5175 = vld [vmem:[#allocation11 + $0x30] sm:$0xf]
          %v5176 = vld [vmem:[#allocation11 + $0x34] sm:$0xf]
          %v5177 = vld [vmem:[#allocation11 + $0x38] sm:$0xf]
          %v5178 = vld [vmem:[#allocation11 + $0x3c] sm:$0xf]
          %v5179 = vld [vmem:[#allocation11 + $0x40] sm:$0xf]
          %v5180 = vld [vmem:[#allocation11 + $0x44] sm:$0xf]
          %v5181 = vld [vmem:[#allocation11 + $0x48] sm:$0xf]
          %v5182 = vld [vmem:[#allocation11 + $0x4c] sm:$0xf]
          %v5183 = vld [vmem:[#allocation11 + $0x50] sm:$0xf]
          %v5184 = vld [vmem:[#allocation11 + $0x54] sm:$0xf]
          %v5185 = vld [vmem:[#allocation11 + $0x58] sm:$0xf]
          %v5186 = vld [vmem:[#allocation11 + $0x5c] sm:$0xf]
          %v5187 = vld [vmem:[#allocation11 + $0x60] sm:$0xf]
          %v5188 = vld [vmem:[#allocation11 + $0x64] sm:$0xf]
          %v5189 = vld [vmem:[#allocation11 + $0x68] sm:$0xf]
          %v5190 = vld [vmem:[#allocation11 + $0x6c] sm:$0xf]
          %v5191 = vld [vmem:[#allocation11 + $0x70] sm:$0xf]
          %v5192 = vld [vmem:[#allocation11 + $0x74] sm:$0xf]
          %v5193 = vld [vmem:[#allocation11 + $0x78] sm:$0xf]
          %v5194 = vld [vmem:[#allocation11 + $0x7c] sm:$0xf]
          %v5195 = vld [vmem:[#allocation11 + $0x80] sm:$0xf]
          %v5196 = vld [vmem:[#allocation11 + $0x84] sm:$0xf]
          %v5197 = vld [vmem:[#allocation11 + $0x88] sm:$0xf]
          %v5198 = vld [vmem:[#allocation11 + $0x8c] sm:$0xf]
          %v5199 = vld [vmem:[#allocation11 + $0x90] sm:$0xf]
          %v5200 = vld [vmem:[#allocation11 + $0x94] sm:$0xf]
          %v5201 = vld [vmem:[#allocation11 + $0x98] sm:$0xf]
          %v5202 = vld [vmem:[#allocation11 + $0x9c] sm:$0xf]
          %v5203 = vld [vmem:[#allocation11 + $0xa0] sm:$0xf]
          %v5204 = vld [vmem:[#allocation11 + $0xa4] sm:$0xf]
          %v5205 = vld [vmem:[#allocation11 + $0xa8] sm:$0xf]
          %v5206 = vld [vmem:[#allocation11 + $0xac] sm:$0xf]
          %v5207 = vld [vmem:[#allocation11 + $0xb0] sm:$0xf]
          %v5208 = vld [vmem:[#allocation11 + $0xb4] sm:$0xf]
          %v5209 = vld [vmem:[#allocation11 + $0xb8] sm:$0xf]
          %v5210 = vld [vmem:[#allocation11 + $0xbc] sm:$0xf]
          %v5211 = vlaneseq
          %v5212 = vshrl.u32 %v5211, 7
          %v5213 = vsub.s32 0, %v5212
          %v5214 = vrot.slane %v4884, %v5213
          %v5263 = vunpack.c.l.b16 %v5163
          %v5264 = vunpack.c.l.b16 %v5164
          %v5265 = vunpack.c.l.b16 %v5165
          %v5266 = vunpack.c.l.b16 %v5166
          %v5267 = vunpack.c.l.b16 %v5167
          %v5268 = vunpack.c.l.b16 %v5168
          %v5269 = vunpack.c.l.b16 %v5169
          %v5270 = vunpack.c.l.b16 %v5170
          %v5271 = vunpack.c.l.b16 %v5171
          %v5272 = vunpack.c.l.b16 %v5172
          %v5273 = vunpack.c.l.b16 %v5173
          %v5274 = vunpack.c.l.b16 %v5174
          %v5275 = vunpack.c.l.b16 %v5175
          %v5276 = vunpack.c.l.b16 %v5176
          %v5277 = vunpack.c.l.b16 %v5177
          %v5278 = vunpack.c.l.b16 %v5178
          %v5279 = vunpack.c.l.b16 %v5179
          %v5280 = vunpack.c.l.b16 %v5180
          %v5281 = vunpack.c.l.b16 %v5181
          %v5282 = vunpack.c.l.b16 %v5182
          %v5283 = vunpack.c.l.b16 %v5183
          %v5284 = vunpack.c.l.b16 %v5184
          %v5285 = vunpack.c.l.b16 %v5185
          %v5286 = vunpack.c.l.b16 %v5186
          %v5287 = vunpack.c.l.b16 %v5187
          %v5288 = vunpack.c.l.b16 %v5188
          %v5289 = vunpack.c.l.b16 %v5189
          %v5290 = vunpack.c.l.b16 %v5190
          %v5291 = vunpack.c.l.b16 %v5191
          %v5292 = vunpack.c.l.b16 %v5192
          %v5293 = vunpack.c.l.b16 %v5193
          %v5294 = vunpack.c.l.b16 %v5194
          %v5295 = vunpack.c.l.b16 %v5195
          %v5296 = vunpack.c.l.b16 %v5196
          %v5297 = vunpack.c.l.b16 %v5197
          %v5298 = vunpack.c.l.b16 %v5198
          %v5299 = vunpack.c.l.b16 %v5199
          %v5300 = vunpack.c.l.b16 %v5200
          %v5301 = vunpack.c.l.b16 %v5201
          %v5302 = vunpack.c.l.b16 %v5202
          %v5303 = vunpack.c.l.b16 %v5203
          %v5304 = vunpack.c.l.b16 %v5204
          %v5305 = vunpack.c.l.b16 %v5205
          %v5306 = vunpack.c.l.b16 %v5206
          %v5307 = vunpack.c.l.b16 %v5207
          %v5308 = vunpack.c.l.b16 %v5208
          %v5309 = vunpack.c.l.b16 %v5209
          %v5310 = vunpack.c.l.b16 %v5210
          %v5311 = vpack.c.b16 %v5264, %v5263
          %v5312 = vpack.c.b16 %v5266, %v5265
          %v5313 = vpack.c.b16 %v5268, %v5267
          %v5314 = vpack.c.b16 %v5270, %v5269
          %v5315 = vpack.c.b16 %v5272, %v5271
          %v5316 = vpack.c.b16 %v5274, %v5273
          %v5317 = vpack.c.b16 %v5276, %v5275
          %v5318 = vpack.c.b16 %v5278, %v5277
          %v5319 = vpack.c.b16 %v5280, %v5279
          %v5320 = vpack.c.b16 %v5282, %v5281
          %v5321 = vpack.c.b16 %v5284, %v5283
          %v5322 = vpack.c.b16 %v5286, %v5285
          %v5323 = vpack.c.b16 %v5288, %v5287
          %v5324 = vpack.c.b16 %v5290, %v5289
          %v5325 = vpack.c.b16 %v5292, %v5291
          %v5326 = vpack.c.b16 %v5294, %v5293
          %v5327 = vpack.c.b16 %v5296, %v5295
          %v5328 = vpack.c.b16 %v5298, %v5297
          %v5329 = vpack.c.b16 %v5300, %v5299
          %v5330 = vpack.c.b16 %v5302, %v5301
          %v5331 = vpack.c.b16 %v5304, %v5303
          %v5332 = vpack.c.b16 %v5306, %v5305
          %v5333 = vpack.c.b16 %v5308, %v5307
          %v5334 = vpack.c.b16 %v5310, %v5309
          %5359 = vmatprep.subr.bf16.mxu0 0
          %5360 = vmatpush1.bf16.msra.mxu0 %v5311
          %5361 = vmatprep.subr.bf16.mxu0 0
          %5362 = vmatpush1.bf16.msra.mxu0 %v5312
          %5363 = vmatprep.subr.bf16.mxu0 0
          %5364 = vmatpush1.bf16.msra.mxu0 %v5313
          %5365 = vmatprep.subr.bf16.mxu0 0
          %5366 = vmatpush1.bf16.msra.mxu0 %v5314
          %5367 = vmatprep.subr.bf16.mxu0 0
          %5368 = vmatpush1.bf16.msra.mxu0 %v5315
          %5369 = vmatprep.subr.bf16.mxu0 0
          %5370 = vmatpush1.bf16.msra.mxu0 %v5316
          %5371 = vmatprep.subr.bf16.mxu0 0
          %5372 = vmatpush1.bf16.msra.mxu0 %v5317
          %5373 = vmatprep.subr.bf16.mxu0 0
          %5374 = vmatpush1.bf16.msra.mxu0 %v5318
          %5375 = vmatprep.subr.bf16.mxu0 0
          %5376 = vmatpush1.bf16.msra.mxu0 %v5319
          %5377 = vmatprep.subr.bf16.mxu0 0
          %5378 = vmatpush1.bf16.msra.mxu0 %v5320
          %5379 = vmatprep.subr.bf16.mxu0 0
          %5380 = vmatpush1.bf16.msra.mxu0 %v5321
          %5381 = vmatprep.subr.bf16.mxu0 0
          %5382 = vmatpush1.bf16.msra.mxu0 %v5322
          %5383 = vmatprep.subr.bf16.mxu0 0
          %5384 = vmatpush1.bf16.msra.mxu0 %v5323
          %5385 = vmatprep.subr.bf16.mxu0 0
          %5386 = vmatpush1.bf16.msra.mxu0 %v5324
          %5387 = vmatprep.subr.bf16.mxu0 0
          %5388 = vmatpush1.bf16.msra.mxu0 %v5325
          %5389 = vmatprep.subr.bf16.mxu0 0
          %5390 = vmatpush1.bf16.msra.mxu0 %v5326
          %5391 = vmatprep.mubr.bf16.mxu0 %v5161
          %5392 = vmatmul.mubr.bf16.gmra.mrb[0].mxu0 %v5160
          %v5393 = vpop.f32.mrb[0].mxu0
          %v5394 = vadd.f32 %v5214, %v5393
          %v5395 = vpop.f32.mrb[0].mxu0
          %v5396 = vpop.f32.mrb[0].mxu0
          %v5397 = vpop.f32.mrb[0].mxu0
          %5398 = vdwg.mxu0
          %5399 = vmatprep.subr.bf16.mxu0 0
          %5400 = vmatpush1.bf16.msra.mxu0 %v5327
          %5401 = vmatprep.subr.bf16.mxu0 0
          %5402 = vmatpush1.bf16.msra.mxu0 %v5328
          %5403 = vmatprep.subr.bf16.mxu0 0
          %5404 = vmatpush1.bf16.msra.mxu0 %v5329
          %5405 = vmatprep.subr.bf16.mxu0 0
          %5406 = vmatpush1.bf16.msra.mxu0 %v5330
          %5407 = vmatprep.subr.bf16.mxu0 0
          %5408 = vmatpush1.bf16.msra.mxu0 %v5331
          %5409 = vmatprep.subr.bf16.mxu0 0
          %5410 = vmatpush1.bf16.msra.mxu0 %v5332
          %5411 = vmatprep.subr.bf16.mxu0 0
          %5412 = vmatpush1.bf16.msra.mxu0 %v5333
          %5413 = vmatprep.subr.bf16.mxu0 0
          %5414 = vmatpush1.bf16.msra.mxu0 %v5334
          %5415 = vmatprep.subr.bf16.mxu0 0
          %5416 = vmatpush1.bf16.msra.mxu0 0
          %5417 = vmatprep.subr.bf16.mxu0 0
          %5418 = vmatpush1.bf16.msra.mxu0 0
          %5419 = vmatprep.subr.bf16.mxu0 0
          %5420 = vmatpush1.bf16.msra.mxu0 0
          %5421 = vmatprep.subr.bf16.mxu0 0
          %5422 = vmatpush1.bf16.msra.mxu0 0
          %5423 = vmatprep.subr.bf16.mxu0 0
          %5424 = vmatpush1.bf16.msra.mxu0 0
          %5425 = vmatprep.subr.bf16.mxu0 0
          %5426 = vmatpush1.bf16.msra.mxu0 0
          %5427 = vmatprep.subr.bf16.mxu0 0
          %5428 = vmatpush1.bf16.msra.mxu0 0
          %5429 = vmatprep.subr.bf16.mxu0 0
          %5430 = vmatpush1.bf16.msra.mxu0 0
          %5431 = vmatprep.mubr.bf16.mxu0 0
          %5432 = vmatmul.mubr.bf16.gmra.mrb[0].mxu0 %v5162
          %v5433 = vpop.f32.mrb[0].mxu0
          %v5434 = vadd.f32 %v5394, %v5433
          %v5435 = vpop.f32.mrb[0].mxu0
          %v5436 = vpop.f32.mrb[0].mxu0
          %v5437 = vpop.f32.mrb[0].mxu0
          %5438 = vdwg.mxu0
          %v5439 = vmax.f32 %v5434, 0.0
          %vm5440 = vcmask 498688
          %5441 = vst.msk [vmem:[#allocation14] sm:$0xff] %vm5440, %v5439
        $region88: #{objmjmodel1_forward.1} parent=55 // pred_fallthru
          _
        // Predicated region
        $region89: #{objmjmodel1_forward.1} parent=55 // pred_check
          %p5442 = pneg %p236
        $region90: #{objmjmodel1_forward.1} parent=55 // pred_check_branch
          %5444 = sbr.rel (%p5442) target = $region92
        $region91: #{objmjmodel1_forward.1} parent=55 // pred_region
          %s5446 = ssub.s32 128, 128
          %5447 = vsyncadd [#allocation6], %s5446
          %s5449 = sshll.u32 [#allocation14], 4
          %s5450 = int_to_ptr.vmem [resolvable:$true] %s5449
          %5452 = dma.vmem_to_hbm [thread:$0]  %s5450, 128, %s9, [#allocation6]
        $region92: #{objmjmodel1_forward.1} parent=55 // pred_fallthru
          _
        // Predicated region
        $region93: #{objmjmodel1_forward.1} parent=55 // pred_check
          %p5453 = pneg %p236
        $region94: #{objmjmodel1_forward.1} parent=55 // pred_check_branch
          %5455 = sbr.rel (%p5453) target = $region96
        $region95: #{objmjmodel1_forward.1} parent=55 // pred_region
          %5456 = dma.done [#allocation6], 128
        $region96: #{objmjmodel1_forward.1} parent=55 // pred_fallthru
          _
      $region56: #{objmjmodel1_forward.1} parent=5 // pred_fallthru
        _
      %p5457 = scmp.le.s32.totalorder 2, %s19
      // Predicated region
      $region97: #{objmjmodel1_forward.1} parent=5 // pred_check
        %p5458 = pneg %p5457
      $region98: #{objmjmodel1_forward.1} parent=5 // pred_check_branch
        %5460 = sbr.rel (%p5458) target = $region100
      $region99: #{objmjmodel1_forward.1} parent=5 // pred_region
        %s5461 = ssub.s32 %s19, 2
      $region100: #{objmjmodel1_forward.1} parent=5 // pred_fallthru
        _
    $region6: #{objmjmodel1_forward.1} parent=1 // loop_footer
      %s23 = sadd.s32 1, %s19
    $region7: #{objmjmodel1_forward.1} parent=1 // loop_footer_branch
      %18 = sbr.rel target = $region3
    $region8: #{objmjmodel1_forward.1} parent=1 // loop_exit
      _
    %5462 = vsyncpa [#allocation5], 1
    %s5463 = scalar_lea.sflag [#allocation5], 1
    %5464 = vsyncpa %s5463, 1
    %5465 = vsyncpa [#allocation8], 1
    %5466 = vsyncpa [#allocation12], 1
    %5467 = vsyncpa [#allocation6], 1
    %s5468 = scalar_lea.sflag [#allocation6], 1
    %5469 = vsyncpa %s5468, 1

</llo_original>
